<compile_context>
chip_gen: v5e
topology: v5e:2x2
jax: 0.10.0
libtpu: 0.0.40
codegen_flags: <defaults>
</compile_context>

<pallas_src>
import jax
import jax.numpy as jnp
from jax.experimental import pallas as pl
from jax.experimental.pallas import tpu as pltpu


def _round_up(x, m):
    return ((x + m - 1) // m) * m


def make_lstm_kernel(num_layers: int, hidden_pad: int, seq_len: int,
                     batch_tile: int, input_dim: int):
    """Builds a Pallas kernel closed over all static shape parameters."""
    Hp = hidden_pad      # lane-aligned hidden dim (multiple of 128)
    T = seq_len
    BT = batch_tile      # sublane-aligned batch tile (multiple of 8)
    D = input_dim
    L = num_layers

    def kernel(*refs):
        # refs = [x, len, (w_ih, w_hh, b) * L, w_lin, b_lin, out, proj, hseq]
        x_ref = refs[0]            # (T, BT, D)   f32, time-major
        len_ref = refs[1]          # (BT, 1)      i32
        idx = 2
        layers = []
        for _ in range(L):
            layers.append((refs[idx], refs[idx + 1], refs[idx + 2]))
            idx += 3
        w_lin_ref = refs[idx]      # (Hp, Op)
        b_lin_ref = refs[idx + 1]  # (1, Op)   (pad cols = -1e30)
        out_ref = refs[idx + 2]    # (BT, Op)
        proj_ref = refs[idx + 3]   # VMEM (T*BT, 4*Hp)  hoisted projection slab
        hseq_ref = refs[idx + 4]   # VMEM (T*BT, Hp)    inter-layer hidden seq

        # Broadcast lengths once; per-step mask is one whole-vreg compare.
        len_b = jnp.broadcast_to(len_ref[...], (BT, Hp))

        # ---- Layer 0: hoisted input projection, written once to scratch ----
        # (independent per-t matmuls, all off the serial recurrence path)
        w_ih0, _, b0 = layers[0]
        w_ih0_v = w_ih0[...]
        b0_v = b0[...]
        for t in range(T):
            proj_ref[pl.ds(t * BT, BT), :] = (
                jnp.dot(x_ref[t], w_ih0_v,
                        preferred_element_type=jnp.float32) + b0_v)

        h = jnp.zeros((BT, Hp), jnp.float32)
        for layer in range(L):
            w_ih_l, w_hh_l, b_l = layers[layer]
            if layer > 0:
                # Hoisted projection from the previous layer's full hidden
                # sequence: one (T*BT, Hp) @ (Hp, 4Hp) matmul from scratch.
                proj_ref[...] = (
                    jnp.dot(hseq_ref[...], w_ih_l[...],
                            preferred_element_type=jnp.float32) + b_l[...])

            w_hh = w_hh_l[...]                        # (Hp, 4Hp), loaded once
            h = jnp.zeros((BT, Hp), jnp.float32)
            c = jnp.zeros((BT, Hp), jnp.float32)

            # Serial recurrence, fully unrolled (T static and small). Only one
            # small matmul per step remains on the critical path; per-step
            # live state is just h, c and one (BT, 4Hp) gate slab.
            for t in range(T):
                gates = proj_ref[pl.ds(t * BT, BT), :] + jnp.dot(
                    h, w_hh, preferred_element_type=jnp.float32)   # (BT, 4Hp)
                # Gate columns pre-permuted to [ i | f | o | g ], each a full
                # 128-lane block.
                sg = jax.nn.sigmoid(gates[:, :3 * Hp])
                i_g = sg[:, 0:Hp]
                f_g = sg[:, Hp:2 * Hp]
                o_g = sg[:, 2 * Hp:3 * Hp]
                g_g = jnp.tanh(gates[:, 3 * Hp:])
                c_new = f_g * c + i_g * g_g
                h_new = o_g * jnp.tanh(c_new)
                # Packed-sequence semantics: freeze state past each row's end.
                m = (t < len_b)
                c = jnp.where(m, c_new, c)
                h = jnp.where(m, h_new, h)
                if layer < L - 1:
                    hseq_ref[pl.ds(t * BT, BT), :] = h

        # h == top-layer hidden state at each row's last valid timestep.
        logits = jnp.dot(h, w_lin_ref[...],
                         preferred_element_type=jnp.float32) + b_lin_ref[...]
        mx = jnp.max(logits, axis=1, keepdims=True)
        shifted = logits - mx
        lse = jnp.log(jnp.sum(jnp.exp(shifted), axis=1, keepdims=True))
        out_ref[...] = shifted - lse                   # LogSoftmax(dim=1)

    return kernel


def _prep_gate_weight(w, d_in_pad, Hp):
    """(d_in, 4H) PyTorch order [i,f,g,o] -> (d_in_pad, 4Hp) kernel order
    [i,f,o,g], each gate block zero-padded to Hp lanes (numerically exact)."""
    d_in, four_h = w.shape
    H = four_h // 4
    blocks = (w[:, 0:H], w[:, H:2 * H], w[:, 3 * H:4 * H], w[:, 2 * H:3 * H])
    out = jnp.zeros((d_in_pad, 4 * Hp), jnp.float32)
    for k, blk in enumerate(blocks):
        out = out.at[:d_in, k * Hp:k * Hp + H].set(blk)
    return out


def _prep_gate_bias(b, Hp):
    """(1, 4H) PyTorch order -> (1, 4Hp) kernel order, zero-padded."""
    four_h = b.shape[1]
    H = four_h // 4
    blocks = (b[:, 0:H], b[:, H:2 * H], b[:, 3 * H:4 * H], b[:, 2 * H:3 * H])
    out = jnp.zeros((1, 4 * Hp), jnp.float32)
    for k, blk in enumerate(blocks):
        out = out.at[:, k * Hp:k * Hp + H].set(blk)
    return out


def init_params(key, input_dim, hidden_dim, output_dim, num_layers):
    """Deterministic PyTorch-style uniform(-1/sqrt(H), 1/sqrt(H)) init.

    Weights stored pre-transposed, in PyTorch gate order [i,f,g,o]; the
    wrapper permutes/pads them for the kernel.
    """
    k = 1.0 / jnp.sqrt(jnp.float32(hidden_dim))
    w_ih, w_hh, b = [], [], []
    for l in range(num_layers):
        d_in = input_dim if l == 0 else hidden_dim
        key, k1, k2, k3, k4 = jax.random.split(key, 5)
        w_ih.append(jax.random.uniform(k1, (d_in, 4 * hidden_dim), jnp.float32, -k, k))
        w_hh.append(jax.random.uniform(k2, (hidden_dim, 4 * hidden_dim), jnp.float32, -k, k))
        b_ih = jax.random.uniform(k3, (4 * hidden_dim,), jnp.float32, -k, k)
        b_hh = jax.random.uniform(k4, (4 * hidden_dim,), jnp.float32, -k, k)
        b.append((b_ih + b_hh).reshape(1, 4 * hidden_dim))
    key, k5, k6 = jax.random.split(key, 3)
    kl = 1.0 / jnp.sqrt(jnp.float32(hidden_dim))
    w_lin = jax.random.uniform(k5, (hidden_dim, output_dim), jnp.float32, -kl, kl)
    b_lin = jax.random.uniform(k6, (1, output_dim), jnp.float32, -kl, kl)
    return {
        "w_ih": w_ih, "w_hh": w_hh, "b": b,
        "w_lin": w_lin, "b_lin": b_lin,
        "hidden_dim": hidden_dim, "num_layers": num_layers,
    }


def lstm_head_forward_pallas(x_btd, lengths, params):
    """x_btd: (B, T, D) float32 padded batch_first; lengths: (B,) int32."""
    B, T, D = x_btd.shape
    H = params["hidden_dim"]
    L = params["num_layers"]
    O = params["w_lin"].shape[1]

    Hp = _round_up(H, 128)     # lane-aligned gate blocks (exact zero-padding)
    Op = _round_up(O, 128)     # lane-dense output store

    # Batch tile: >=2 tiles when B >= 16 so ("parallel",) can shard across
    # v7x's two TensorCores; always sublane-dense (multiple of 8).
    if B >= 16:
        BT = min(128, _round_up((B + 1) // 2, 8))
    else:
        BT = _round_up(B, 8)
    B_pad = _round_up(B, BT)

    # Time-major (T, B_pad, D); padded rows get length 0 so their state stays
    # frozen at zero and their outputs are discarded.
    x_p = jnp.zeros((T, B_pad, D), jnp.float32).at[:, :B, :].set(
        jnp.transpose(x_btd.astype(jnp.float32), (1, 0, 2)))
    len_p = jnp.zeros((B_pad, 1), jnp.int32).at[:B, 0].set(lengths.astype(jnp.int32))

    inputs = [x_p, len_p]
    in_specs = [
        pl.BlockSpec((T, BT, D), lambda i: (0, i, 0)),
        pl.BlockSpec((BT, 1), lambda i: (i, 0)),
    ]
    for l in range(L):
        d_in = D if l == 0 else Hp
        inputs += [
            _prep_gate_weight(params["w_ih"][l], d_in, Hp),
            _prep_gate_weight(params["w_hh"][l], Hp, Hp),
            _prep_gate_bias(params["b"][l], Hp),
        ]
        in_specs += [
            pl.BlockSpec((d_in, 4 * Hp), lambda i: (0, 0)),
            pl.BlockSpec((Hp, 4 * Hp), lambda i: (0, 0)),
            pl.BlockSpec((1, 4 * Hp), lambda i: (0, 0)),
        ]
    # Linear head: zero-pad H rows and O cols; padded bias cols = -1e30 so
    # they vanish from the LogSoftmax normalizer (store stays lane-dense).
    w_lin_p = jnp.zeros((Hp, Op), jnp.float32).at[:H, :O].set(params["w_lin"])
    b_lin_p = jnp.full((1, Op), -1e30, jnp.float32).at[:, :O].set(params["b_lin"])
    inputs += [w_lin_p, b_lin_p]
    in_specs += [
        pl.BlockSpec((Hp, Op), lambda i: (0, 0)),
        pl.BlockSpec((1, Op), lambda i: (0, 0)),
    ]

    kernel = make_lstm_kernel(L, Hp, T, BT, D)

    out = pl.pallas_call(
        kernel,
        out_shape=jax.ShapeDtypeStruct((B_pad, Op), jnp.float32),
        grid=(B_pad // BT,),
        in_specs=in_specs,
        out_specs=pl.BlockSpec((BT, Op), lambda i: (i, 0)),
        scratch_shapes=[
            pltpu.VMEM((T * BT, 4 * Hp), jnp.float32),  # hoisted projection
            pltpu.VMEM((T * BT, Hp), jnp.float32),      # inter-layer hidden seq
        ],
        compiler_params=pltpu.CompilerParams(
            dimension_semantics=("parallel",),   # batch tiles -> both TCs on v7x
        ),
    )(*inputs)
    return out[:B, :O]


def lstm_head_forward_ref(x_btd, lengths, params):
    """Pure-JAX reference mirroring PyTorch semantics (for validation)."""
    B, T, D = x_btd.shape
    H = params["hidden_dim"]
    L = params["num_layers"]
    h = [jnp.zeros((B, H), jnp.float32) for _ in range(L)]
    c = [jnp.zeros((B, H), jnp.float32) for _ in range(L)]
    for t in range(T):
        mask = (t < lengths)[:, None]
        inp = x_btd[:, t, :].astype(jnp.float32)
        for l in range(L):
            gates = inp @ params["w_ih"][l] + h[l] @ params["w_hh"][l] + params["b"][l]
            i_g = jax.nn.sigmoid(gates[:, 0:H])
            f_g = jax.nn.sigmoid(gates[:, H:2 * H])
            g_g = jnp.tanh(gates[:, 2 * H:3 * H])
            o_g = jax.nn.sigmoid(gates[:, 3 * H:4 * H])
            c_new = f_g * c[l] + i_g * g_g
            h_new = o_g * jnp.tanh(c_new)
            c[l] = jnp.where(mask, c_new, c[l])
            h[l] = jnp.where(mask, h_new, h[l])
            inp = h[l]
    logits = h[-1] @ params["w_lin"] + params["b_lin"]
    return jax.nn.log_softmax(logits, axis=1)


if __name__ == "__main__":
    # Small shapes consistent with the module's forward:
    # batch=4, seq<=8, input_dim=16, hidden_dim=32, output_dim=8, num_layers=2
    B, T, D, H, O, L = 4, 8, 16, 32, 8, 2

    key = jax.random.PRNGKey(0)
    key, kx = jax.random.split(key)
    x = jax.random.normal(kx, (B, T, D), jnp.float32)
    lengths = jnp.array([8, 5, 3, 6], dtype=jnp.int32)
    # zero out padding past each sequence length (as pad_packed_sequence would)
    t_idx = jnp.arange(T)[None, :, None]
    x = jnp.where(t_idx < lengths[:, None, None], x, 0.0)

    params = init_params(jax.random.PRNGKey(1), D, H, O, L)

    out = lstm_head_forward_pallas(x, lengths, params)
    out = jax.block_until_ready(out)

    ref = lstm_head_forward_ref(x, lengths, params)
    assert out.shape == (B, O)
    err = jnp.max(jnp.abs(out - ref))
    assert jnp.allclose(out, ref, atol=1e-3, rtol=1e-3), f"max abs err = {err}"

    print("KERNEL_OK")
</pallas_src>

<mosaic_0001>
module attributes {stable_mosaic.version = 11 : i64} {
  func.func @kernel(%arg0: i32, %arg1: memref<8x8x16xf32, #tpu.memory_space<vmem>>, %arg2: memref<8x1xi32, #tpu.memory_space<vmem>>, %arg3: memref<16x512xf32, #tpu.memory_space<vmem>>, %arg4: memref<128x512xf32, #tpu.memory_space<vmem>>, %arg5: memref<1x512xf32, #tpu.memory_space<vmem>>, %arg6: memref<128x512xf32, #tpu.memory_space<vmem>>, %arg7: memref<128x512xf32, #tpu.memory_space<vmem>>, %arg8: memref<1x512xf32, #tpu.memory_space<vmem>>, %arg9: memref<128x128xf32, #tpu.memory_space<vmem>>, %arg10: memref<1x128xf32, #tpu.memory_space<vmem>>, %arg11: memref<8x128xf32, #tpu.memory_space<vmem>>, %arg12: memref<64x512xf32, #tpu.memory_space<vmem>>, %arg13: memref<64x128xf32, #tpu.memory_space<vmem>>) attributes {dimension_semantics = [#tpu.dimension_semantics<parallel>], iteration_bounds = array<i64: 1>, scalar_prefetch = 0 : i64, scratch_operands = 2 : i64, tpu.core_type = #tpu.core_type<tc>, window_params = [{transform_indices = @transform_0, window_bounds = array<i64: 8, 8, 16>}, {transform_indices = @transform_1, window_bounds = array<i64: 8, 1>}, {pipeline_mode = #tpu.pipeline_mode<synchronous>, transform_indices = @transform_2, window_bounds = array<i64: 16, 512>}, {pipeline_mode = #tpu.pipeline_mode<synchronous>, transform_indices = @transform_3, window_bounds = array<i64: 128, 512>}, {pipeline_mode = #tpu.pipeline_mode<synchronous>, transform_indices = @transform_4, window_bounds = array<i64: 1, 512>}, {pipeline_mode = #tpu.pipeline_mode<synchronous>, transform_indices = @transform_5, window_bounds = array<i64: 128, 512>}, {pipeline_mode = #tpu.pipeline_mode<synchronous>, transform_indices = @transform_6, window_bounds = array<i64: 128, 512>}, {pipeline_mode = #tpu.pipeline_mode<synchronous>, transform_indices = @transform_7, window_bounds = array<i64: 1, 512>}, {pipeline_mode = #tpu.pipeline_mode<synchronous>, transform_indices = @transform_8, window_bounds = array<i64: 128, 128>}, {pipeline_mode = #tpu.pipeline_mode<synchronous>, transform_indices = @transform_9, window_bounds = array<i64: 1, 128>}, {transform_indices = @transform_10, window_bounds = array<i64: 8, 128>}]} {
    %c0 = arith.constant 0 : index
    %c0_0 = arith.constant 0 : index
    %0 = vector.load %arg2[%c0, %c0_0] : memref<8x1xi32, #tpu.memory_space<vmem>>, vector<8x1xi32>
    %1 = vector.shape_cast %0 : vector<8x1xi32> to vector<8x1xi32>
    %2 = vector.broadcast %1 : vector<8x1xi32> to vector<8x128xi32>
    %c0_1 = arith.constant 0 : index
    %c0_2 = arith.constant 0 : index
    %3 = vector.load %arg3[%c0_1, %c0_2] : memref<16x512xf32, #tpu.memory_space<vmem>>, vector<16x512xf32>
    %c0_3 = arith.constant 0 : index
    %c0_4 = arith.constant 0 : index
    %4 = vector.load %arg5[%c0_3, %c0_4] : memref<1x512xf32, #tpu.memory_space<vmem>>, vector<1x512xf32>
    %c0_5 = arith.constant 0 : index
    %c0_6 = arith.constant 0 : index
    %c0_7 = arith.constant 0 : index
    %5 = vector.load %arg1[%c0_5, %c0_6, %c0_7] : memref<8x8x16xf32, #tpu.memory_space<vmem>>, vector<1x8x16xf32>
    %6 = vector.shape_cast %5 : vector<1x8x16xf32> to vector<8x16xf32>
    %cst = arith.constant dense<0.000000e+00> : vector<8x512xf32>
    %7 = tpu.matmul %6, %3, %cst {dimension_numbers = #tpu.dot_dimension_numbers<[1], [0], [0], [1], [0, 0, 1, 1], [], []>} : vector<8x16xf32>, vector<16x512xf32>, vector<8x512xf32> -> vector<8x512xf32>
    %8 = vector.broadcast %4 : vector<1x512xf32> to vector<8x512xf32>
    %9 = arith.addf %7, %8 : vector<8x512xf32>
    %c0_8 = arith.constant 0 : index
    %c0_9 = arith.constant 0 : index
    %10 = vector.load %arg12[%c0_8, %c0_9] : memref<64x512xf32, #tpu.memory_space<vmem>>, vector<8x512xf32>
    tpu.vector_store %arg12[%c0_8, %c0_9], %9 {strides = array<i32>} : memref<64x512xf32, #tpu.memory_space<vmem>>, vector<8x512xf32>,
    %c1 = arith.constant 1 : index
    %c0_10 = arith.constant 0 : index
    %c0_11 = arith.constant 0 : index
    %11 = vector.load %arg1[%c1, %c0_10, %c0_11] : memref<8x8x16xf32, #tpu.memory_space<vmem>>, vector<1x8x16xf32>
    %12 = vector.shape_cast %11 : vector<1x8x16xf32> to vector<8x16xf32>
    %cst_12 = arith.constant dense<0.000000e+00> : vector<8x512xf32>
    %13 = tpu.matmul %12, %3, %cst_12 {dimension_numbers = #tpu.dot_dimension_numbers<[1], [0], [0], [1], [0, 0, 1, 1], [], []>} : vector<8x16xf32>, vector<16x512xf32>, vector<8x512xf32> -> vector<8x512xf32>
    %14 = vector.broadcast %4 : vector<1x512xf32> to vector<8x512xf32>
    %15 = arith.addf %13, %14 : vector<8x512xf32>
    %c8 = arith.constant 8 : index
    %c0_13 = arith.constant 0 : index
    %16 = vector.load %arg12[%c8, %c0_13] : memref<64x512xf32, #tpu.memory_space<vmem>>, vector<8x512xf32>
    tpu.vector_store %arg12[%c8, %c0_13], %15 {strides = array<i32>} : memref<64x512xf32, #tpu.memory_space<vmem>>, vector<8x512xf32>,
    %c2 = arith.constant 2 : index
    %c0_14 = arith.constant 0 : index
    %c0_15 = arith.constant 0 : index
    %17 = vector.load %arg1[%c2, %c0_14, %c0_15] : memref<8x8x16xf32, #tpu.memory_space<vmem>>, vector<1x8x16xf32>
    %18 = vector.shape_cast %17 : vector<1x8x16xf32> to vector<8x16xf32>
    %cst_16 = arith.constant dense<0.000000e+00> : vector<8x512xf32>
    %19 = tpu.matmul %18, %3, %cst_16 {dimension_numbers = #tpu.dot_dimension_numbers<[1], [0], [0], [1], [0, 0, 1, 1], [], []>} : vector<8x16xf32>, vector<16x512xf32>, vector<8x512xf32> -> vector<8x512xf32>
    %20 = vector.broadcast %4 : vector<1x512xf32> to vector<8x512xf32>
    %21 = arith.addf %19, %20 : vector<8x512xf32>
    %c16 = arith.constant 16 : index
    %c0_17 = arith.constant 0 : index
    %22 = vector.load %arg12[%c16, %c0_17] : memref<64x512xf32, #tpu.memory_space<vmem>>, vector<8x512xf32>
    tpu.vector_store %arg12[%c16, %c0_17], %21 {strides = array<i32>} : memref<64x512xf32, #tpu.memory_space<vmem>>, vector<8x512xf32>,
    %c3 = arith.constant 3 : index
    %c0_18 = arith.constant 0 : index
    %c0_19 = arith.constant 0 : index
    %23 = vector.load %arg1[%c3, %c0_18, %c0_19] : memref<8x8x16xf32, #tpu.memory_space<vmem>>, vector<1x8x16xf32>
    %24 = vector.shape_cast %23 : vector<1x8x16xf32> to vector<8x16xf32>
    %cst_20 = arith.constant dense<0.000000e+00> : vector<8x512xf32>
    %25 = tpu.matmul %24, %3, %cst_20 {dimension_numbers = #tpu.dot_dimension_numbers<[1], [0], [0], [1], [0, 0, 1, 1], [], []>} : vector<8x16xf32>, vector<16x512xf32>, vector<8x512xf32> -> vector<8x512xf32>
    %26 = vector.broadcast %4 : vector<1x512xf32> to vector<8x512xf32>
    %27 = arith.addf %25, %26 : vector<8x512xf32>
    %c24 = arith.constant 24 : index
    %c0_21 = arith.constant 0 : index
    %28 = vector.load %arg12[%c24, %c0_21] : memref<64x512xf32, #tpu.memory_space<vmem>>, vector<8x512xf32>
    tpu.vector_store %arg12[%c24, %c0_21], %27 {strides = array<i32>} : memref<64x512xf32, #tpu.memory_space<vmem>>, vector<8x512xf32>,
    %c4 = arith.constant 4 : index
    %c0_22 = arith.constant 0 : index
    %c0_23 = arith.constant 0 : index
    %29 = vector.load %arg1[%c4, %c0_22, %c0_23] : memref<8x8x16xf32, #tpu.memory_space<vmem>>, vector<1x8x16xf32>
    %30 = vector.shape_cast %29 : vector<1x8x16xf32> to vector<8x16xf32>
    %cst_24 = arith.constant dense<0.000000e+00> : vector<8x512xf32>
    %31 = tpu.matmul %30, %3, %cst_24 {dimension_numbers = #tpu.dot_dimension_numbers<[1], [0], [0], [1], [0, 0, 1, 1], [], []>} : vector<8x16xf32>, vector<16x512xf32>, vector<8x512xf32> -> vector<8x512xf32>
    %32 = vector.broadcast %4 : vector<1x512xf32> to vector<8x512xf32>
    %33 = arith.addf %31, %32 : vector<8x512xf32>
    %c32 = arith.constant 32 : index
    %c0_25 = arith.constant 0 : index
    %34 = vector.load %arg12[%c32, %c0_25] : memref<64x512xf32, #tpu.memory_space<vmem>>, vector<8x512xf32>
    tpu.vector_store %arg12[%c32, %c0_25], %33 {strides = array<i32>} : memref<64x512xf32, #tpu.memory_space<vmem>>, vector<8x512xf32>,
    %c5 = arith.constant 5 : index
    %c0_26 = arith.constant 0 : index
    %c0_27 = arith.constant 0 : index
    %35 = vector.load %arg1[%c5, %c0_26, %c0_27] : memref<8x8x16xf32, #tpu.memory_space<vmem>>, vector<1x8x16xf32>
    %36 = vector.shape_cast %35 : vector<1x8x16xf32> to vector<8x16xf32>
    %cst_28 = arith.constant dense<0.000000e+00> : vector<8x512xf32>
    %37 = tpu.matmul %36, %3, %cst_28 {dimension_numbers = #tpu.dot_dimension_numbers<[1], [0], [0], [1], [0, 0, 1, 1], [], []>} : vector<8x16xf32>, vector<16x512xf32>, vector<8x512xf32> -> vector<8x512xf32>
    %38 = vector.broadcast %4 : vector<1x512xf32> to vector<8x512xf32>
    %39 = arith.addf %37, %38 : vector<8x512xf32>
    %c40 = arith.constant 40 : index
    %c0_29 = arith.constant 0 : index
    %40 = vector.load %arg12[%c40, %c0_29] : memref<64x512xf32, #tpu.memory_space<vmem>>, vector<8x512xf32>
    tpu.vector_store %arg12[%c40, %c0_29], %39 {strides = array<i32>} : memref<64x512xf32, #tpu.memory_space<vmem>>, vector<8x512xf32>,
    %c6 = arith.constant 6 : index
    %c0_30 = arith.constant 0 : index
    %c0_31 = arith.constant 0 : index
    %41 = vector.load %arg1[%c6, %c0_30, %c0_31] : memref<8x8x16xf32, #tpu.memory_space<vmem>>, vector<1x8x16xf32>
    %42 = vector.shape_cast %41 : vector<1x8x16xf32> to vector<8x16xf32>
    %cst_32 = arith.constant dense<0.000000e+00> : vector<8x512xf32>
    %43 = tpu.matmul %42, %3, %cst_32 {dimension_numbers = #tpu.dot_dimension_numbers<[1], [0], [0], [1], [0, 0, 1, 1], [], []>} : vector<8x16xf32>, vector<16x512xf32>, vector<8x512xf32> -> vector<8x512xf32>
    %44 = vector.broadcast %4 : vector<1x512xf32> to vector<8x512xf32>
    %45 = arith.addf %43, %44 : vector<8x512xf32>
    %c48 = arith.constant 48 : index
    %c0_33 = arith.constant 0 : index
    %46 = vector.load %arg12[%c48, %c0_33] : memref<64x512xf32, #tpu.memory_space<vmem>>, vector<8x512xf32>
    tpu.vector_store %arg12[%c48, %c0_33], %45 {strides = array<i32>} : memref<64x512xf32, #tpu.memory_space<vmem>>, vector<8x512xf32>,
    %c7 = arith.constant 7 : index
    %c0_34 = arith.constant 0 : index
    %c0_35 = arith.constant 0 : index
    %47 = vector.load %arg1[%c7, %c0_34, %c0_35] : memref<8x8x16xf32, #tpu.memory_space<vmem>>, vector<1x8x16xf32>
    %48 = vector.shape_cast %47 : vector<1x8x16xf32> to vector<8x16xf32>
    %cst_36 = arith.constant dense<0.000000e+00> : vector<8x512xf32>
    %49 = tpu.matmul %48, %3, %cst_36 {dimension_numbers = #tpu.dot_dimension_numbers<[1], [0], [0], [1], [0, 0, 1, 1], [], []>} : vector<8x16xf32>, vector<16x512xf32>, vector<8x512xf32> -> vector<8x512xf32>
    %50 = vector.broadcast %4 : vector<1x512xf32> to vector<8x512xf32>
    %51 = arith.addf %49, %50 : vector<8x512xf32>
    %c56 = arith.constant 56 : index
    %c0_37 = arith.constant 0 : index
    %52 = vector.load %arg12[%c56, %c0_37] : memref<64x512xf32, #tpu.memory_space<vmem>>, vector<8x512xf32>
    tpu.vector_store %arg12[%c56, %c0_37], %51 {strides = array<i32>} : memref<64x512xf32, #tpu.memory_space<vmem>>, vector<8x512xf32>,
    %c0_38 = arith.constant 0 : index
    %c0_39 = arith.constant 0 : index
    %53 = vector.load %arg4[%c0_38, %c0_39] : memref<128x512xf32, #tpu.memory_space<vmem>>, vector<128x512xf32>
    %cst_40 = arith.constant 0.000000e+00 : f32
    %54 = vector.broadcast %cst_40 : f32 to vector<8x128xf32>
    %cst_41 = arith.constant 0.000000e+00 : f32
    %55 = vector.broadcast %cst_41 : f32 to vector<8x128xf32>
    %c0_42 = arith.constant 0 : index
    %c0_43 = arith.constant 0 : index
    %56 = vector.load %arg12[%c0_42, %c0_43] : memref<64x512xf32, #tpu.memory_space<vmem>>, vector<8x512xf32>
    %cst_44 = arith.constant dense<0.000000e+00> : vector<8x512xf32>
    %57 = tpu.matmul %54, %53, %cst_44 {dimension_numbers = #tpu.dot_dimension_numbers<[1], [0], [0], [1], [0, 0, 1, 1], [], []>} : vector<8x128xf32>, vector<128x512xf32>, vector<8x512xf32> -> vector<8x512xf32>
    %58 = arith.addf %56, %57 : vector<8x512xf32>
    %59 = vector.extract_strided_slice %58 {offsets = [0, 0], sizes = [8, 384], strides = [1, 1]} : vector<8x512xf32> to vector<8x384xf32>
    %60 = arith.negf %59 : vector<8x384xf32>
    %61 = math.exp %60 : vector<8x384xf32>
    %cst_45 = arith.constant 1.000000e+00 : f32
    %62 = vector.broadcast %cst_45 : f32 to vector<8x384xf32>
    %63 = arith.addf %62, %61 : vector<8x384xf32>
    %64 = arith.divf %62, %63 : vector<8x384xf32>
    %65 = vector.extract_strided_slice %64 {offsets = [0, 0], sizes = [8, 128], strides = [1, 1]} : vector<8x384xf32> to vector<8x128xf32>
    %66 = vector.extract_strided_slice %64 {offsets = [0, 128], sizes = [8, 128], strides = [1, 1]} : vector<8x384xf32> to vector<8x128xf32>
    %67 = vector.extract_strided_slice %64 {offsets = [0, 256], sizes = [8, 128], strides = [1, 1]} : vector<8x384xf32> to vector<8x128xf32>
    %68 = vector.extract_strided_slice %58 {offsets = [0, 384], sizes = [8, 128], strides = [1, 1]} : vector<8x512xf32> to vector<8x128xf32>
    %69 = math.tanh %68 : vector<8x128xf32>
    %70 = arith.mulf %66, %55 : vector<8x128xf32>
    %71 = arith.mulf %65, %69 : vector<8x128xf32>
    %72 = arith.addf %70, %71 : vector<8x128xf32>
    %73 = math.tanh %72 : vector<8x128xf32>
    %74 = arith.mulf %67, %73 : vector<8x128xf32>
    %c0_i32 = arith.constant 0 : i32
    %75 = vector.broadcast %c0_i32 : i32 to vector<8x128xi32>
    %76 = arith.cmpi sgt, %2, %75 : vector<8x128xi32>
    %77 = arith.select %76, %72, %55 : vector<8x128xi1>, vector<8x128xf32>
    %78 = arith.select %76, %74, %54 : vector<8x128xi1>, vector<8x128xf32>
    %c0_46 = arith.constant 0 : index
    %c0_47 = arith.constant 0 : index
    %79 = vector.load %arg13[%c0_46, %c0_47] : memref<64x128xf32, #tpu.memory_space<vmem>>, vector<8x128xf32>
    tpu.vector_store %arg13[%c0_46, %c0_47], %78 {strides = array<i32>} : memref<64x128xf32, #tpu.memory_space<vmem>>, vector<8x128xf32>,
    %c8_48 = arith.constant 8 : index
    %c0_49 = arith.constant 0 : index
    %80 = vector.load %arg12[%c8_48, %c0_49] : memref<64x512xf32, #tpu.memory_space<vmem>>, vector<8x512xf32>
    %cst_50 = arith.constant dense<0.000000e+00> : vector<8x512xf32>
    %81 = tpu.matmul %78, %53, %cst_50 {dimension_numbers = #tpu.dot_dimension_numbers<[1], [0], [0], [1], [0, 0, 1, 1], [], []>} : vector<8x128xf32>, vector<128x512xf32>, vector<8x512xf32> -> vector<8x512xf32>
    %82 = arith.addf %80, %81 : vector<8x512xf32>
    %83 = vector.extract_strided_slice %82 {offsets = [0, 0], sizes = [8, 384], strides = [1, 1]} : vector<8x512xf32> to vector<8x384xf32>
    %84 = arith.negf %83 : vector<8x384xf32>
    %85 = math.exp %84 : vector<8x384xf32>
    %cst_51 = arith.constant 1.000000e+00 : f32
    %86 = vector.broadcast %cst_51 : f32 to vector<8x384xf32>
    %87 = arith.addf %86, %85 : vector<8x384xf32>
    %88 = arith.divf %86, %87 : vector<8x384xf32>
    %89 = vector.extract_strided_slice %88 {offsets = [0, 0], sizes = [8, 128], strides = [1, 1]} : vector<8x384xf32> to vector<8x128xf32>
    %90 = vector.extract_strided_slice %88 {offsets = [0, 128], sizes = [8, 128], strides = [1, 1]} : vector<8x384xf32> to vector<8x128xf32>
    %91 = vector.extract_strided_slice %88 {offsets = [0, 256], sizes = [8, 128], strides = [1, 1]} : vector<8x384xf32> to vector<8x128xf32>
    %92 = vector.extract_strided_slice %82 {offsets = [0, 384], sizes = [8, 128], strides = [1, 1]} : vector<8x512xf32> to vector<8x128xf32>
    %93 = math.tanh %92 : vector<8x128xf32>
    %94 = arith.mulf %90, %77 : vector<8x128xf32>
    %95 = arith.mulf %89, %93 : vector<8x128xf32>
    %96 = arith.addf %94, %95 : vector<8x128xf32>
    %97 = math.tanh %96 : vector<8x128xf32>
    %98 = arith.mulf %91, %97 : vector<8x128xf32>
    %c1_i32 = arith.constant 1 : i32
    %99 = vector.broadcast %c1_i32 : i32 to vector<8x128xi32>
    %100 = arith.cmpi sgt, %2, %99 : vector<8x128xi32>
    %101 = arith.select %100, %96, %77 : vector<8x128xi1>, vector<8x128xf32>
    %102 = arith.select %100, %98, %78 : vector<8x128xi1>, vector<8x128xf32>
    %c8_52 = arith.constant 8 : index
    %c0_53 = arith.constant 0 : index
    %103 = vector.load %arg13[%c8_52, %c0_53] : memref<64x128xf32, #tpu.memory_space<vmem>>, vector<8x128xf32>
    tpu.vector_store %arg13[%c8_52, %c0_53], %102 {strides = array<i32>} : memref<64x128xf32, #tpu.memory_space<vmem>>, vector<8x128xf32>,
    %c16_54 = arith.constant 16 : index
    %c0_55 = arith.constant 0 : index
    %104 = vector.load %arg12[%c16_54, %c0_55] : memref<64x512xf32, #tpu.memory_space<vmem>>, vector<8x512xf32>
    %cst_56 = arith.constant dense<0.000000e+00> : vector<8x512xf32>
    %105 = tpu.matmul %102, %53, %cst_56 {dimension_numbers = #tpu.dot_dimension_numbers<[1], [0], [0], [1], [0, 0, 1, 1], [], []>} : vector<8x128xf32>, vector<128x512xf32>, vector<8x512xf32> -> vector<8x512xf32>
    %106 = arith.addf %104, %105 : vector<8x512xf32>
    %107 = vector.extract_strided_slice %106 {offsets = [0, 0], sizes = [8, 384], strides = [1, 1]} : vector<8x512xf32> to vector<8x384xf32>
    %108 = arith.negf %107 : vector<8x384xf32>
    %109 = math.exp %108 : vector<8x384xf32>
    %cst_57 = arith.constant 1.000000e+00 : f32
    %110 = vector.broadcast %cst_57 : f32 to vector<8x384xf32>
    %111 = arith.addf %110, %109 : vector<8x384xf32>
    %112 = arith.divf %110, %111 : vector<8x384xf32>
    %113 = vector.extract_strided_slice %112 {offsets = [0, 0], sizes = [8, 128], strides = [1, 1]} : vector<8x384xf32> to vector<8x128xf32>
    %114 = vector.extract_strided_slice %112 {offsets = [0, 128], sizes = [8, 128], strides = [1, 1]} : vector<8x384xf32> to vector<8x128xf32>
    %115 = vector.extract_strided_slice %112 {offsets = [0, 256], sizes = [8, 128], strides = [1, 1]} : vector<8x384xf32> to vector<8x128xf32>
    %116 = vector.extract_strided_slice %106 {offsets = [0, 384], sizes = [8, 128], strides = [1, 1]} : vector<8x512xf32> to vector<8x128xf32>
    %117 = math.tanh %116 : vector<8x128xf32>
    %118 = arith.mulf %114, %101 : vector<8x128xf32>
    %119 = arith.mulf %113, %117 : vector<8x128xf32>
    %120 = arith.addf %118, %119 : vector<8x128xf32>
    %121 = math.tanh %120 : vector<8x128xf32>
    %122 = arith.mulf %115, %121 : vector<8x128xf32>
    %c2_i32 = arith.constant 2 : i32
    %123 = vector.broadcast %c2_i32 : i32 to vector<8x128xi32>
    %124 = arith.cmpi sgt, %2, %123 : vector<8x128xi32>
    %125 = arith.select %124, %120, %101 : vector<8x128xi1>, vector<8x128xf32>
    %126 = arith.select %124, %122, %102 : vector<8x128xi1>, vector<8x128xf32>
    %c16_58 = arith.constant 16 : index
    %c0_59 = arith.constant 0 : index
    %127 = vector.load %arg13[%c16_58, %c0_59] : memref<64x128xf32, #tpu.memory_space<vmem>>, vector<8x128xf32>
    tpu.vector_store %arg13[%c16_58, %c0_59], %126 {strides = array<i32>} : memref<64x128xf32, #tpu.memory_space<vmem>>, vector<8x128xf32>,
    %c24_60 = arith.constant 24 : index
    %c0_61 = arith.constant 0 : index
    %128 = vector.load %arg12[%c24_60, %c0_61] : memref<64x512xf32, #tpu.memory_space<vmem>>, vector<8x512xf32>
    %cst_62 = arith.constant dense<0.000000e+00> : vector<8x512xf32>
    %129 = tpu.matmul %126, %53, %cst_62 {dimension_numbers = #tpu.dot_dimension_numbers<[1], [0], [0], [1], [0, 0, 1, 1], [], []>} : vector<8x128xf32>, vector<128x512xf32>, vector<8x512xf32> -> vector<8x512xf32>
    %130 = arith.addf %128, %129 : vector<8x512xf32>
    %131 = vector.extract_strided_slice %130 {offsets = [0, 0], sizes = [8, 384], strides = [1, 1]} : vector<8x512xf32> to vector<8x384xf32>
    %132 = arith.negf %131 : vector<8x384xf32>
    %133 = math.exp %132 : vector<8x384xf32>
    %cst_63 = arith.constant 1.000000e+00 : f32
    %134 = vector.broadcast %cst_63 : f32 to vector<8x384xf32>
    %135 = arith.addf %134, %133 : vector<8x384xf32>
    %136 = arith.divf %134, %135 : vector<8x384xf32>
    %137 = vector.extract_strided_slice %136 {offsets = [0, 0], sizes = [8, 128], strides = [1, 1]} : vector<8x384xf32> to vector<8x128xf32>
    %138 = vector.extract_strided_slice %136 {offsets = [0, 128], sizes = [8, 128], strides = [1, 1]} : vector<8x384xf32> to vector<8x128xf32>
    %139 = vector.extract_strided_slice %136 {offsets = [0, 256], sizes = [8, 128], strides = [1, 1]} : vector<8x384xf32> to vector<8x128xf32>
    %140 = vector.extract_strided_slice %130 {offsets = [0, 384], sizes = [8, 128], strides = [1, 1]} : vector<8x512xf32> to vector<8x128xf32>
    %141 = math.tanh %140 : vector<8x128xf32>
    %142 = arith.mulf %138, %125 : vector<8x128xf32>
    %143 = arith.mulf %137, %141 : vector<8x128xf32>
    %144 = arith.addf %142, %143 : vector<8x128xf32>
    %145 = math.tanh %144 : vector<8x128xf32>
    %146 = arith.mulf %139, %145 : vector<8x128xf32>
    %c3_i32 = arith.constant 3 : i32
    %147 = vector.broadcast %c3_i32 : i32 to vector<8x128xi32>
    %148 = arith.cmpi sgt, %2, %147 : vector<8x128xi32>
    %149 = arith.select %148, %144, %125 : vector<8x128xi1>, vector<8x128xf32>
    %150 = arith.select %148, %146, %126 : vector<8x128xi1>, vector<8x128xf32>
    %c24_64 = arith.constant 24 : index
    %c0_65 = arith.constant 0 : index
    %151 = vector.load %arg13[%c24_64, %c0_65] : memref<64x128xf32, #tpu.memory_space<vmem>>, vector<8x128xf32>
    tpu.vector_store %arg13[%c24_64, %c0_65], %150 {strides = array<i32>} : memref<64x128xf32, #tpu.memory_space<vmem>>, vector<8x128xf32>,
    %c32_66 = arith.constant 32 : index
    %c0_67 = arith.constant 0 : index
    %152 = vector.load %arg12[%c32_66, %c0_67] : memref<64x512xf32, #tpu.memory_space<vmem>>, vector<8x512xf32>
    %cst_68 = arith.constant dense<0.000000e+00> : vector<8x512xf32>
    %153 = tpu.matmul %150, %53, %cst_68 {dimension_numbers = #tpu.dot_dimension_numbers<[1], [0], [0], [1], [0, 0, 1, 1], [], []>} : vector<8x128xf32>, vector<128x512xf32>, vector<8x512xf32> -> vector<8x512xf32>
    %154 = arith.addf %152, %153 : vector<8x512xf32>
    %155 = vector.extract_strided_slice %154 {offsets = [0, 0], sizes = [8, 384], strides = [1, 1]} : vector<8x512xf32> to vector<8x384xf32>
    %156 = arith.negf %155 : vector<8x384xf32>
    %157 = math.exp %156 : vector<8x384xf32>
    %cst_69 = arith.constant 1.000000e+00 : f32
    %158 = vector.broadcast %cst_69 : f32 to vector<8x384xf32>
    %159 = arith.addf %158, %157 : vector<8x384xf32>
    %160 = arith.divf %158, %159 : vector<8x384xf32>
    %161 = vector.extract_strided_slice %160 {offsets = [0, 0], sizes = [8, 128], strides = [1, 1]} : vector<8x384xf32> to vector<8x128xf32>
    %162 = vector.extract_strided_slice %160 {offsets = [0, 128], sizes = [8, 128], strides = [1, 1]} : vector<8x384xf32> to vector<8x128xf32>
    %163 = vector.extract_strided_slice %160 {offsets = [0, 256], sizes = [8, 128], strides = [1, 1]} : vector<8x384xf32> to vector<8x128xf32>
    %164 = vector.extract_strided_slice %154 {offsets = [0, 384], sizes = [8, 128], strides = [1, 1]} : vector<8x512xf32> to vector<8x128xf32>
    %165 = math.tanh %164 : vector<8x128xf32>
    %166 = arith.mulf %162, %149 : vector<8x128xf32>
    %167 = arith.mulf %161, %165 : vector<8x128xf32>
    %168 = arith.addf %166, %167 : vector<8x128xf32>
    %169 = math.tanh %168 : vector<8x128xf32>
    %170 = arith.mulf %163, %169 : vector<8x128xf32>
    %c4_i32 = arith.constant 4 : i32
    %171 = vector.broadcast %c4_i32 : i32 to vector<8x128xi32>
    %172 = arith.cmpi sgt, %2, %171 : vector<8x128xi32>
    %173 = arith.select %172, %168, %149 : vector<8x128xi1>, vector<8x128xf32>
    %174 = arith.select %172, %170, %150 : vector<8x128xi1>, vector<8x128xf32>
    %c32_70 = arith.constant 32 : index
    %c0_71 = arith.constant 0 : index
    %175 = vector.load %arg13[%c32_70, %c0_71] : memref<64x128xf32, #tpu.memory_space<vmem>>, vector<8x128xf32>
    tpu.vector_store %arg13[%c32_70, %c0_71], %174 {strides = array<i32>} : memref<64x128xf32, #tpu.memory_space<vmem>>, vector<8x128xf32>,
    %c40_72 = arith.constant 40 : index
    %c0_73 = arith.constant 0 : index
    %176 = vector.load %arg12[%c40_72, %c0_73] : memref<64x512xf32, #tpu.memory_space<vmem>>, vector<8x512xf32>
    %cst_74 = arith.constant dense<0.000000e+00> : vector<8x512xf32>
    %177 = tpu.matmul %174, %53, %cst_74 {dimension_numbers = #tpu.dot_dimension_numbers<[1], [0], [0], [1], [0, 0, 1, 1], [], []>} : vector<8x128xf32>, vector<128x512xf32>, vector<8x512xf32> -> vector<8x512xf32>
    %178 = arith.addf %176, %177 : vector<8x512xf32>
    %179 = vector.extract_strided_slice %178 {offsets = [0, 0], sizes = [8, 384], strides = [1, 1]} : vector<8x512xf32> to vector<8x384xf32>
    %180 = arith.negf %179 : vector<8x384xf32>
    %181 = math.exp %180 : vector<8x384xf32>
    %cst_75 = arith.constant 1.000000e+00 : f32
    %182 = vector.broadcast %cst_75 : f32 to vector<8x384xf32>
    %183 = arith.addf %182, %181 : vector<8x384xf32>
    %184 = arith.divf %182, %183 : vector<8x384xf32>
    %185 = vector.extract_strided_slice %184 {offsets = [0, 0], sizes = [8, 128], strides = [1, 1]} : vector<8x384xf32> to vector<8x128xf32>
    %186 = vector.extract_strided_slice %184 {offsets = [0, 128], sizes = [8, 128], strides = [1, 1]} : vector<8x384xf32> to vector<8x128xf32>
    %187 = vector.extract_strided_slice %184 {offsets = [0, 256], sizes = [8, 128], strides = [1, 1]} : vector<8x384xf32> to vector<8x128xf32>
    %188 = vector.extract_strided_slice %178 {offsets = [0, 384], sizes = [8, 128], strides = [1, 1]} : vector<8x512xf32> to vector<8x128xf32>
    %189 = math.tanh %188 : vector<8x128xf32>
    %190 = arith.mulf %186, %173 : vector<8x128xf32>
    %191 = arith.mulf %185, %189 : vector<8x128xf32>
    %192 = arith.addf %190, %191 : vector<8x128xf32>
    %193 = math.tanh %192 : vector<8x128xf32>
    %194 = arith.mulf %187, %193 : vector<8x128xf32>
    %c5_i32 = arith.constant 5 : i32
    %195 = vector.broadcast %c5_i32 : i32 to vector<8x128xi32>
    %196 = arith.cmpi sgt, %2, %195 : vector<8x128xi32>
    %197 = arith.select %196, %192, %173 : vector<8x128xi1>, vector<8x128xf32>
    %198 = arith.select %196, %194, %174 : vector<8x128xi1>, vector<8x128xf32>
    %c40_76 = arith.constant 40 : index
    %c0_77 = arith.constant 0 : index
    %199 = vector.load %arg13[%c40_76, %c0_77] : memref<64x128xf32, #tpu.memory_space<vmem>>, vector<8x128xf32>
    tpu.vector_store %arg13[%c40_76, %c0_77], %198 {strides = array<i32>} : memref<64x128xf32, #tpu.memory_space<vmem>>, vector<8x128xf32>,
    %c48_78 = arith.constant 48 : index
    %c0_79 = arith.constant 0 : index
    %200 = vector.load %arg12[%c48_78, %c0_79] : memref<64x512xf32, #tpu.memory_space<vmem>>, vector<8x512xf32>
    %cst_80 = arith.constant dense<0.000000e+00> : vector<8x512xf32>
    %201 = tpu.matmul %198, %53, %cst_80 {dimension_numbers = #tpu.dot_dimension_numbers<[1], [0], [0], [1], [0, 0, 1, 1], [], []>} : vector<8x128xf32>, vector<128x512xf32>, vector<8x512xf32> -> vector<8x512xf32>
    %202 = arith.addf %200, %201 : vector<8x512xf32>
    %203 = vector.extract_strided_slice %202 {offsets = [0, 0], sizes = [8, 384], strides = [1, 1]} : vector<8x512xf32> to vector<8x384xf32>
    %204 = arith.negf %203 : vector<8x384xf32>
    %205 = math.exp %204 : vector<8x384xf32>
    %cst_81 = arith.constant 1.000000e+00 : f32
    %206 = vector.broadcast %cst_81 : f32 to vector<8x384xf32>
    %207 = arith.addf %206, %205 : vector<8x384xf32>
    %208 = arith.divf %206, %207 : vector<8x384xf32>
    %209 = vector.extract_strided_slice %208 {offsets = [0, 0], sizes = [8, 128], strides = [1, 1]} : vector<8x384xf32> to vector<8x128xf32>
    %210 = vector.extract_strided_slice %208 {offsets = [0, 128], sizes = [8, 128], strides = [1, 1]} : vector<8x384xf32> to vector<8x128xf32>
    %211 = vector.extract_strided_slice %208 {offsets = [0, 256], sizes = [8, 128], strides = [1, 1]} : vector<8x384xf32> to vector<8x128xf32>
    %212 = vector.extract_strided_slice %202 {offsets = [0, 384], sizes = [8, 128], strides = [1, 1]} : vector<8x512xf32> to vector<8x128xf32>
    %213 = math.tanh %212 : vector<8x128xf32>
    %214 = arith.mulf %210, %197 : vector<8x128xf32>
    %215 = arith.mulf %209, %213 : vector<8x128xf32>
    %216 = arith.addf %214, %215 : vector<8x128xf32>
    %217 = math.tanh %216 : vector<8x128xf32>
    %218 = arith.mulf %211, %217 : vector<8x128xf32>
    %c6_i32 = arith.constant 6 : i32
    %219 = vector.broadcast %c6_i32 : i32 to vector<8x128xi32>
    %220 = arith.cmpi sgt, %2, %219 : vector<8x128xi32>
    %221 = arith.select %220, %216, %197 : vector<8x128xi1>, vector<8x128xf32>
    %222 = arith.select %220, %218, %198 : vector<8x128xi1>, vector<8x128xf32>
    %c48_82 = arith.constant 48 : index
    %c0_83 = arith.constant 0 : index
    %223 = vector.load %arg13[%c48_82, %c0_83] : memref<64x128xf32, #tpu.memory_space<vmem>>, vector<8x128xf32>
    tpu.vector_store %arg13[%c48_82, %c0_83], %222 {strides = array<i32>} : memref<64x128xf32, #tpu.memory_space<vmem>>, vector<8x128xf32>,
    %c56_84 = arith.constant 56 : index
    %c0_85 = arith.constant 0 : index
    %224 = vector.load %arg12[%c56_84, %c0_85] : memref<64x512xf32, #tpu.memory_space<vmem>>, vector<8x512xf32>
    %cst_86 = arith.constant dense<0.000000e+00> : vector<8x512xf32>
    %225 = tpu.matmul %222, %53, %cst_86 {dimension_numbers = #tpu.dot_dimension_numbers<[1], [0], [0], [1], [0, 0, 1, 1], [], []>} : vector<8x128xf32>, vector<128x512xf32>, vector<8x512xf32> -> vector<8x512xf32>
    %226 = arith.addf %224, %225 : vector<8x512xf32>
    %227 = vector.extract_strided_slice %226 {offsets = [0, 0], sizes = [8, 384], strides = [1, 1]} : vector<8x512xf32> to vector<8x384xf32>
    %228 = arith.negf %227 : vector<8x384xf32>
    %229 = math.exp %228 : vector<8x384xf32>
    %cst_87 = arith.constant 1.000000e+00 : f32
    %230 = vector.broadcast %cst_87 : f32 to vector<8x384xf32>
    %231 = arith.addf %230, %229 : vector<8x384xf32>
    %232 = arith.divf %230, %231 : vector<8x384xf32>
    %233 = vector.extract_strided_slice %232 {offsets = [0, 0], sizes = [8, 128], strides = [1, 1]} : vector<8x384xf32> to vector<8x128xf32>
    %234 = vector.extract_strided_slice %232 {offsets = [0, 128], sizes = [8, 128], strides = [1, 1]} : vector<8x384xf32> to vector<8x128xf32>
    %235 = vector.extract_strided_slice %232 {offsets = [0, 256], sizes = [8, 128], strides = [1, 1]} : vector<8x384xf32> to vector<8x128xf32>
    %236 = vector.extract_strided_slice %226 {offsets = [0, 384], sizes = [8, 128], strides = [1, 1]} : vector<8x512xf32> to vector<8x128xf32>
    %237 = math.tanh %236 : vector<8x128xf32>
    %238 = arith.mulf %234, %221 : vector<8x128xf32>
    %239 = arith.mulf %233, %237 : vector<8x128xf32>
    %240 = arith.addf %238, %239 : vector<8x128xf32>
    %241 = math.tanh %240 : vector<8x128xf32>
    %242 = arith.mulf %235, %241 : vector<8x128xf32>
    %c7_i32 = arith.constant 7 : i32
    %243 = vector.broadcast %c7_i32 : i32 to vector<8x128xi32>
    %244 = arith.cmpi sgt, %2, %243 : vector<8x128xi32>
    %245 = arith.select %244, %242, %222 : vector<8x128xi1>, vector<8x128xf32>
    %c56_88 = arith.constant 56 : index
    %c0_89 = arith.constant 0 : index
    %246 = vector.load %arg13[%c56_88, %c0_89] : memref<64x128xf32, #tpu.memory_space<vmem>>, vector<8x128xf32>
    tpu.vector_store %arg13[%c56_88, %c0_89], %245 {strides = array<i32>} : memref<64x128xf32, #tpu.memory_space<vmem>>, vector<8x128xf32>,
    %c0_90 = arith.constant 0 : index
    %c0_91 = arith.constant 0 : index
    %247 = vector.load %arg13[%c0_90, %c0_91] : memref<64x128xf32, #tpu.memory_space<vmem>>, vector<64x128xf32>
    %c0_92 = arith.constant 0 : index
    %c0_93 = arith.constant 0 : index
    %248 = vector.load %arg6[%c0_92, %c0_93] : memref<128x512xf32, #tpu.memory_space<vmem>>, vector<128x512xf32>
    %cst_94 = arith.constant dense<0.000000e+00> : vector<64x512xf32>
    %249 = tpu.matmul %247, %248, %cst_94 {dimension_numbers = #tpu.dot_dimension_numbers<[1], [0], [0], [1], [0, 0, 1, 1], [], []>} : vector<64x128xf32>, vector<128x512xf32>, vector<64x512xf32> -> vector<64x512xf32>
    %c0_95 = arith.constant 0 : index
    %c0_96 = arith.constant 0 : index
    %250 = vector.load %arg8[%c0_95, %c0_96] : memref<1x512xf32, #tpu.memory_space<vmem>>, vector<1x512xf32>
    %251 = vector.broadcast %250 : vector<1x512xf32> to vector<64x512xf32>
    %252 = arith.addf %249, %251 : vector<64x512xf32>
    %c0_97 = arith.constant 0 : index
    %c0_98 = arith.constant 0 : index
    %253 = vector.load %arg12[%c0_97, %c0_98] : memref<64x512xf32, #tpu.memory_space<vmem>>, vector<64x512xf32>
    tpu.vector_store %arg12[%c0_97, %c0_98], %252 {strides = array<i32>} : memref<64x512xf32, #tpu.memory_space<vmem>>, vector<64x512xf32>,
    %c0_99 = arith.constant 0 : index
    %c0_100 = arith.constant 0 : index
    %254 = vector.load %arg7[%c0_99, %c0_100] : memref<128x512xf32, #tpu.memory_space<vmem>>, vector<128x512xf32>
    %cst_101 = arith.constant 0.000000e+00 : f32
    %255 = vector.broadcast %cst_101 : f32 to vector<8x128xf32>
    %cst_102 = arith.constant 0.000000e+00 : f32
    %256 = vector.broadcast %cst_102 : f32 to vector<8x128xf32>
    %c0_103 = arith.constant 0 : index
    %c0_104 = arith.constant 0 : index
    %257 = vector.load %arg12[%c0_103, %c0_104] : memref<64x512xf32, #tpu.memory_space<vmem>>, vector<8x512xf32>
    %cst_105 = arith.constant dense<0.000000e+00> : vector<8x512xf32>
    %258 = tpu.matmul %255, %254, %cst_105 {dimension_numbers = #tpu.dot_dimension_numbers<[1], [0], [0], [1], [0, 0, 1, 1], [], []>} : vector<8x128xf32>, vector<128x512xf32>, vector<8x512xf32> -> vector<8x512xf32>
    %259 = arith.addf %257, %258 : vector<8x512xf32>
    %260 = vector.extract_strided_slice %259 {offsets = [0, 0], sizes = [8, 384], strides = [1, 1]} : vector<8x512xf32> to vector<8x384xf32>
    %261 = arith.negf %260 : vector<8x384xf32>
    %262 = math.exp %261 : vector<8x384xf32>
    %cst_106 = arith.constant 1.000000e+00 : f32
    %263 = vector.broadcast %cst_106 : f32 to vector<8x384xf32>
    %264 = arith.addf %263, %262 : vector<8x384xf32>
    %265 = arith.divf %263, %264 : vector<8x384xf32>
    %266 = vector.extract_strided_slice %265 {offsets = [0, 0], sizes = [8, 128], strides = [1, 1]} : vector<8x384xf32> to vector<8x128xf32>
    %267 = vector.extract_strided_slice %265 {offsets = [0, 128], sizes = [8, 128], strides = [1, 1]} : vector<8x384xf32> to vector<8x128xf32>
    %268 = vector.extract_strided_slice %265 {offsets = [0, 256], sizes = [8, 128], strides = [1, 1]} : vector<8x384xf32> to vector<8x128xf32>
    %269 = vector.extract_strided_slice %259 {offsets = [0, 384], sizes = [8, 128], strides = [1, 1]} : vector<8x512xf32> to vector<8x128xf32>
    %270 = math.tanh %269 : vector<8x128xf32>
    %271 = arith.mulf %267, %256 : vector<8x128xf32>
    %272 = arith.mulf %266, %270 : vector<8x128xf32>
    %273 = arith.addf %271, %272 : vector<8x128xf32>
    %274 = math.tanh %273 : vector<8x128xf32>
    %275 = arith.mulf %268, %274 : vector<8x128xf32>
    %c0_i32_107 = arith.constant 0 : i32
    %276 = vector.broadcast %c0_i32_107 : i32 to vector<8x128xi32>
    %277 = arith.cmpi sgt, %2, %276 : vector<8x128xi32>
    %278 = arith.select %277, %273, %256 : vector<8x128xi1>, vector<8x128xf32>
    %279 = arith.select %277, %275, %255 : vector<8x128xi1>, vector<8x128xf32>
    %c8_108 = arith.constant 8 : index
    %c0_109 = arith.constant 0 : index
    %280 = vector.load %arg12[%c8_108, %c0_109] : memref<64x512xf32, #tpu.memory_space<vmem>>, vector<8x512xf32>
    %cst_110 = arith.constant dense<0.000000e+00> : vector<8x512xf32>
    %281 = tpu.matmul %279, %254, %cst_110 {dimension_numbers = #tpu.dot_dimension_numbers<[1], [0], [0], [1], [0, 0, 1, 1], [], []>} : vector<8x128xf32>, vector<128x512xf32>, vector<8x512xf32> -> vector<8x512xf32>
    %282 = arith.addf %280, %281 : vector<8x512xf32>
    %283 = vector.extract_strided_slice %282 {offsets = [0, 0], sizes = [8, 384], strides = [1, 1]} : vector<8x512xf32> to vector<8x384xf32>
    %284 = arith.negf %283 : vector<8x384xf32>
    %285 = math.exp %284 : vector<8x384xf32>
    %cst_111 = arith.constant 1.000000e+00 : f32
    %286 = vector.broadcast %cst_111 : f32 to vector<8x384xf32>
    %287 = arith.addf %286, %285 : vector<8x384xf32>
    %288 = arith.divf %286, %287 : vector<8x384xf32>
    %289 = vector.extract_strided_slice %288 {offsets = [0, 0], sizes = [8, 128], strides = [1, 1]} : vector<8x384xf32> to vector<8x128xf32>
    %290 = vector.extract_strided_slice %288 {offsets = [0, 128], sizes = [8, 128], strides = [1, 1]} : vector<8x384xf32> to vector<8x128xf32>
    %291 = vector.extract_strided_slice %288 {offsets = [0, 256], sizes = [8, 128], strides = [1, 1]} : vector<8x384xf32> to vector<8x128xf32>
    %292 = vector.extract_strided_slice %282 {offsets = [0, 384], sizes = [8, 128], strides = [1, 1]} : vector<8x512xf32> to vector<8x128xf32>
    %293 = math.tanh %292 : vector<8x128xf32>
    %294 = arith.mulf %290, %278 : vector<8x128xf32>
    %295 = arith.mulf %289, %293 : vector<8x128xf32>
    %296 = arith.addf %294, %295 : vector<8x128xf32>
    %297 = math.tanh %296 : vector<8x128xf32>
    %298 = arith.mulf %291, %297 : vector<8x128xf32>
    %c1_i32_112 = arith.constant 1 : i32
    %299 = vector.broadcast %c1_i32_112 : i32 to vector<8x128xi32>
    %300 = arith.cmpi sgt, %2, %299 : vector<8x128xi32>
    %301 = arith.select %300, %296, %278 : vector<8x128xi1>, vector<8x128xf32>
    %302 = arith.select %300, %298, %279 : vector<8x128xi1>, vector<8x128xf32>
    %c16_113 = arith.constant 16 : index
    %c0_114 = arith.constant 0 : index
    %303 = vector.load %arg12[%c16_113, %c0_114] : memref<64x512xf32, #tpu.memory_space<vmem>>, vector<8x512xf32>
    %cst_115 = arith.constant dense<0.000000e+00> : vector<8x512xf32>
    %304 = tpu.matmul %302, %254, %cst_115 {dimension_numbers = #tpu.dot_dimension_numbers<[1], [0], [0], [1], [0, 0, 1, 1], [], []>} : vector<8x128xf32>, vector<128x512xf32>, vector<8x512xf32> -> vector<8x512xf32>
    %305 = arith.addf %303, %304 : vector<8x512xf32>
    %306 = vector.extract_strided_slice %305 {offsets = [0, 0], sizes = [8, 384], strides = [1, 1]} : vector<8x512xf32> to vector<8x384xf32>
    %307 = arith.negf %306 : vector<8x384xf32>
    %308 = math.exp %307 : vector<8x384xf32>
    %cst_116 = arith.constant 1.000000e+00 : f32
    %309 = vector.broadcast %cst_116 : f32 to vector<8x384xf32>
    %310 = arith.addf %309, %308 : vector<8x384xf32>
    %311 = arith.divf %309, %310 : vector<8x384xf32>
    %312 = vector.extract_strided_slice %311 {offsets = [0, 0], sizes = [8, 128], strides = [1, 1]} : vector<8x384xf32> to vector<8x128xf32>
    %313 = vector.extract_strided_slice %311 {offsets = [0, 128], sizes = [8, 128], strides = [1, 1]} : vector<8x384xf32> to vector<8x128xf32>
    %314 = vector.extract_strided_slice %311 {offsets = [0, 256], sizes = [8, 128], strides = [1, 1]} : vector<8x384xf32> to vector<8x128xf32>
    %315 = vector.extract_strided_slice %305 {offsets = [0, 384], sizes = [8, 128], strides = [1, 1]} : vector<8x512xf32> to vector<8x128xf32>
    %316 = math.tanh %315 : vector<8x128xf32>
    %317 = arith.mulf %313, %301 : vector<8x128xf32>
    %318 = arith.mulf %312, %316 : vector<8x128xf32>
    %319 = arith.addf %317, %318 : vector<8x128xf32>
    %320 = math.tanh %319 : vector<8x128xf32>
    %321 = arith.mulf %314, %320 : vector<8x128xf32>
    %c2_i32_117 = arith.constant 2 : i32
    %322 = vector.broadcast %c2_i32_117 : i32 to vector<8x128xi32>
    %323 = arith.cmpi sgt, %2, %322 : vector<8x128xi32>
    %324 = arith.select %323, %319, %301 : vector<8x128xi1>, vector<8x128xf32>
    %325 = arith.select %323, %321, %302 : vector<8x128xi1>, vector<8x128xf32>
    %c24_118 = arith.constant 24 : index
    %c0_119 = arith.constant 0 : index
    %326 = vector.load %arg12[%c24_118, %c0_119] : memref<64x512xf32, #tpu.memory_space<vmem>>, vector<8x512xf32>
    %cst_120 = arith.constant dense<0.000000e+00> : vector<8x512xf32>
    %327 = tpu.matmul %325, %254, %cst_120 {dimension_numbers = #tpu.dot_dimension_numbers<[1], [0], [0], [1], [0, 0, 1, 1], [], []>} : vector<8x128xf32>, vector<128x512xf32>, vector<8x512xf32> -> vector<8x512xf32>
    %328 = arith.addf %326, %327 : vector<8x512xf32>
    %329 = vector.extract_strided_slice %328 {offsets = [0, 0], sizes = [8, 384], strides = [1, 1]} : vector<8x512xf32> to vector<8x384xf32>
    %330 = arith.negf %329 : vector<8x384xf32>
    %331 = math.exp %330 : vector<8x384xf32>
    %cst_121 = arith.constant 1.000000e+00 : f32
    %332 = vector.broadcast %cst_121 : f32 to vector<8x384xf32>
    %333 = arith.addf %332, %331 : vector<8x384xf32>
    %334 = arith.divf %332, %333 : vector<8x384xf32>
    %335 = vector.extract_strided_slice %334 {offsets = [0, 0], sizes = [8, 128], strides = [1, 1]} : vector<8x384xf32> to vector<8x128xf32>
    %336 = vector.extract_strided_slice %334 {offsets = [0, 128], sizes = [8, 128], strides = [1, 1]} : vector<8x384xf32> to vector<8x128xf32>
    %337 = vector.extract_strided_slice %334 {offsets = [0, 256], sizes = [8, 128], strides = [1, 1]} : vector<8x384xf32> to vector<8x128xf32>
    %338 = vector.extract_strided_slice %328 {offsets = [0, 384], sizes = [8, 128], strides = [1, 1]} : vector<8x512xf32> to vector<8x128xf32>
    %339 = math.tanh %338 : vector<8x128xf32>
    %340 = arith.mulf %336, %324 : vector<8x128xf32>
    %341 = arith.mulf %335, %339 : vector<8x128xf32>
    %342 = arith.addf %340, %341 : vector<8x128xf32>
    %343 = math.tanh %342 : vector<8x128xf32>
    %344 = arith.mulf %337, %343 : vector<8x128xf32>
    %c3_i32_122 = arith.constant 3 : i32
    %345 = vector.broadcast %c3_i32_122 : i32 to vector<8x128xi32>
    %346 = arith.cmpi sgt, %2, %345 : vector<8x128xi32>
    %347 = arith.select %346, %342, %324 : vector<8x128xi1>, vector<8x128xf32>
    %348 = arith.select %346, %344, %325 : vector<8x128xi1>, vector<8x128xf32>
    %c32_123 = arith.constant 32 : index
    %c0_124 = arith.constant 0 : index
    %349 = vector.load %arg12[%c32_123, %c0_124] : memref<64x512xf32, #tpu.memory_space<vmem>>, vector<8x512xf32>
    %cst_125 = arith.constant dense<0.000000e+00> : vector<8x512xf32>
    %350 = tpu.matmul %348, %254, %cst_125 {dimension_numbers = #tpu.dot_dimension_numbers<[1], [0], [0], [1], [0, 0, 1, 1], [], []>} : vector<8x128xf32>, vector<128x512xf32>, vector<8x512xf32> -> vector<8x512xf32>
    %351 = arith.addf %349, %350 : vector<8x512xf32>
    %352 = vector.extract_strided_slice %351 {offsets = [0, 0], sizes = [8, 384], strides = [1, 1]} : vector<8x512xf32> to vector<8x384xf32>
    %353 = arith.negf %352 : vector<8x384xf32>
    %354 = math.exp %353 : vector<8x384xf32>
    %cst_126 = arith.constant 1.000000e+00 : f32
    %355 = vector.broadcast %cst_126 : f32 to vector<8x384xf32>
    %356 = arith.addf %355, %354 : vector<8x384xf32>
    %357 = arith.divf %355, %356 : vector<8x384xf32>
    %358 = vector.extract_strided_slice %357 {offsets = [0, 0], sizes = [8, 128], strides = [1, 1]} : vector<8x384xf32> to vector<8x128xf32>
    %359 = vector.extract_strided_slice %357 {offsets = [0, 128], sizes = [8, 128], strides = [1, 1]} : vector<8x384xf32> to vector<8x128xf32>
    %360 = vector.extract_strided_slice %357 {offsets = [0, 256], sizes = [8, 128], strides = [1, 1]} : vector<8x384xf32> to vector<8x128xf32>
    %361 = vector.extract_strided_slice %351 {offsets = [0, 384], sizes = [8, 128], strides = [1, 1]} : vector<8x512xf32> to vector<8x128xf32>
    %362 = math.tanh %361 : vector<8x128xf32>
    %363 = arith.mulf %359, %347 : vector<8x128xf32>
    %364 = arith.mulf %358, %362 : vector<8x128xf32>
    %365 = arith.addf %363, %364 : vector<8x128xf32>
    %366 = math.tanh %365 : vector<8x128xf32>
    %367 = arith.mulf %360, %366 : vector<8x128xf32>
    %c4_i32_127 = arith.constant 4 : i32
    %368 = vector.broadcast %c4_i32_127 : i32 to vector<8x128xi32>
    %369 = arith.cmpi sgt, %2, %368 : vector<8x128xi32>
    %370 = arith.select %369, %365, %347 : vector<8x128xi1>, vector<8x128xf32>
    %371 = arith.select %369, %367, %348 : vector<8x128xi1>, vector<8x128xf32>
    %c40_128 = arith.constant 40 : index
    %c0_129 = arith.constant 0 : index
    %372 = vector.load %arg12[%c40_128, %c0_129] : memref<64x512xf32, #tpu.memory_space<vmem>>, vector<8x512xf32>
    %cst_130 = arith.constant dense<0.000000e+00> : vector<8x512xf32>
    %373 = tpu.matmul %371, %254, %cst_130 {dimension_numbers = #tpu.dot_dimension_numbers<[1], [0], [0], [1], [0, 0, 1, 1], [], []>} : vector<8x128xf32>, vector<128x512xf32>, vector<8x512xf32> -> vector<8x512xf32>
    %374 = arith.addf %372, %373 : vector<8x512xf32>
    %375 = vector.extract_strided_slice %374 {offsets = [0, 0], sizes = [8, 384], strides = [1, 1]} : vector<8x512xf32> to vector<8x384xf32>
    %376 = arith.negf %375 : vector<8x384xf32>
    %377 = math.exp %376 : vector<8x384xf32>
    %cst_131 = arith.constant 1.000000e+00 : f32
    %378 = vector.broadcast %cst_131 : f32 to vector<8x384xf32>
    %379 = arith.addf %378, %377 : vector<8x384xf32>
    %380 = arith.divf %378, %379 : vector<8x384xf32>
    %381 = vector.extract_strided_slice %380 {offsets = [0, 0], sizes = [8, 128], strides = [1, 1]} : vector<8x384xf32> to vector<8x128xf32>
    %382 = vector.extract_strided_slice %380 {offsets = [0, 128], sizes = [8, 128], strides = [1, 1]} : vector<8x384xf32> to vector<8x128xf32>
    %383 = vector.extract_strided_slice %380 {offsets = [0, 256], sizes = [8, 128], strides = [1, 1]} : vector<8x384xf32> to vector<8x128xf32>
    %384 = vector.extract_strided_slice %374 {offsets = [0, 384], sizes = [8, 128], strides = [1, 1]} : vector<8x512xf32> to vector<8x128xf32>
    %385 = math.tanh %384 : vector<8x128xf32>
    %386 = arith.mulf %382, %370 : vector<8x128xf32>
    %387 = arith.mulf %381, %385 : vector<8x128xf32>
    %388 = arith.addf %386, %387 : vector<8x128xf32>
    %389 = math.tanh %388 : vector<8x128xf32>
    %390 = arith.mulf %383, %389 : vector<8x128xf32>
    %c5_i32_132 = arith.constant 5 : i32
    %391 = vector.broadcast %c5_i32_132 : i32 to vector<8x128xi32>
    %392 = arith.cmpi sgt, %2, %391 : vector<8x128xi32>
    %393 = arith.select %392, %388, %370 : vector<8x128xi1>, vector<8x128xf32>
    %394 = arith.select %392, %390, %371 : vector<8x128xi1>, vector<8x128xf32>
    %c48_133 = arith.constant 48 : index
    %c0_134 = arith.constant 0 : index
    %395 = vector.load %arg12[%c48_133, %c0_134] : memref<64x512xf32, #tpu.memory_space<vmem>>, vector<8x512xf32>
    %cst_135 = arith.constant dense<0.000000e+00> : vector<8x512xf32>
    %396 = tpu.matmul %394, %254, %cst_135 {dimension_numbers = #tpu.dot_dimension_numbers<[1], [0], [0], [1], [0, 0, 1, 1], [], []>} : vector<8x128xf32>, vector<128x512xf32>, vector<8x512xf32> -> vector<8x512xf32>
    %397 = arith.addf %395, %396 : vector<8x512xf32>
    %398 = vector.extract_strided_slice %397 {offsets = [0, 0], sizes = [8, 384], strides = [1, 1]} : vector<8x512xf32> to vector<8x384xf32>
    %399 = arith.negf %398 : vector<8x384xf32>
    %400 = math.exp %399 : vector<8x384xf32>
    %cst_136 = arith.constant 1.000000e+00 : f32
    %401 = vector.broadcast %cst_136 : f32 to vector<8x384xf32>
    %402 = arith.addf %401, %400 : vector<8x384xf32>
    %403 = arith.divf %401, %402 : vector<8x384xf32>
    %404 = vector.extract_strided_slice %403 {offsets = [0, 0], sizes = [8, 128], strides = [1, 1]} : vector<8x384xf32> to vector<8x128xf32>
    %405 = vector.extract_strided_slice %403 {offsets = [0, 128], sizes = [8, 128], strides = [1, 1]} : vector<8x384xf32> to vector<8x128xf32>
    %406 = vector.extract_strided_slice %403 {offsets = [0, 256], sizes = [8, 128], strides = [1, 1]} : vector<8x384xf32> to vector<8x128xf32>
    %407 = vector.extract_strided_slice %397 {offsets = [0, 384], sizes = [8, 128], strides = [1, 1]} : vector<8x512xf32> to vector<8x128xf32>
    %408 = math.tanh %407 : vector<8x128xf32>
    %409 = arith.mulf %405, %393 : vector<8x128xf32>
    %410 = arith.mulf %404, %408 : vector<8x128xf32>
    %411 = arith.addf %409, %410 : vector<8x128xf32>
    %412 = math.tanh %411 : vector<8x128xf32>
    %413 = arith.mulf %406, %412 : vector<8x128xf32>
    %c6_i32_137 = arith.constant 6 : i32
    %414 = vector.broadcast %c6_i32_137 : i32 to vector<8x128xi32>
    %415 = arith.cmpi sgt, %2, %414 : vector<8x128xi32>
    %416 = arith.select %415, %411, %393 : vector<8x128xi1>, vector<8x128xf32>
    %417 = arith.select %415, %413, %394 : vector<8x128xi1>, vector<8x128xf32>
    %c56_138 = arith.constant 56 : index
    %c0_139 = arith.constant 0 : index
    %418 = vector.load %arg12[%c56_138, %c0_139] : memref<64x512xf32, #tpu.memory_space<vmem>>, vector<8x512xf32>
    %cst_140 = arith.constant dense<0.000000e+00> : vector<8x512xf32>
    %419 = tpu.matmul %417, %254, %cst_140 {dimension_numbers = #tpu.dot_dimension_numbers<[1], [0], [0], [1], [0, 0, 1, 1], [], []>} : vector<8x128xf32>, vector<128x512xf32>, vector<8x512xf32> -> vector<8x512xf32>
    %420 = arith.addf %418, %419 : vector<8x512xf32>
    %421 = vector.extract_strided_slice %420 {offsets = [0, 0], sizes = [8, 384], strides = [1, 1]} : vector<8x512xf32> to vector<8x384xf32>
    %422 = arith.negf %421 : vector<8x384xf32>
    %423 = math.exp %422 : vector<8x384xf32>
    %cst_141 = arith.constant 1.000000e+00 : f32
    %424 = vector.broadcast %cst_141 : f32 to vector<8x384xf32>
    %425 = arith.addf %424, %423 : vector<8x384xf32>
    %426 = arith.divf %424, %425 : vector<8x384xf32>
    %427 = vector.extract_strided_slice %426 {offsets = [0, 0], sizes = [8, 128], strides = [1, 1]} : vector<8x384xf32> to vector<8x128xf32>
    %428 = vector.extract_strided_slice %426 {offsets = [0, 128], sizes = [8, 128], strides = [1, 1]} : vector<8x384xf32> to vector<8x128xf32>
    %429 = vector.extract_strided_slice %426 {offsets = [0, 256], sizes = [8, 128], strides = [1, 1]} : vector<8x384xf32> to vector<8x128xf32>
    %430 = vector.extract_strided_slice %420 {offsets = [0, 384], sizes = [8, 128], strides = [1, 1]} : vector<8x512xf32> to vector<8x128xf32>
    %431 = math.tanh %430 : vector<8x128xf32>
    %432 = arith.mulf %428, %416 : vector<8x128xf32>
    %433 = arith.mulf %427, %431 : vector<8x128xf32>
    %434 = arith.addf %432, %433 : vector<8x128xf32>
    %435 = math.tanh %434 : vector<8x128xf32>
    %436 = arith.mulf %429, %435 : vector<8x128xf32>
    %c7_i32_142 = arith.constant 7 : i32
    %437 = vector.broadcast %c7_i32_142 : i32 to vector<8x128xi32>
    %438 = arith.cmpi sgt, %2, %437 : vector<8x128xi32>
    %439 = arith.select %438, %436, %417 : vector<8x128xi1>, vector<8x128xf32>
    %c0_143 = arith.constant 0 : index
    %c0_144 = arith.constant 0 : index
    %440 = vector.load %arg9[%c0_143, %c0_144] : memref<128x128xf32, #tpu.memory_space<vmem>>, vector<128x128xf32>
    %cst_145 = arith.constant dense<0.000000e+00> : vector<8x128xf32>
    %441 = tpu.matmul %439, %440, %cst_145 {dimension_numbers = #tpu.dot_dimension_numbers<[1], [0], [0], [1], [0, 0, 1, 1], [], []>} : vector<8x128xf32>, vector<128x128xf32>, vector<8x128xf32> -> vector<8x128xf32>
    %c0_146 = arith.constant 0 : index
    %c0_147 = arith.constant 0 : index
    %442 = vector.load %arg10[%c0_146, %c0_147] : memref<1x128xf32, #tpu.memory_space<vmem>>, vector<1x128xf32>
    %443 = vector.broadcast %442 : vector<1x128xf32> to vector<8x128xf32>
    %444 = arith.addf %441, %443 : vector<8x128xf32>
    %cst_148 = arith.constant dense<0xFF800000> : vector<8xf32>
    %445 = vector.multi_reduction <maximumf>, %444, %cst_148 [1] : vector<8x128xf32> to vector<8xf32>
    %446 = vector.shape_cast %445 : vector<8xf32> to vector<8x1xf32>
    %447 = vector.broadcast %446 : vector<8x1xf32> to vector<8x128xf32>
    %448 = arith.subf %444, %447 : vector<8x128xf32>
    %449 = math.exp %448 : vector<8x128xf32>
    %cst_149 = arith.constant dense<0.000000e+00> : vector<8xf32>
    %450 = vector.multi_reduction <add>, %449, %cst_149 [1] : vector<8x128xf32> to vector<8xf32>
    %451 = vector.shape_cast %450 : vector<8xf32> to vector<8x1xf32>
    %452 = math.log %451 : vector<8x1xf32>
    %453 = vector.broadcast %452 : vector<8x1xf32> to vector<8x128xf32>
    %454 = arith.subf %448, %453 : vector<8x128xf32>
    %c0_150 = arith.constant 0 : index
    %c0_151 = arith.constant 0 : index
    %455 = vector.load %arg11[%c0_150, %c0_151] : memref<8x128xf32, #tpu.memory_space<vmem>>, vector<8x128xf32>
    tpu.vector_store %arg11[%c0_150, %c0_151], %454 {strides = array<i32>} : memref<8x128xf32, #tpu.memory_space<vmem>>, vector<8x128xf32>,
    return
  }
  func.func @transform_0(%arg0: i32) -> (i32, i32, i32) {
    %c0_i32 = arith.constant 0 : i32
    %c0_i32_0 = arith.constant 0 : i32
    %c0_i32_1 = arith.constant 0 : i32
    return %c0_i32, %arg0, %c0_i32_0 : i32, i32, i32
  }
  func.func @transform_1(%arg0: i32) -> (i32, i32) {
    %c0_i32 = arith.constant 0 : i32
    %c0_i32_0 = arith.constant 0 : i32
    return %arg0, %c0_i32 : i32, i32
  }
  func.func @transform_2(%arg0: i32) -> (i32, i32) {
    %c0_i32 = arith.constant 0 : i32
    %c0_i32_0 = arith.constant 0 : i32
    %c0_i32_1 = arith.constant 0 : i32
    return %c0_i32, %c0_i32_0 : i32, i32
  }
  func.func @transform_3(%arg0: i32) -> (i32, i32) {
    %c0_i32 = arith.constant 0 : i32
    %c0_i32_0 = arith.constant 0 : i32
    %c0_i32_1 = arith.constant 0 : i32
    return %c0_i32, %c0_i32_0 : i32, i32
  }
  func.func @transform_4(%arg0: i32) -> (i32, i32) {
    %c0_i32 = arith.constant 0 : i32
    %c0_i32_0 = arith.constant 0 : i32
    %c0_i32_1 = arith.constant 0 : i32
    return %c0_i32, %c0_i32_0 : i32, i32
  }
  func.func @transform_5(%arg0: i32) -> (i32, i32) {
    %c0_i32 = arith.constant 0 : i32
    %c0_i32_0 = arith.constant 0 : i32
    %c0_i32_1 = arith.constant 0 : i32
    return %c0_i32, %c0_i32_0 : i32, i32
  }
  func.func @transform_6(%arg0: i32) -> (i32, i32) {
    %c0_i32 = arith.constant 0 : i32
    %c0_i32_0 = arith.constant 0 : i32
    %c0_i32_1 = arith.constant 0 : i32
    return %c0_i32, %c0_i32_0 : i32, i32
  }
  func.func @transform_7(%arg0: i32) -> (i32, i32) {
    %c0_i32 = arith.constant 0 : i32
    %c0_i32_0 = arith.constant 0 : i32
    %c0_i32_1 = arith.constant 0 : i32
    return %c0_i32, %c0_i32_0 : i32, i32
  }
  func.func @transform_8(%arg0: i32) -> (i32, i32) {
    %c0_i32 = arith.constant 0 : i32
    %c0_i32_0 = arith.constant 0 : i32
    %c0_i32_1 = arith.constant 0 : i32
    return %c0_i32, %c0_i32_0 : i32, i32
  }
  func.func @transform_9(%arg0: i32) -> (i32, i32) {
    %c0_i32 = arith.constant 0 : i32
    %c0_i32_0 = arith.constant 0 : i32
    %c0_i32_1 = arith.constant 0 : i32
    return %c0_i32, %c0_i32_0 : i32, i32
  }
  func.func @transform_10(%arg0: i32) -> (i32, i32) {
    %c0_i32 = arith.constant 0 : i32
    %c0_i32_0 = arith.constant 0 : i32
    return %arg0, %c0_i32 : i32, i32
  }
}

</mosaic_0001>

<llo_original>
// kernel: tpu_custom_call.1
$region0: #{tpu_custom_call.1}
  #allocation0 [shape = 'u32[]', space=smem, size = 0x4, offset = 0x4, fixed_abs, tag = 'smem constant byte address 0x4 - core index']
  #allocation1 [shape = 'u32[72,128]{1,0:T(1,128)}', space=vmem, size = 0x9000, scoped, tag = 'internal scratch']
  #allocation2 [shape = 'f32[64,512]{1,0:T(8,128)}', space=vmem, size = 0x20000, scoped, tag = 'scratch operand']
  #allocation3 [shape = 'f32[64,128]{1,0:T(8,128)}', space=vmem, size = 0x8000, scoped, tag = 'scratch operand']
  %s0 = inlined_call_operand.hbm [shape: f32[8,8,16], index: 0, kind: input, shape index: {}]
  %s1 = inlined_call_operand.vmem [shape: s32[8,1], index: 1, kind: input, shape index: {}]
  %s2 = inlined_call_operand.hbm [shape: f32[16,512], index: 2, kind: input, shape index: {}]
  %s3 = inlined_call_operand.hbm [shape: f32[128,512], index: 3, kind: input, shape index: {}]
  %s4 = inlined_call_operand.vmem [shape: f32[1,512], index: 4, kind: input, shape index: {}]
  %s5 = inlined_call_operand.hbm [shape: f32[128,512], index: 5, kind: input, shape index: {}]
  %s6 = inlined_call_operand.hbm [shape: f32[128,512], index: 6, kind: input, shape index: {}]
  %s7 = inlined_call_operand.vmem [shape: f32[1,512], index: 7, kind: input, shape index: {}]
  %s8 = inlined_call_operand.hbm [shape: f32[128,128], index: 8, kind: input, shape index: {}]
  %s9 = inlined_call_operand.vmem [shape: f32[1,128], index: 9, kind: input, shape index: {}]
  %s10 = inlined_call_operand.hbm [shape: f32[8,128], index: 10, kind: output, shape index: {}]
  %s11 = sld [smem:[#allocation0]]
  $region74: #{tpu_custom_call.1} parent=0
    _
  %s13 = ssub.s32 1, %s11
  %s14 = scalar_select 0, %s13, %s11
  $region1: #{tpu_custom_call.1} parent=0
    #allocation4 [shape = 'u8[32768]{0}', space=vmem, size = 0x8000, scoped, tag = 'input window, operand 0, single buffered']
    #allocation5 [shape = 's32[1]{0}', space=sflag, size = 0x4, scoped, tag = 'scoped memory for tpu_custom_call.1']
    #allocation6 [shape = 's32[1]{0}', space=sflag, size = 0x4, scoped, tag = 'scoped memory for tpu_custom_call.1']
    #allocation7 [shape = 'u8[32768]{0}', space=vmem, size = 0x8000, scoped, tag = 'input window, operand 2, single buffered']
    #allocation8 [shape = 's32[1]{0}', space=sflag, size = 0x4, scoped, tag = 'scoped memory for tpu_custom_call.1']
    #allocation9 [shape = 'u8[262144]{0}', space=vmem, size = 0x40000, scoped, tag = 'input window, operand 3, single buffered']
    #allocation10 [shape = 'u8[262144]{0}', space=vmem, size = 0x40000, scoped, tag = 'input window, operand 5, single buffered']
    #allocation11 [shape = 's32[1]{0}', space=sflag, size = 0x4, scoped, tag = 'scoped memory for tpu_custom_call.1']
    #allocation12 [shape = 'u8[262144]{0}', space=vmem, size = 0x40000, scoped, tag = 'input window, operand 6, single buffered']
    #allocation13 [shape = 'u8[65536]{0}', space=vmem, size = 0x10000, scoped, tag = 'input window, operand 8, single buffered']
    #allocation14 [shape = 's32[1]{0}', space=sflag, size = 0x4, scoped, tag = 'scoped memory for tpu_custom_call.1']
    #allocation15 [shape = 'u8[4096]{0}', space=vmem, size = 0x1000, scoped, tag = 'output window, operand 0, single buffered']
    %15 = vsyncpa [#allocation5], 0
    %16 = vsyncpa [#allocation8], 0
    %17 = vsyncpa [#allocation11], 0
    %18 = vsyncpa [#allocation14], 0
    %19 = vsyncpa [#allocation6], 0
    // Predicated region
    $region2: #{tpu_custom_call.1} parent=1 // pred_check
      _
    $region3: #{tpu_custom_call.1} parent=1 // pred_check_branch
      %21 = sbr.rel (0) target = $region5
    $region4: #{tpu_custom_call.1} parent=1 // pred_region
      %23 = vsyncadd [#allocation5], 0
      %s24 = sshll.u32 %s0, 4
      %s25 = int_to_ptr.hbm [resolvable:$true] %s24
      %s26 = sshll.u32 [#allocation4], 4
      %s27 = int_to_ptr.vmem [resolvable:$true] %s26
      %32 = dma.hbm_to_vmem [thread:$0]  %s25, 1024, %s27, [#allocation5], 128, 128, 8
    $region5: #{tpu_custom_call.1} parent=1 // pred_fallthru
      _
    // Predicated region
    $region6: #{tpu_custom_call.1} parent=1 // pred_check
      _
    $region7: #{tpu_custom_call.1} parent=1 // pred_check_branch
      %34 = sbr.rel (0) target = $region9
    $region8: #{tpu_custom_call.1} parent=1 // pred_region
      _
    $region9: #{tpu_custom_call.1} parent=1 // pred_fallthru
      _
    // Predicated region
    $region10: #{tpu_custom_call.1} parent=1 // pred_check
      _
    $region11: #{tpu_custom_call.1} parent=1 // pred_check_branch
      %36 = sbr.rel (0) target = $region13
    $region12: #{tpu_custom_call.1} parent=1 // pred_region
      %38 = vsyncadd [#allocation8], 0
      %s39 = sshll.u32 %s2, 4
      %s40 = int_to_ptr.hbm [resolvable:$true] %s39
      %s41 = sshll.u32 [#allocation7], 4
      %s42 = int_to_ptr.vmem [resolvable:$true] %s41
      %47 = dma.hbm_to_vmem [thread:$0]  %s40, 1024, %s42, [#allocation8], 512, 512, 32
    $region13: #{tpu_custom_call.1} parent=1 // pred_fallthru
      _
    // Predicated region
    $region14: #{tpu_custom_call.1} parent=1 // pred_check
      _
    $region15: #{tpu_custom_call.1} parent=1 // pred_check_branch
      %49 = sbr.rel (0) target = $region17
    $region16: #{tpu_custom_call.1} parent=1 // pred_region
      %51 = vsyncadd [#allocation8], 0
      %s52 = sshll.u32 %s3, 4
      %s53 = int_to_ptr.hbm [resolvable:$true] %s52
      %s54 = sshll.u32 [#allocation9], 4
      %s55 = int_to_ptr.vmem [resolvable:$true] %s54
      %60 = dma.hbm_to_vmem [thread:$0]  %s53, 8192, %s55, [#allocation8], 512, 512, 32
    $region17: #{tpu_custom_call.1} parent=1 // pred_fallthru
      _
    // Predicated region
    $region18: #{tpu_custom_call.1} parent=1 // pred_check
      _
    $region19: #{tpu_custom_call.1} parent=1 // pred_check_branch
      %62 = sbr.rel (0) target = $region21
    $region20: #{tpu_custom_call.1} parent=1 // pred_region
      _
    $region21: #{tpu_custom_call.1} parent=1 // pred_fallthru
      _
    // Predicated region
    $region22: #{tpu_custom_call.1} parent=1 // pred_check
      _
    $region23: #{tpu_custom_call.1} parent=1 // pred_check_branch
      %64 = sbr.rel (0) target = $region25
    $region24: #{tpu_custom_call.1} parent=1 // pred_region
      %66 = vsyncadd [#allocation11], 0
      %s67 = sshll.u32 %s5, 4
      %s68 = int_to_ptr.hbm [resolvable:$true] %s67
      %s69 = sshll.u32 [#allocation10], 4
      %s70 = int_to_ptr.vmem [resolvable:$true] %s69
      %75 = dma.hbm_to_vmem [thread:$0]  %s68, 8192, %s70, [#allocation11], 512, 512, 32
    $region25: #{tpu_custom_call.1} parent=1 // pred_fallthru
      _
    // Predicated region
    $region26: #{tpu_custom_call.1} parent=1 // pred_check
      _
    $region27: #{tpu_custom_call.1} parent=1 // pred_check_branch
      %77 = sbr.rel (0) target = $region29
    $region28: #{tpu_custom_call.1} parent=1 // pred_region
      %79 = vsyncadd [#allocation11], 0
      %s80 = sshll.u32 %s6, 4
      %s81 = int_to_ptr.hbm [resolvable:$true] %s80
      %s82 = sshll.u32 [#allocation12], 4
      %s83 = int_to_ptr.vmem [resolvable:$true] %s82
      %88 = dma.hbm_to_vmem [thread:$0]  %s81, 8192, %s83, [#allocation11], 512, 512, 32
    $region29: #{tpu_custom_call.1} parent=1 // pred_fallthru
      _
    // Predicated region
    $region30: #{tpu_custom_call.1} parent=1 // pred_check
      _
    $region31: #{tpu_custom_call.1} parent=1 // pred_check_branch
      %90 = sbr.rel (0) target = $region33
    $region32: #{tpu_custom_call.1} parent=1 // pred_region
      _
    $region33: #{tpu_custom_call.1} parent=1 // pred_fallthru
      _
    // Predicated region
    $region34: #{tpu_custom_call.1} parent=1 // pred_check
      _
    $region35: #{tpu_custom_call.1} parent=1 // pred_check_branch
      %92 = sbr.rel (0) target = $region37
    $region36: #{tpu_custom_call.1} parent=1 // pred_region
      %94 = vsyncadd [#allocation14], 0
      %s95 = sshll.u32 %s8, 4
      %s96 = int_to_ptr.hbm [resolvable:$true] %s95
      %s97 = sshll.u32 [#allocation13], 4
      %s98 = int_to_ptr.vmem [resolvable:$true] %s97
      %103 = dma.hbm_to_vmem [thread:$0]  %s96, 2048, %s98, [#allocation14], 128, 128, 8
    $region37: #{tpu_custom_call.1} parent=1 // pred_fallthru
      _
    // Predicated region
    $region38: #{tpu_custom_call.1} parent=1 // pred_check
      _
    $region39: #{tpu_custom_call.1} parent=1 // pred_check_branch
      %105 = sbr.rel (0) target = $region41
    $region40: #{tpu_custom_call.1} parent=1 // pred_region
      _
    $region41: #{tpu_custom_call.1} parent=1 // pred_fallthru
      _
    // Predicated region
    $region42: #{tpu_custom_call.1} parent=1 // pred_check
      _
    $region43: #{tpu_custom_call.1} parent=1 // pred_check_branch
      %107 = sbr.rel (0) target = $region45
    $region44: #{tpu_custom_call.1} parent=1 // pred_region
      %109 = dma.done [#allocation5], 1024
    $region45: #{tpu_custom_call.1} parent=1 // pred_fallthru
      _
    // Predicated region
    $region46: #{tpu_custom_call.1} parent=1 // pred_check
      _
    $region47: #{tpu_custom_call.1} parent=1 // pred_check_branch
      %111 = sbr.rel (0) target = $region49
    $region48: #{tpu_custom_call.1} parent=1 // pred_region
      %113 = dma.done [#allocation8], 1024
    $region49: #{tpu_custom_call.1} parent=1 // pred_fallthru
      _
    // Predicated region
    $region50: #{tpu_custom_call.1} parent=1 // pred_check
      _
    $region51: #{tpu_custom_call.1} parent=1 // pred_check_branch
      %115 = sbr.rel (0) target = $region53
    $region52: #{tpu_custom_call.1} parent=1 // pred_region
      %117 = dma.done [#allocation8], 8192
    $region53: #{tpu_custom_call.1} parent=1 // pred_fallthru
      _
    // Predicated region
    $region54: #{tpu_custom_call.1} parent=1 // pred_check
      _
    $region55: #{tpu_custom_call.1} parent=1 // pred_check_branch
      %119 = sbr.rel (0) target = $region57
    $region56: #{tpu_custom_call.1} parent=1 // pred_region
      %121 = dma.done [#allocation11], 8192
    $region57: #{tpu_custom_call.1} parent=1 // pred_fallthru
      _
    // Predicated region
    $region58: #{tpu_custom_call.1} parent=1 // pred_check
      _
    $region59: #{tpu_custom_call.1} parent=1 // pred_check_branch
      %123 = sbr.rel (0) target = $region61
    $region60: #{tpu_custom_call.1} parent=1 // pred_region
      %125 = dma.done [#allocation11], 8192
    $region61: #{tpu_custom_call.1} parent=1 // pred_fallthru
      _
    // Predicated region
    $region62: #{tpu_custom_call.1} parent=1 // pred_check
      _
    $region63: #{tpu_custom_call.1} parent=1 // pred_check_branch
      %127 = sbr.rel (0) target = $region65
    $region64: #{tpu_custom_call.1} parent=1 // pred_region
      %129 = dma.done [#allocation14], 2048
    $region65: #{tpu_custom_call.1} parent=1 // pred_fallthru
      _
    %v130 = vld [vmem:[%s1] sm:$0xff]
    %131 = vset.pattern.permute.xlu0 0
    %132 = vperm.xlu0 %131, %v130
    %v133 = vpop.permute.xlu0 %132
    %v134 = vld [vmem:[#allocation7] sm:$0xff]
    %v135 = vld [vmem:[#allocation7 + $0x8] sm:$0xff]
    %v136 = vld [vmem:[#allocation7 + $0x10] sm:$0xff]
    %v137 = vld [vmem:[#allocation7 + $0x18] sm:$0xff]
    %v138 = vld [vmem:[#allocation7 + $0x20] sm:$0xff]
    %v139 = vld [vmem:[#allocation7 + $0x28] sm:$0xff]
    %v140 = vld [vmem:[#allocation7 + $0x30] sm:$0xff]
    %v141 = vld [vmem:[#allocation7 + $0x38] sm:$0xff]
    %v142 = vld [vmem:[%s4] sm:$0xf]
    %v143 = vld [vmem:[#allocation4] sm:$0xff]
    %v145 = vperm.slane %v142, 0
    %v146 = vperm.slane %v142, 1
    %v147 = vperm.slane %v142, 2
    %v148 = vperm.slane %v142, 3
    %vm153 = vcmask 130048
    %v155 = vsel %vm153, %v143, 0
    %157 = vmatpush.msra.mxu0 0.0
    %158 = vmatpush.msra.mxu0 0.0
    %159 = vmatpush.msra.mxu0 0.0
    %160 = vmatpush.msra.mxu0 0.0
    %161 = vmatpush.msra.mxu0 0.0
    %162 = vmatpush.msra.mxu0 0.0
    %163 = vmatpush.msra.mxu0 0.0
    %164 = vmatpush.msra.mxu0 0.0
    %165 = vmatpush.msra.mxu0 0.0
    %166 = vmatpush.msra.mxu0 0.0
    %167 = vmatpush.msra.mxu0 0.0
    %168 = vmatpush.msra.mxu0 0.0
    %169 = vmatpush.msra.mxu0 0.0
    %170 = vmatpush.msra.mxu0 0.0
    %171 = vmatpush.msra.mxu0 %v138
    %172 = vmatpush.msra.mxu0 %v134
    %173 = vmatmul.f32.gmra.mxu0 %v155
    %v174 = vpop.f32.mrf.mxu0
    %v175 = vadd.f32 %v145, %v174
    %176 = vdwg.mxu0
    %177 = vmatpush.msra.mxu0 0.0
    %178 = vmatpush.msra.mxu0 0.0
    %179 = vmatpush.msra.mxu0 0.0
    %180 = vmatpush.msra.mxu0 0.0
    %181 = vmatpush.msra.mxu0 0.0
    %182 = vmatpush.msra.mxu0 0.0
    %183 = vmatpush.msra.mxu0 0.0
    %184 = vmatpush.msra.mxu0 0.0
    %185 = vmatpush.msra.mxu0 0.0
    %186 = vmatpush.msra.mxu0 0.0
    %187 = vmatpush.msra.mxu0 0.0
    %188 = vmatpush.msra.mxu0 0.0
    %189 = vmatpush.msra.mxu0 0.0
    %190 = vmatpush.msra.mxu0 0.0
    %191 = vmatpush.msra.mxu0 %v139
    %192 = vmatpush.msra.mxu0 %v135
    %193 = vmatmul.f32.gmra.mxu0 %v155
    %v194 = vpop.f32.mrf.mxu0
    %v195 = vadd.f32 %v146, %v194
    %196 = vdwg.mxu0
    %197 = vmatpush.msra.mxu0 0.0
    %198 = vmatpush.msra.mxu0 0.0
    %199 = vmatpush.msra.mxu0 0.0
    %200 = vmatpush.msra.mxu0 0.0
    %201 = vmatpush.msra.mxu0 0.0
    %202 = vmatpush.msra.mxu0 0.0
    %203 = vmatpush.msra.mxu0 0.0
    %204 = vmatpush.msra.mxu0 0.0
    %205 = vmatpush.msra.mxu0 0.0
    %206 = vmatpush.msra.mxu0 0.0
    %207 = vmatpush.msra.mxu0 0.0
    %208 = vmatpush.msra.mxu0 0.0
    %209 = vmatpush.msra.mxu0 0.0
    %210 = vmatpush.msra.mxu0 0.0
    %211 = vmatpush.msra.mxu0 %v140
    %212 = vmatpush.msra.mxu0 %v136
    %213 = vmatmul.f32.gmra.mxu0 %v155
    %v214 = vpop.f32.mrf.mxu0
    %v215 = vadd.f32 %v147, %v214
    %216 = vdwg.mxu0
    %217 = vmatpush.msra.mxu0 0.0
    %218 = vmatpush.msra.mxu0 0.0
    %219 = vmatpush.msra.mxu0 0.0
    %220 = vmatpush.msra.mxu0 0.0
    %221 = vmatpush.msra.mxu0 0.0
    %222 = vmatpush.msra.mxu0 0.0
    %223 = vmatpush.msra.mxu0 0.0
    %224 = vmatpush.msra.mxu0 0.0
    %225 = vmatpush.msra.mxu0 0.0
    %226 = vmatpush.msra.mxu0 0.0
    %227 = vmatpush.msra.mxu0 0.0
    %228 = vmatpush.msra.mxu0 0.0
    %229 = vmatpush.msra.mxu0 0.0
    %230 = vmatpush.msra.mxu0 0.0
    %231 = vmatpush.msra.mxu0 %v141
    %232 = vmatpush.msra.mxu0 %v137
    %233 = vmatmul.f32.gmra.mxu0 %v155
    %v234 = vpop.f32.mrf.mxu0
    %v235 = vadd.f32 %v148, %v234
    %236 = vdwg.mxu0
    %237 = vst [vmem:[#allocation2] sm:$0xff] %v175
    %238 = vst [vmem:[#allocation2 + $0x8] sm:$0xff] %v195
    %239 = vst [vmem:[#allocation2 + $0x10] sm:$0xff] %v215
    %240 = vst [vmem:[#allocation2 + $0x18] sm:$0xff] %v235
    %s241 = scalar_lea.vmem [#allocation4], 8
    %v242 = vld [vmem:[%s241] sm:$0xff]
    %v244 = vsel %vm153, %v242, 0
    %246 = vmatpush.msra.mxu0 0.0
    %247 = vmatpush.msra.mxu0 0.0
    %248 = vmatpush.msra.mxu0 0.0
    %249 = vmatpush.msra.mxu0 0.0
    %250 = vmatpush.msra.mxu0 0.0
    %251 = vmatpush.msra.mxu0 0.0
    %252 = vmatpush.msra.mxu0 0.0
    %253 = vmatpush.msra.mxu0 0.0
    %254 = vmatpush.msra.mxu0 0.0
    %255 = vmatpush.msra.mxu0 0.0
    %256 = vmatpush.msra.mxu0 0.0
    %257 = vmatpush.msra.mxu0 0.0
    %258 = vmatpush.msra.mxu0 0.0
    %259 = vmatpush.msra.mxu0 0.0
    %260 = vmatpush.msra.mxu0 %v138
    %261 = vmatpush.msra.mxu0 %v134
    %262 = vmatmul.f32.gmra.mxu0 %v244
    %v263 = vpop.f32.mrf.mxu0
    %v264 = vadd.f32 %v145, %v263
    %265 = vdwg.mxu0
    %266 = vmatpush.msra.mxu0 0.0
    %267 = vmatpush.msra.mxu0 0.0
    %268 = vmatpush.msra.mxu0 0.0
    %269 = vmatpush.msra.mxu0 0.0
    %270 = vmatpush.msra.mxu0 0.0
    %271 = vmatpush.msra.mxu0 0.0
    %272 = vmatpush.msra.mxu0 0.0
    %273 = vmatpush.msra.mxu0 0.0
    %274 = vmatpush.msra.mxu0 0.0
    %275 = vmatpush.msra.mxu0 0.0
    %276 = vmatpush.msra.mxu0 0.0
    %277 = vmatpush.msra.mxu0 0.0
    %278 = vmatpush.msra.mxu0 0.0
    %279 = vmatpush.msra.mxu0 0.0
    %280 = vmatpush.msra.mxu0 %v139
    %281 = vmatpush.msra.mxu0 %v135
    %282 = vmatmul.f32.gmra.mxu0 %v244
    %v283 = vpop.f32.mrf.mxu0
    %v284 = vadd.f32 %v146, %v283
    %285 = vdwg.mxu0
    %286 = vmatpush.msra.mxu0 0.0
    %287 = vmatpush.msra.mxu0 0.0
    %288 = vmatpush.msra.mxu0 0.0
    %289 = vmatpush.msra.mxu0 0.0
    %290 = vmatpush.msra.mxu0 0.0
    %291 = vmatpush.msra.mxu0 0.0
    %292 = vmatpush.msra.mxu0 0.0
    %293 = vmatpush.msra.mxu0 0.0
    %294 = vmatpush.msra.mxu0 0.0
    %295 = vmatpush.msra.mxu0 0.0
    %296 = vmatpush.msra.mxu0 0.0
    %297 = vmatpush.msra.mxu0 0.0
    %298 = vmatpush.msra.mxu0 0.0
    %299 = vmatpush.msra.mxu0 0.0
    %300 = vmatpush.msra.mxu0 %v140
    %301 = vmatpush.msra.mxu0 %v136
    %302 = vmatmul.f32.gmra.mxu0 %v244
    %v303 = vpop.f32.mrf.mxu0
    %v304 = vadd.f32 %v147, %v303
    %305 = vdwg.mxu0
    %306 = vmatpush.msra.mxu0 0.0
    %307 = vmatpush.msra.mxu0 0.0
    %308 = vmatpush.msra.mxu0 0.0
    %309 = vmatpush.msra.mxu0 0.0
    %310 = vmatpush.msra.mxu0 0.0
    %311 = vmatpush.msra.mxu0 0.0
    %312 = vmatpush.msra.mxu0 0.0
    %313 = vmatpush.msra.mxu0 0.0
    %314 = vmatpush.msra.mxu0 0.0
    %315 = vmatpush.msra.mxu0 0.0
    %316 = vmatpush.msra.mxu0 0.0
    %317 = vmatpush.msra.mxu0 0.0
    %318 = vmatpush.msra.mxu0 0.0
    %319 = vmatpush.msra.mxu0 0.0
    %320 = vmatpush.msra.mxu0 %v141
    %321 = vmatpush.msra.mxu0 %v137
    %322 = vmatmul.f32.gmra.mxu0 %v244
    %v323 = vpop.f32.mrf.mxu0
    %v324 = vadd.f32 %v148, %v323
    %325 = vdwg.mxu0
    %326 = vst [vmem:[#allocation2 + $0x20] sm:$0xff] %v264
    %327 = vst [vmem:[#allocation2 + $0x28] sm:$0xff] %v284
    %328 = vst [vmem:[#allocation2 + $0x30] sm:$0xff] %v304
    %329 = vst [vmem:[#allocation2 + $0x38] sm:$0xff] %v324
    %s330 = scalar_lea.vmem [#allocation4], 16
    %v331 = vld [vmem:[%s330] sm:$0xff]
    %v333 = vsel %vm153, %v331, 0
    %335 = vmatpush.msra.mxu0 0.0
    %336 = vmatpush.msra.mxu0 0.0
    %337 = vmatpush.msra.mxu0 0.0
    %338 = vmatpush.msra.mxu0 0.0
    %339 = vmatpush.msra.mxu0 0.0
    %340 = vmatpush.msra.mxu0 0.0
    %341 = vmatpush.msra.mxu0 0.0
    %342 = vmatpush.msra.mxu0 0.0
    %343 = vmatpush.msra.mxu0 0.0
    %344 = vmatpush.msra.mxu0 0.0
    %345 = vmatpush.msra.mxu0 0.0
    %346 = vmatpush.msra.mxu0 0.0
    %347 = vmatpush.msra.mxu0 0.0
    %348 = vmatpush.msra.mxu0 0.0
    %349 = vmatpush.msra.mxu0 %v138
    %350 = vmatpush.msra.mxu0 %v134
    %351 = vmatmul.f32.gmra.mxu0 %v333
    %v352 = vpop.f32.mrf.mxu0
    %v353 = vadd.f32 %v145, %v352
    %354 = vdwg.mxu0
    %355 = vmatpush.msra.mxu0 0.0
    %356 = vmatpush.msra.mxu0 0.0
    %357 = vmatpush.msra.mxu0 0.0
    %358 = vmatpush.msra.mxu0 0.0
    %359 = vmatpush.msra.mxu0 0.0
    %360 = vmatpush.msra.mxu0 0.0
    %361 = vmatpush.msra.mxu0 0.0
    %362 = vmatpush.msra.mxu0 0.0
    %363 = vmatpush.msra.mxu0 0.0
    %364 = vmatpush.msra.mxu0 0.0
    %365 = vmatpush.msra.mxu0 0.0
    %366 = vmatpush.msra.mxu0 0.0
    %367 = vmatpush.msra.mxu0 0.0
    %368 = vmatpush.msra.mxu0 0.0
    %369 = vmatpush.msra.mxu0 %v139
    %370 = vmatpush.msra.mxu0 %v135
    %371 = vmatmul.f32.gmra.mxu0 %v333
    %v372 = vpop.f32.mrf.mxu0
    %v373 = vadd.f32 %v146, %v372
    %374 = vdwg.mxu0
    %375 = vmatpush.msra.mxu0 0.0
    %376 = vmatpush.msra.mxu0 0.0
    %377 = vmatpush.msra.mxu0 0.0
    %378 = vmatpush.msra.mxu0 0.0
    %379 = vmatpush.msra.mxu0 0.0
    %380 = vmatpush.msra.mxu0 0.0
    %381 = vmatpush.msra.mxu0 0.0
    %382 = vmatpush.msra.mxu0 0.0
    %383 = vmatpush.msra.mxu0 0.0
    %384 = vmatpush.msra.mxu0 0.0
    %385 = vmatpush.msra.mxu0 0.0
    %386 = vmatpush.msra.mxu0 0.0
    %387 = vmatpush.msra.mxu0 0.0
    %388 = vmatpush.msra.mxu0 0.0
    %389 = vmatpush.msra.mxu0 %v140
    %390 = vmatpush.msra.mxu0 %v136
    %391 = vmatmul.f32.gmra.mxu0 %v333
    %v392 = vpop.f32.mrf.mxu0
    %v393 = vadd.f32 %v147, %v392
    %394 = vdwg.mxu0
    %395 = vmatpush.msra.mxu0 0.0
    %396 = vmatpush.msra.mxu0 0.0
    %397 = vmatpush.msra.mxu0 0.0
    %398 = vmatpush.msra.mxu0 0.0
    %399 = vmatpush.msra.mxu0 0.0
    %400 = vmatpush.msra.mxu0 0.0
    %401 = vmatpush.msra.mxu0 0.0
    %402 = vmatpush.msra.mxu0 0.0
    %403 = vmatpush.msra.mxu0 0.0
    %404 = vmatpush.msra.mxu0 0.0
    %405 = vmatpush.msra.mxu0 0.0
    %406 = vmatpush.msra.mxu0 0.0
    %407 = vmatpush.msra.mxu0 0.0
    %408 = vmatpush.msra.mxu0 0.0
    %409 = vmatpush.msra.mxu0 %v141
    %410 = vmatpush.msra.mxu0 %v137
    %411 = vmatmul.f32.gmra.mxu0 %v333
    %v412 = vpop.f32.mrf.mxu0
    %v413 = vadd.f32 %v148, %v412
    %414 = vdwg.mxu0
    %415 = vst [vmem:[#allocation2 + $0x40] sm:$0xff] %v353
    %416 = vst [vmem:[#allocation2 + $0x48] sm:$0xff] %v373
    %417 = vst [vmem:[#allocation2 + $0x50] sm:$0xff] %v393
    %418 = vst [vmem:[#allocation2 + $0x58] sm:$0xff] %v413
    %s419 = scalar_lea.vmem [#allocation4], 24
    %v420 = vld [vmem:[%s419] sm:$0xff]
    %v422 = vsel %vm153, %v420, 0
    %424 = vmatpush.msra.mxu0 0.0
    %425 = vmatpush.msra.mxu0 0.0
    %426 = vmatpush.msra.mxu0 0.0
    %427 = vmatpush.msra.mxu0 0.0
    %428 = vmatpush.msra.mxu0 0.0
    %429 = vmatpush.msra.mxu0 0.0
    %430 = vmatpush.msra.mxu0 0.0
    %431 = vmatpush.msra.mxu0 0.0
    %432 = vmatpush.msra.mxu0 0.0
    %433 = vmatpush.msra.mxu0 0.0
    %434 = vmatpush.msra.mxu0 0.0
    %435 = vmatpush.msra.mxu0 0.0
    %436 = vmatpush.msra.mxu0 0.0
    %437 = vmatpush.msra.mxu0 0.0
    %438 = vmatpush.msra.mxu0 %v138
    %439 = vmatpush.msra.mxu0 %v134
    %440 = vmatmul.f32.gmra.mxu0 %v422
    %v441 = vpop.f32.mrf.mxu0
    %v442 = vadd.f32 %v145, %v441
    %443 = vdwg.mxu0
    %444 = vmatpush.msra.mxu0 0.0
    %445 = vmatpush.msra.mxu0 0.0
    %446 = vmatpush.msra.mxu0 0.0
    %447 = vmatpush.msra.mxu0 0.0
    %448 = vmatpush.msra.mxu0 0.0
    %449 = vmatpush.msra.mxu0 0.0
    %450 = vmatpush.msra.mxu0 0.0
    %451 = vmatpush.msra.mxu0 0.0
    %452 = vmatpush.msra.mxu0 0.0
    %453 = vmatpush.msra.mxu0 0.0
    %454 = vmatpush.msra.mxu0 0.0
    %455 = vmatpush.msra.mxu0 0.0
    %456 = vmatpush.msra.mxu0 0.0
    %457 = vmatpush.msra.mxu0 0.0
    %458 = vmatpush.msra.mxu0 %v139
    %459 = vmatpush.msra.mxu0 %v135
    %460 = vmatmul.f32.gmra.mxu0 %v422
    %v461 = vpop.f32.mrf.mxu0
    %v462 = vadd.f32 %v146, %v461
    %463 = vdwg.mxu0
    %464 = vmatpush.msra.mxu0 0.0
    %465 = vmatpush.msra.mxu0 0.0
    %466 = vmatpush.msra.mxu0 0.0
    %467 = vmatpush.msra.mxu0 0.0
    %468 = vmatpush.msra.mxu0 0.0
    %469 = vmatpush.msra.mxu0 0.0
    %470 = vmatpush.msra.mxu0 0.0
    %471 = vmatpush.msra.mxu0 0.0
    %472 = vmatpush.msra.mxu0 0.0
    %473 = vmatpush.msra.mxu0 0.0
    %474 = vmatpush.msra.mxu0 0.0
    %475 = vmatpush.msra.mxu0 0.0
    %476 = vmatpush.msra.mxu0 0.0
    %477 = vmatpush.msra.mxu0 0.0
    %478 = vmatpush.msra.mxu0 %v140
    %479 = vmatpush.msra.mxu0 %v136
    %480 = vmatmul.f32.gmra.mxu0 %v422
    %v481 = vpop.f32.mrf.mxu0
    %v482 = vadd.f32 %v147, %v481
    %483 = vdwg.mxu0
    %484 = vmatpush.msra.mxu0 0.0
    %485 = vmatpush.msra.mxu0 0.0
    %486 = vmatpush.msra.mxu0 0.0
    %487 = vmatpush.msra.mxu0 0.0
    %488 = vmatpush.msra.mxu0 0.0
    %489 = vmatpush.msra.mxu0 0.0
    %490 = vmatpush.msra.mxu0 0.0
    %491 = vmatpush.msra.mxu0 0.0
    %492 = vmatpush.msra.mxu0 0.0
    %493 = vmatpush.msra.mxu0 0.0
    %494 = vmatpush.msra.mxu0 0.0
    %495 = vmatpush.msra.mxu0 0.0
    %496 = vmatpush.msra.mxu0 0.0
    %497 = vmatpush.msra.mxu0 0.0
    %498 = vmatpush.msra.mxu0 %v141
    %499 = vmatpush.msra.mxu0 %v137
    %500 = vmatmul.f32.gmra.mxu0 %v422
    %v501 = vpop.f32.mrf.mxu0
    %v502 = vadd.f32 %v148, %v501
    %503 = vdwg.mxu0
    %504 = vst [vmem:[#allocation2 + $0x60] sm:$0xff] %v442
    %505 = vst [vmem:[#allocation2 + $0x68] sm:$0xff] %v462
    %506 = vst [vmem:[#allocation2 + $0x70] sm:$0xff] %v482
    %507 = vst [vmem:[#allocation2 + $0x78] sm:$0xff] %v502
    %s508 = scalar_lea.vmem [#allocation4], 32
    %v509 = vld [vmem:[%s508] sm:$0xff]
    %v511 = vsel %vm153, %v509, 0
    %513 = vmatpush.msra.mxu0 0.0
    %514 = vmatpush.msra.mxu0 0.0
    %515 = vmatpush.msra.mxu0 0.0
    %516 = vmatpush.msra.mxu0 0.0
    %517 = vmatpush.msra.mxu0 0.0
    %518 = vmatpush.msra.mxu0 0.0
    %519 = vmatpush.msra.mxu0 0.0
    %520 = vmatpush.msra.mxu0 0.0
    %521 = vmatpush.msra.mxu0 0.0
    %522 = vmatpush.msra.mxu0 0.0
    %523 = vmatpush.msra.mxu0 0.0
    %524 = vmatpush.msra.mxu0 0.0
    %525 = vmatpush.msra.mxu0 0.0
    %526 = vmatpush.msra.mxu0 0.0
    %527 = vmatpush.msra.mxu0 %v138
    %528 = vmatpush.msra.mxu0 %v134
    %529 = vmatmul.f32.gmra.mxu0 %v511
    %v530 = vpop.f32.mrf.mxu0
    %v531 = vadd.f32 %v145, %v530
    %532 = vdwg.mxu0
    %533 = vmatpush.msra.mxu0 0.0
    %534 = vmatpush.msra.mxu0 0.0
    %535 = vmatpush.msra.mxu0 0.0
    %536 = vmatpush.msra.mxu0 0.0
    %537 = vmatpush.msra.mxu0 0.0
    %538 = vmatpush.msra.mxu0 0.0
    %539 = vmatpush.msra.mxu0 0.0
    %540 = vmatpush.msra.mxu0 0.0
    %541 = vmatpush.msra.mxu0 0.0
    %542 = vmatpush.msra.mxu0 0.0
    %543 = vmatpush.msra.mxu0 0.0
    %544 = vmatpush.msra.mxu0 0.0
    %545 = vmatpush.msra.mxu0 0.0
    %546 = vmatpush.msra.mxu0 0.0
    %547 = vmatpush.msra.mxu0 %v139
    %548 = vmatpush.msra.mxu0 %v135
    %549 = vmatmul.f32.gmra.mxu0 %v511
    %v550 = vpop.f32.mrf.mxu0
    %v551 = vadd.f32 %v146, %v550
    %552 = vdwg.mxu0
    %553 = vmatpush.msra.mxu0 0.0
    %554 = vmatpush.msra.mxu0 0.0
    %555 = vmatpush.msra.mxu0 0.0
    %556 = vmatpush.msra.mxu0 0.0
    %557 = vmatpush.msra.mxu0 0.0
    %558 = vmatpush.msra.mxu0 0.0
    %559 = vmatpush.msra.mxu0 0.0
    %560 = vmatpush.msra.mxu0 0.0
    %561 = vmatpush.msra.mxu0 0.0
    %562 = vmatpush.msra.mxu0 0.0
    %563 = vmatpush.msra.mxu0 0.0
    %564 = vmatpush.msra.mxu0 0.0
    %565 = vmatpush.msra.mxu0 0.0
    %566 = vmatpush.msra.mxu0 0.0
    %567 = vmatpush.msra.mxu0 %v140
    %568 = vmatpush.msra.mxu0 %v136
    %569 = vmatmul.f32.gmra.mxu0 %v511
    %v570 = vpop.f32.mrf.mxu0
    %v571 = vadd.f32 %v147, %v570
    %572 = vdwg.mxu0
    %573 = vmatpush.msra.mxu0 0.0
    %574 = vmatpush.msra.mxu0 0.0
    %575 = vmatpush.msra.mxu0 0.0
    %576 = vmatpush.msra.mxu0 0.0
    %577 = vmatpush.msra.mxu0 0.0
    %578 = vmatpush.msra.mxu0 0.0
    %579 = vmatpush.msra.mxu0 0.0
    %580 = vmatpush.msra.mxu0 0.0
    %581 = vmatpush.msra.mxu0 0.0
    %582 = vmatpush.msra.mxu0 0.0
    %583 = vmatpush.msra.mxu0 0.0
    %584 = vmatpush.msra.mxu0 0.0
    %585 = vmatpush.msra.mxu0 0.0
    %586 = vmatpush.msra.mxu0 0.0
    %587 = vmatpush.msra.mxu0 %v141
    %588 = vmatpush.msra.mxu0 %v137
    %589 = vmatmul.f32.gmra.mxu0 %v511
    %v590 = vpop.f32.mrf.mxu0
    %v591 = vadd.f32 %v148, %v590
    %592 = vdwg.mxu0
    %593 = vst [vmem:[#allocation2 + $0x80] sm:$0xff] %v531
    %594 = vst [vmem:[#allocation2 + $0x88] sm:$0xff] %v551
    %595 = vst [vmem:[#allocation2 + $0x90] sm:$0xff] %v571
    %596 = vst [vmem:[#allocation2 + $0x98] sm:$0xff] %v591
    %s597 = scalar_lea.vmem [#allocation4], 40
    %v598 = vld [vmem:[%s597] sm:$0xff]
    %v600 = vsel %vm153, %v598, 0
    %602 = vmatpush.msra.mxu0 0.0
    %603 = vmatpush.msra.mxu0 0.0
    %604 = vmatpush.msra.mxu0 0.0
    %605 = vmatpush.msra.mxu0 0.0
    %606 = vmatpush.msra.mxu0 0.0
    %607 = vmatpush.msra.mxu0 0.0
    %608 = vmatpush.msra.mxu0 0.0
    %609 = vmatpush.msra.mxu0 0.0
    %610 = vmatpush.msra.mxu0 0.0
    %611 = vmatpush.msra.mxu0 0.0
    %612 = vmatpush.msra.mxu0 0.0
    %613 = vmatpush.msra.mxu0 0.0
    %614 = vmatpush.msra.mxu0 0.0
    %615 = vmatpush.msra.mxu0 0.0
    %616 = vmatpush.msra.mxu0 %v138
    %617 = vmatpush.msra.mxu0 %v134
    %618 = vmatmul.f32.gmra.mxu0 %v600
    %v619 = vpop.f32.mrf.mxu0
    %v620 = vadd.f32 %v145, %v619
    %621 = vdwg.mxu0
    %622 = vmatpush.msra.mxu0 0.0
    %623 = vmatpush.msra.mxu0 0.0
    %624 = vmatpush.msra.mxu0 0.0
    %625 = vmatpush.msra.mxu0 0.0
    %626 = vmatpush.msra.mxu0 0.0
    %627 = vmatpush.msra.mxu0 0.0
    %628 = vmatpush.msra.mxu0 0.0
    %629 = vmatpush.msra.mxu0 0.0
    %630 = vmatpush.msra.mxu0 0.0
    %631 = vmatpush.msra.mxu0 0.0
    %632 = vmatpush.msra.mxu0 0.0
    %633 = vmatpush.msra.mxu0 0.0
    %634 = vmatpush.msra.mxu0 0.0
    %635 = vmatpush.msra.mxu0 0.0
    %636 = vmatpush.msra.mxu0 %v139
    %637 = vmatpush.msra.mxu0 %v135
    %638 = vmatmul.f32.gmra.mxu0 %v600
    %v639 = vpop.f32.mrf.mxu0
    %v640 = vadd.f32 %v146, %v639
    %641 = vdwg.mxu0
    %642 = vmatpush.msra.mxu0 0.0
    %643 = vmatpush.msra.mxu0 0.0
    %644 = vmatpush.msra.mxu0 0.0
    %645 = vmatpush.msra.mxu0 0.0
    %646 = vmatpush.msra.mxu0 0.0
    %647 = vmatpush.msra.mxu0 0.0
    %648 = vmatpush.msra.mxu0 0.0
    %649 = vmatpush.msra.mxu0 0.0
    %650 = vmatpush.msra.mxu0 0.0
    %651 = vmatpush.msra.mxu0 0.0
    %652 = vmatpush.msra.mxu0 0.0
    %653 = vmatpush.msra.mxu0 0.0
    %654 = vmatpush.msra.mxu0 0.0
    %655 = vmatpush.msra.mxu0 0.0
    %656 = vmatpush.msra.mxu0 %v140
    %657 = vmatpush.msra.mxu0 %v136
    %658 = vmatmul.f32.gmra.mxu0 %v600
    %v659 = vpop.f32.mrf.mxu0
    %v660 = vadd.f32 %v147, %v659
    %661 = vdwg.mxu0
    %662 = vmatpush.msra.mxu0 0.0
    %663 = vmatpush.msra.mxu0 0.0
    %664 = vmatpush.msra.mxu0 0.0
    %665 = vmatpush.msra.mxu0 0.0
    %666 = vmatpush.msra.mxu0 0.0
    %667 = vmatpush.msra.mxu0 0.0
    %668 = vmatpush.msra.mxu0 0.0
    %669 = vmatpush.msra.mxu0 0.0
    %670 = vmatpush.msra.mxu0 0.0
    %671 = vmatpush.msra.mxu0 0.0
    %672 = vmatpush.msra.mxu0 0.0
    %673 = vmatpush.msra.mxu0 0.0
    %674 = vmatpush.msra.mxu0 0.0
    %675 = vmatpush.msra.mxu0 0.0
    %676 = vmatpush.msra.mxu0 %v141
    %677 = vmatpush.msra.mxu0 %v137
    %678 = vmatmul.f32.gmra.mxu0 %v600
    %v679 = vpop.f32.mrf.mxu0
    %v680 = vadd.f32 %v148, %v679
    %681 = vdwg.mxu0
    %682 = vst [vmem:[#allocation2 + $0xa0] sm:$0xff] %v620
    %683 = vst [vmem:[#allocation2 + $0xa8] sm:$0xff] %v640
    %684 = vst [vmem:[#allocation2 + $0xb0] sm:$0xff] %v660
    %685 = vst [vmem:[#allocation2 + $0xb8] sm:$0xff] %v680
    %s686 = scalar_lea.vmem [#allocation4], 48
    %v687 = vld [vmem:[%s686] sm:$0xff]
    %v689 = vsel %vm153, %v687, 0
    %691 = vmatpush.msra.mxu0 0.0
    %692 = vmatpush.msra.mxu0 0.0
    %693 = vmatpush.msra.mxu0 0.0
    %694 = vmatpush.msra.mxu0 0.0
    %695 = vmatpush.msra.mxu0 0.0
    %696 = vmatpush.msra.mxu0 0.0
    %697 = vmatpush.msra.mxu0 0.0
    %698 = vmatpush.msra.mxu0 0.0
    %699 = vmatpush.msra.mxu0 0.0
    %700 = vmatpush.msra.mxu0 0.0
    %701 = vmatpush.msra.mxu0 0.0
    %702 = vmatpush.msra.mxu0 0.0
    %703 = vmatpush.msra.mxu0 0.0
    %704 = vmatpush.msra.mxu0 0.0
    %705 = vmatpush.msra.mxu0 %v138
    %706 = vmatpush.msra.mxu0 %v134
    %707 = vmatmul.f32.gmra.mxu0 %v689
    %v708 = vpop.f32.mrf.mxu0
    %v709 = vadd.f32 %v145, %v708
    %710 = vdwg.mxu0
    %711 = vmatpush.msra.mxu0 0.0
    %712 = vmatpush.msra.mxu0 0.0
    %713 = vmatpush.msra.mxu0 0.0
    %714 = vmatpush.msra.mxu0 0.0
    %715 = vmatpush.msra.mxu0 0.0
    %716 = vmatpush.msra.mxu0 0.0
    %717 = vmatpush.msra.mxu0 0.0
    %718 = vmatpush.msra.mxu0 0.0
    %719 = vmatpush.msra.mxu0 0.0
    %720 = vmatpush.msra.mxu0 0.0
    %721 = vmatpush.msra.mxu0 0.0
    %722 = vmatpush.msra.mxu0 0.0
    %723 = vmatpush.msra.mxu0 0.0
    %724 = vmatpush.msra.mxu0 0.0
    %725 = vmatpush.msra.mxu0 %v139
    %726 = vmatpush.msra.mxu0 %v135
    %727 = vmatmul.f32.gmra.mxu0 %v689
    %v728 = vpop.f32.mrf.mxu0
    %v729 = vadd.f32 %v146, %v728
    %730 = vdwg.mxu0
    %731 = vmatpush.msra.mxu0 0.0
    %732 = vmatpush.msra.mxu0 0.0
    %733 = vmatpush.msra.mxu0 0.0
    %734 = vmatpush.msra.mxu0 0.0
    %735 = vmatpush.msra.mxu0 0.0
    %736 = vmatpush.msra.mxu0 0.0
    %737 = vmatpush.msra.mxu0 0.0
    %738 = vmatpush.msra.mxu0 0.0
    %739 = vmatpush.msra.mxu0 0.0
    %740 = vmatpush.msra.mxu0 0.0
    %741 = vmatpush.msra.mxu0 0.0
    %742 = vmatpush.msra.mxu0 0.0
    %743 = vmatpush.msra.mxu0 0.0
    %744 = vmatpush.msra.mxu0 0.0
    %745 = vmatpush.msra.mxu0 %v140
    %746 = vmatpush.msra.mxu0 %v136
    %747 = vmatmul.f32.gmra.mxu0 %v689
    %v748 = vpop.f32.mrf.mxu0
    %v749 = vadd.f32 %v147, %v748
    %750 = vdwg.mxu0
    %751 = vmatpush.msra.mxu0 0.0
    %752 = vmatpush.msra.mxu0 0.0
    %753 = vmatpush.msra.mxu0 0.0
    %754 = vmatpush.msra.mxu0 0.0
    %755 = vmatpush.msra.mxu0 0.0
    %756 = vmatpush.msra.mxu0 0.0
    %757 = vmatpush.msra.mxu0 0.0
    %758 = vmatpush.msra.mxu0 0.0
    %759 = vmatpush.msra.mxu0 0.0
    %760 = vmatpush.msra.mxu0 0.0
    %761 = vmatpush.msra.mxu0 0.0
    %762 = vmatpush.msra.mxu0 0.0
    %763 = vmatpush.msra.mxu0 0.0
    %764 = vmatpush.msra.mxu0 0.0
    %765 = vmatpush.msra.mxu0 %v141
    %766 = vmatpush.msra.mxu0 %v137
    %767 = vmatmul.f32.gmra.mxu0 %v689
    %v768 = vpop.f32.mrf.mxu0
    %v769 = vadd.f32 %v148, %v768
    %770 = vdwg.mxu0
    %771 = vst [vmem:[#allocation2 + $0xc0] sm:$0xff] %v709
    %772 = vst [vmem:[#allocation2 + $0xc8] sm:$0xff] %v729
    %773 = vst [vmem:[#allocation2 + $0xd0] sm:$0xff] %v749
    %774 = vst [vmem:[#allocation2 + $0xd8] sm:$0xff] %v769
    %s775 = scalar_lea.vmem [#allocation4], 56
    %v776 = vld [vmem:[%s775] sm:$0xff]
    %v778 = vsel %vm153, %v776, 0
    %780 = vmatpush.msra.mxu0 0.0
    %781 = vmatpush.msra.mxu0 0.0
    %782 = vmatpush.msra.mxu0 0.0
    %783 = vmatpush.msra.mxu0 0.0
    %784 = vmatpush.msra.mxu0 0.0
    %785 = vmatpush.msra.mxu0 0.0
    %786 = vmatpush.msra.mxu0 0.0
    %787 = vmatpush.msra.mxu0 0.0
    %788 = vmatpush.msra.mxu0 0.0
    %789 = vmatpush.msra.mxu0 0.0
    %790 = vmatpush.msra.mxu0 0.0
    %791 = vmatpush.msra.mxu0 0.0
    %792 = vmatpush.msra.mxu0 0.0
    %793 = vmatpush.msra.mxu0 0.0
    %794 = vmatpush.msra.mxu0 %v138
    %795 = vmatpush.msra.mxu0 %v134
    %796 = vmatmul.f32.gmra.mxu0 %v778
    %v797 = vpop.f32.mrf.mxu0
    %v798 = vadd.f32 %v145, %v797
    %799 = vdwg.mxu0
    %800 = vmatpush.msra.mxu0 0.0
    %801 = vmatpush.msra.mxu0 0.0
    %802 = vmatpush.msra.mxu0 0.0
    %803 = vmatpush.msra.mxu0 0.0
    %804 = vmatpush.msra.mxu0 0.0
    %805 = vmatpush.msra.mxu0 0.0
    %806 = vmatpush.msra.mxu0 0.0
    %807 = vmatpush.msra.mxu0 0.0
    %808 = vmatpush.msra.mxu0 0.0
    %809 = vmatpush.msra.mxu0 0.0
    %810 = vmatpush.msra.mxu0 0.0
    %811 = vmatpush.msra.mxu0 0.0
    %812 = vmatpush.msra.mxu0 0.0
    %813 = vmatpush.msra.mxu0 0.0
    %814 = vmatpush.msra.mxu0 %v139
    %815 = vmatpush.msra.mxu0 %v135
    %816 = vmatmul.f32.gmra.mxu0 %v778
    %v817 = vpop.f32.mrf.mxu0
    %v818 = vadd.f32 %v146, %v817
    %819 = vdwg.mxu0
    %820 = vmatpush.msra.mxu0 0.0
    %821 = vmatpush.msra.mxu0 0.0
    %822 = vmatpush.msra.mxu0 0.0
    %823 = vmatpush.msra.mxu0 0.0
    %824 = vmatpush.msra.mxu0 0.0
    %825 = vmatpush.msra.mxu0 0.0
    %826 = vmatpush.msra.mxu0 0.0
    %827 = vmatpush.msra.mxu0 0.0
    %828 = vmatpush.msra.mxu0 0.0
    %829 = vmatpush.msra.mxu0 0.0
    %830 = vmatpush.msra.mxu0 0.0
    %831 = vmatpush.msra.mxu0 0.0
    %832 = vmatpush.msra.mxu0 0.0
    %833 = vmatpush.msra.mxu0 0.0
    %834 = vmatpush.msra.mxu0 %v140
    %835 = vmatpush.msra.mxu0 %v136
    %836 = vmatmul.f32.gmra.mxu0 %v778
    %v837 = vpop.f32.mrf.mxu0
    %v838 = vadd.f32 %v147, %v837
    %839 = vdwg.mxu0
    %840 = vmatpush.msra.mxu0 0.0
    %841 = vmatpush.msra.mxu0 0.0
    %842 = vmatpush.msra.mxu0 0.0
    %843 = vmatpush.msra.mxu0 0.0
    %844 = vmatpush.msra.mxu0 0.0
    %845 = vmatpush.msra.mxu0 0.0
    %846 = vmatpush.msra.mxu0 0.0
    %847 = vmatpush.msra.mxu0 0.0
    %848 = vmatpush.msra.mxu0 0.0
    %849 = vmatpush.msra.mxu0 0.0
    %850 = vmatpush.msra.mxu0 0.0
    %851 = vmatpush.msra.mxu0 0.0
    %852 = vmatpush.msra.mxu0 0.0
    %853 = vmatpush.msra.mxu0 0.0
    %854 = vmatpush.msra.mxu0 %v141
    %855 = vmatpush.msra.mxu0 %v137
    %856 = vmatmul.f32.gmra.mxu0 %v778
    %v857 = vpop.f32.mrf.mxu0
    %v858 = vadd.f32 %v148, %v857
    %859 = vdwg.mxu0
    %860 = vst [vmem:[#allocation2 + $0xe0] sm:$0xff] %v798
    %861 = vst [vmem:[#allocation2 + $0xe8] sm:$0xff] %v818
    %862 = vst [vmem:[#allocation2 + $0xf0] sm:$0xff] %v838
    %863 = vst [vmem:[#allocation2 + $0xf8] sm:$0xff] %v858
    %v864 = vld [vmem:[#allocation9] sm:$0xff]
    %v865 = vld [vmem:[#allocation9 + $0x8] sm:$0xff]
    %v866 = vld [vmem:[#allocation9 + $0x10] sm:$0xff]
    %v867 = vld [vmem:[#allocation9 + $0x18] sm:$0xff]
    %v868 = vld [vmem:[#allocation9 + $0x20] sm:$0xff]
    %v869 = vld [vmem:[#allocation9 + $0x28] sm:$0xff]
    %v870 = vld [vmem:[#allocation9 + $0x30] sm:$0xff]
    %v871 = vld [vmem:[#allocation9 + $0x38] sm:$0xff]
    %v872 = vld [vmem:[#allocation9 + $0x40] sm:$0xff]
    %v873 = vld [vmem:[#allocation9 + $0x48] sm:$0xff]
    %v874 = vld [vmem:[#allocation9 + $0x50] sm:$0xff]
    %v875 = vld [vmem:[#allocation9 + $0x58] sm:$0xff]
    %v876 = vld [vmem:[#allocation9 + $0x60] sm:$0xff]
    %v877 = vld [vmem:[#allocation9 + $0x68] sm:$0xff]
    %v878 = vld [vmem:[#allocation9 + $0x70] sm:$0xff]
    %v879 = vld [vmem:[#allocation9 + $0x78] sm:$0xff]
    %v880 = vld [vmem:[#allocation9 + $0x80] sm:$0xff]
    %v881 = vld [vmem:[#allocation9 + $0x88] sm:$0xff]
    %v882 = vld [vmem:[#allocation9 + $0x90] sm:$0xff]
    %v883 = vld [vmem:[#allocation9 + $0x98] sm:$0xff]
    %v884 = vld [vmem:[#allocation9 + $0xa0] sm:$0xff]
    %v885 = vld [vmem:[#allocation9 + $0xa8] sm:$0xff]
    %v886 = vld [vmem:[#allocation9 + $0xb0] sm:$0xff]
    %v887 = vld [vmem:[#allocation9 + $0xb8] sm:$0xff]
    %v888 = vld [vmem:[#allocation9 + $0xc0] sm:$0xff]
    %v889 = vld [vmem:[#allocation9 + $0xc8] sm:$0xff]
    %v890 = vld [vmem:[#allocation9 + $0xd0] sm:$0xff]
    %v891 = vld [vmem:[#allocation9 + $0xd8] sm:$0xff]
    %v892 = vld [vmem:[#allocation9 + $0xe0] sm:$0xff]
    %v893 = vld [vmem:[#allocation9 + $0xe8] sm:$0xff]
    %v894 = vld [vmem:[#allocation9 + $0xf0] sm:$0xff]
    %v895 = vld [vmem:[#allocation9 + $0xf8] sm:$0xff]
    %v896 = vld [vmem:[#allocation9 + $0x100] sm:$0xff]
    %v897 = vld [vmem:[#allocation9 + $0x108] sm:$0xff]
    %v898 = vld [vmem:[#allocation9 + $0x110] sm:$0xff]
    %v899 = vld [vmem:[#allocation9 + $0x118] sm:$0xff]
    %v900 = vld [vmem:[#allocation9 + $0x120] sm:$0xff]
    %v901 = vld [vmem:[#allocation9 + $0x128] sm:$0xff]
    %v902 = vld [vmem:[#allocation9 + $0x130] sm:$0xff]
    %v903 = vld [vmem:[#allocation9 + $0x138] sm:$0xff]
    %v904 = vld [vmem:[#allocation9 + $0x140] sm:$0xff]
    %v905 = vld [vmem:[#allocation9 + $0x148] sm:$0xff]
    %v906 = vld [vmem:[#allocation9 + $0x150] sm:$0xff]
    %v907 = vld [vmem:[#allocation9 + $0x158] sm:$0xff]
    %v908 = vld [vmem:[#allocation9 + $0x160] sm:$0xff]
    %v909 = vld [vmem:[#allocation9 + $0x168] sm:$0xff]
    %v910 = vld [vmem:[#allocation9 + $0x170] sm:$0xff]
    %v911 = vld [vmem:[#allocation9 + $0x178] sm:$0xff]
    %v912 = vld [vmem:[#allocation9 + $0x180] sm:$0xff]
    %v913 = vld [vmem:[#allocation9 + $0x188] sm:$0xff]
    %v914 = vld [vmem:[#allocation9 + $0x190] sm:$0xff]
    %v915 = vld [vmem:[#allocation9 + $0x198] sm:$0xff]
    %v916 = vld [vmem:[#allocation9 + $0x1a0] sm:$0xff]
    %v917 = vld [vmem:[#allocation9 + $0x1a8] sm:$0xff]
    %v918 = vld [vmem:[#allocation9 + $0x1b0] sm:$0xff]
    %v919 = vld [vmem:[#allocation9 + $0x1b8] sm:$0xff]
    %v920 = vld [vmem:[#allocation9 + $0x1c0] sm:$0xff]
    %v921 = vld [vmem:[#allocation9 + $0x1c8] sm:$0xff]
    %v922 = vld [vmem:[#allocation9 + $0x1d0] sm:$0xff]
    %v923 = vld [vmem:[#allocation9 + $0x1d8] sm:$0xff]
    %v924 = vld [vmem:[#allocation9 + $0x1e0] sm:$0xff]
    %v925 = vld [vmem:[#allocation9 + $0x1e8] sm:$0xff]
    %v926 = vld [vmem:[#allocation9 + $0x1f0] sm:$0xff]
    %v927 = vld [vmem:[#allocation9 + $0x1f8] sm:$0xff]
    %v928 = vld [vmem:[#allocation2] sm:$0xff]
    %v929 = vld [vmem:[#allocation2 + $0x8] sm:$0xff]
    %v930 = vld [vmem:[#allocation2 + $0x10] sm:$0xff]
    %v931 = vld [vmem:[#allocation2 + $0x18] sm:$0xff]
    %932 = vmatpush.msra.mxu0 %v924
    %933 = vmatpush.msra.mxu0 %v920
    %934 = vmatpush.msra.mxu0 %v916
    %935 = vmatpush.msra.mxu0 %v912
    %936 = vmatpush.msra.mxu0 %v908
    %937 = vmatpush.msra.mxu0 %v904
    %938 = vmatpush.msra.mxu0 %v900
    %939 = vmatpush.msra.mxu0 %v896
    %940 = vmatpush.msra.mxu0 %v892
    %941 = vmatpush.msra.mxu0 %v888
    %942 = vmatpush.msra.mxu0 %v884
    %943 = vmatpush.msra.mxu0 %v880
    %944 = vmatpush.msra.mxu0 %v876
    %945 = vmatpush.msra.mxu0 %v872
    %946 = vmatpush.msra.mxu0 %v868
    %947 = vmatpush.msra.mxu0 %v864
    %948 = vmatmul.f32.gmra.mxu0 0.0
    %v949 = vpop.f32.mrf.mxu0
    %v950 = vadd.f32 0.0, %v949
    %951 = vdwg.mxu0
    %952 = vmatpush.msra.mxu0 %v925
    %953 = vmatpush.msra.mxu0 %v921
    %954 = vmatpush.msra.mxu0 %v917
    %955 = vmatpush.msra.mxu0 %v913
    %956 = vmatpush.msra.mxu0 %v909
    %957 = vmatpush.msra.mxu0 %v905
    %958 = vmatpush.msra.mxu0 %v901
    %959 = vmatpush.msra.mxu0 %v897
    %960 = vmatpush.msra.mxu0 %v893
    %961 = vmatpush.msra.mxu0 %v889
    %962 = vmatpush.msra.mxu0 %v885
    %963 = vmatpush.msra.mxu0 %v881
    %964 = vmatpush.msra.mxu0 %v877
    %965 = vmatpush.msra.mxu0 %v873
    %966 = vmatpush.msra.mxu0 %v869
    %967 = vmatpush.msra.mxu0 %v865
    %968 = vmatmul.f32.gmra.mxu0 0.0
    %v969 = vpop.f32.mrf.mxu0
    %v970 = vadd.f32 0.0, %v969
    %971 = vdwg.mxu0
    %972 = vmatpush.msra.mxu0 %v926
    %973 = vmatpush.msra.mxu0 %v922
    %974 = vmatpush.msra.mxu0 %v918
    %975 = vmatpush.msra.mxu0 %v914
    %976 = vmatpush.msra.mxu0 %v910
    %977 = vmatpush.msra.mxu0 %v906
    %978 = vmatpush.msra.mxu0 %v902
    %979 = vmatpush.msra.mxu0 %v898
    %980 = vmatpush.msra.mxu0 %v894
    %981 = vmatpush.msra.mxu0 %v890
    %982 = vmatpush.msra.mxu0 %v886
    %983 = vmatpush.msra.mxu0 %v882
    %984 = vmatpush.msra.mxu0 %v878
    %985 = vmatpush.msra.mxu0 %v874
    %986 = vmatpush.msra.mxu0 %v870
    %987 = vmatpush.msra.mxu0 %v866
    %988 = vmatmul.f32.gmra.mxu0 0.0
    %v989 = vpop.f32.mrf.mxu0
    %v990 = vadd.f32 0.0, %v989
    %991 = vdwg.mxu0
    %992 = vmatpush.msra.mxu0 %v927
    %993 = vmatpush.msra.mxu0 %v923
    %994 = vmatpush.msra.mxu0 %v919
    %995 = vmatpush.msra.mxu0 %v915
    %996 = vmatpush.msra.mxu0 %v911
    %997 = vmatpush.msra.mxu0 %v907
    %998 = vmatpush.msra.mxu0 %v903
    %999 = vmatpush.msra.mxu0 %v899
    %1000 = vmatpush.msra.mxu0 %v895
    %1001 = vmatpush.msra.mxu0 %v891
    %1002 = vmatpush.msra.mxu0 %v887
    %1003 = vmatpush.msra.mxu0 %v883
    %1004 = vmatpush.msra.mxu0 %v879
    %1005 = vmatpush.msra.mxu0 %v875
    %1006 = vmatpush.msra.mxu0 %v871
    %1007 = vmatpush.msra.mxu0 %v867
    %1008 = vmatmul.f32.gmra.mxu0 0.0
    %v1009 = vpop.f32.mrf.mxu0
    %v1010 = vadd.f32 0.0, %v1009
    %1011 = vdwg.mxu0
    %v1012 = vadd.f32 %v928, %v950
    %v1013 = vadd.f32 %v929, %v970
    %v1014 = vadd.f32 %v930, %v990
    %v1015 = vadd.f32 %v931, %v1010
    %v1016 = vxor.u32 %v1012, 2147483648
    %v1017 = vxor.u32 %v1013, 2147483648
    %v1018 = vxor.u32 %v1014, 2147483648
    %v1019 = vmul.f32 %v1016, 1.442695
    %v1020 = vpow.pop %v1019
    %v1021 = vmul.f32 %v1017, 1.442695
    %v1022 = vpow.pop %v1021
    %v1023 = vmul.f32 %v1018, 1.442695
    %v1024 = vpow.pop %v1023
    %v1025 = vadd.f32 %v1020, 1.0
    %v1026 = vadd.f32 %v1022, 1.0
    %v1027 = vadd.f32 %v1024, 1.0
    %v1028 = vrcp.pop %v1025
    %v1029 = vmul.f32 %v1025, %v1028
    %v1030 = vsub.f32 1.0, %v1029
    %v1031 = vmul.f32 %v1028, %v1030
    %v1032 = vadd.f32 %v1028, %v1031
    %vm1033 = vweird.f32 %v1025
    %vm1034 = vweird.f32 %v1028
    %vm1035 = vmor %vm1033, %vm1034
    %v1036 = vsel %vm1035, %v1028, %v1032
    %v1037 = vand.u32 2147483647, %v1025
    %vm1038 = vcmp.eq.f32.partialorder %v1037, 8.507059e+37
    %v1039 = vand.u32 %v1025, 2147483648
    %v1040 = vor.u32 1.1754944e-38, %v1039
    %v1041 = vsel %vm1038, %v1040, %v1036
    %v1042 = vmul.f32 1.0, %v1041
    %v1043 = vrcp.pop %v1026
    %v1044 = vmul.f32 %v1026, %v1043
    %v1045 = vsub.f32 1.0, %v1044
    %v1046 = vmul.f32 %v1043, %v1045
    %v1047 = vadd.f32 %v1043, %v1046
    %vm1048 = vweird.f32 %v1026
    %vm1049 = vweird.f32 %v1043
    %vm1050 = vmor %vm1048, %vm1049
    %v1051 = vsel %vm1050, %v1043, %v1047
    %v1052 = vand.u32 2147483647, %v1026
    %vm1053 = vcmp.eq.f32.partialorder %v1052, 8.507059e+37
    %v1054 = vand.u32 %v1026, 2147483648
    %v1055 = vor.u32 1.1754944e-38, %v1054
    %v1056 = vsel %vm1053, %v1055, %v1051
    %v1057 = vmul.f32 1.0, %v1056
    %v1058 = vrcp.pop %v1027
    %v1059 = vmul.f32 %v1027, %v1058
    %v1060 = vsub.f32 1.0, %v1059
    %v1061 = vmul.f32 %v1058, %v1060
    %v1062 = vadd.f32 %v1058, %v1061
    %vm1063 = vweird.f32 %v1027
    %vm1064 = vweird.f32 %v1058
    %vm1065 = vmor %vm1063, %vm1064
    %v1066 = vsel %vm1065, %v1058, %v1062
    %v1067 = vand.u32 2147483647, %v1027
    %vm1068 = vcmp.eq.f32.partialorder %v1067, 8.507059e+37
    %v1069 = vand.u32 %v1027, 2147483648
    %v1070 = vor.u32 1.1754944e-38, %v1069
    %v1071 = vsel %vm1068, %v1070, %v1066
    %v1072 = vmul.f32 1.0, %v1071
    %v1073 = vtanh.pop %v1015
    %v1074 = vmul.f32 %v1057, 0.0
    %v1075 = vmul.f32 %v1042, %v1073
    %v1076 = vadd.f32 %v1074, %v1075
    %v1077 = vtanh.pop %v1076
    %v1078 = vmul.f32 %v1072, %v1077
    %vm1079 = vcmp.gt.s32.totalorder %v133, 0
    %v1080 = vsel %vm1079, %v1076, 0.0
    %v1081 = vsel %vm1079, %v1078, 0.0
    %1082 = vst [vmem:[#allocation3] sm:$0xff] %v1081
    %v1083 = vld [vmem:[#allocation2 + $0x20] sm:$0xff]
    %v1084 = vld [vmem:[#allocation2 + $0x28] sm:$0xff]
    %v1085 = vld [vmem:[#allocation2 + $0x30] sm:$0xff]
    %v1086 = vld [vmem:[#allocation2 + $0x38] sm:$0xff]
    %1087 = vmatpush.msra.mxu0 %v924
    %1088 = vmatpush.msra.mxu0 %v920
    %1089 = vmatpush.msra.mxu0 %v916
    %1090 = vmatpush.msra.mxu0 %v912
    %1091 = vmatpush.msra.mxu0 %v908
    %1092 = vmatpush.msra.mxu0 %v904
    %1093 = vmatpush.msra.mxu0 %v900
    %1094 = vmatpush.msra.mxu0 %v896
    %1095 = vmatpush.msra.mxu0 %v892
    %1096 = vmatpush.msra.mxu0 %v888
    %1097 = vmatpush.msra.mxu0 %v884
    %1098 = vmatpush.msra.mxu0 %v880
    %1099 = vmatpush.msra.mxu0 %v876
    %1100 = vmatpush.msra.mxu0 %v872
    %1101 = vmatpush.msra.mxu0 %v868
    %1102 = vmatpush.msra.mxu0 %v864
    %1103 = vmatmul.f32.gmra.mxu0 %v1081
    %v1104 = vpop.f32.mrf.mxu0
    %v1105 = vadd.f32 0.0, %v1104
    %1106 = vdwg.mxu0
    %1107 = vmatpush.msra.mxu0 %v925
    %1108 = vmatpush.msra.mxu0 %v921
    %1109 = vmatpush.msra.mxu0 %v917
    %1110 = vmatpush.msra.mxu0 %v913
    %1111 = vmatpush.msra.mxu0 %v909
    %1112 = vmatpush.msra.mxu0 %v905
    %1113 = vmatpush.msra.mxu0 %v901
    %1114 = vmatpush.msra.mxu0 %v897
    %1115 = vmatpush.msra.mxu0 %v893
    %1116 = vmatpush.msra.mxu0 %v889
    %1117 = vmatpush.msra.mxu0 %v885
    %1118 = vmatpush.msra.mxu0 %v881
    %1119 = vmatpush.msra.mxu0 %v877
    %1120 = vmatpush.msra.mxu0 %v873
    %1121 = vmatpush.msra.mxu0 %v869
    %1122 = vmatpush.msra.mxu0 %v865
    %1123 = vmatmul.f32.gmra.mxu0 %v1081
    %v1124 = vpop.f32.mrf.mxu0
    %v1125 = vadd.f32 0.0, %v1124
    %1126 = vdwg.mxu0
    %1127 = vmatpush.msra.mxu0 %v926
    %1128 = vmatpush.msra.mxu0 %v922
    %1129 = vmatpush.msra.mxu0 %v918
    %1130 = vmatpush.msra.mxu0 %v914
    %1131 = vmatpush.msra.mxu0 %v910
    %1132 = vmatpush.msra.mxu0 %v906
    %1133 = vmatpush.msra.mxu0 %v902
    %1134 = vmatpush.msra.mxu0 %v898
    %1135 = vmatpush.msra.mxu0 %v894
    %1136 = vmatpush.msra.mxu0 %v890
    %1137 = vmatpush.msra.mxu0 %v886
    %1138 = vmatpush.msra.mxu0 %v882
    %1139 = vmatpush.msra.mxu0 %v878
    %1140 = vmatpush.msra.mxu0 %v874
    %1141 = vmatpush.msra.mxu0 %v870
    %1142 = vmatpush.msra.mxu0 %v866
    %1143 = vmatmul.f32.gmra.mxu0 %v1081
    %v1144 = vpop.f32.mrf.mxu0
    %v1145 = vadd.f32 0.0, %v1144
    %1146 = vdwg.mxu0
    %1147 = vmatpush.msra.mxu0 %v927
    %1148 = vmatpush.msra.mxu0 %v923
    %1149 = vmatpush.msra.mxu0 %v919
    %1150 = vmatpush.msra.mxu0 %v915
    %1151 = vmatpush.msra.mxu0 %v911
    %1152 = vmatpush.msra.mxu0 %v907
    %1153 = vmatpush.msra.mxu0 %v903
    %1154 = vmatpush.msra.mxu0 %v899
    %1155 = vmatpush.msra.mxu0 %v895
    %1156 = vmatpush.msra.mxu0 %v891
    %1157 = vmatpush.msra.mxu0 %v887
    %1158 = vmatpush.msra.mxu0 %v883
    %1159 = vmatpush.msra.mxu0 %v879
    %1160 = vmatpush.msra.mxu0 %v875
    %1161 = vmatpush.msra.mxu0 %v871
    %1162 = vmatpush.msra.mxu0 %v867
    %1163 = vmatmul.f32.gmra.mxu0 %v1081
    %v1164 = vpop.f32.mrf.mxu0
    %v1165 = vadd.f32 0.0, %v1164
    %1166 = vdwg.mxu0
    %v1167 = vadd.f32 %v1083, %v1105
    %v1168 = vadd.f32 %v1084, %v1125
    %v1169 = vadd.f32 %v1085, %v1145
    %v1170 = vadd.f32 %v1086, %v1165
    %v1171 = vxor.u32 %v1167, 2147483648
    %v1172 = vxor.u32 %v1168, 2147483648
    %v1173 = vxor.u32 %v1169, 2147483648
    %v1174 = vmul.f32 %v1171, 1.442695
    %v1175 = vpow.pop %v1174
    %v1176 = vmul.f32 %v1172, 1.442695
    %v1177 = vpow.pop %v1176
    %v1178 = vmul.f32 %v1173, 1.442695
    %v1179 = vpow.pop %v1178
    %v1180 = vadd.f32 %v1175, 1.0
    %v1181 = vadd.f32 %v1177, 1.0
    %v1182 = vadd.f32 %v1179, 1.0
    %v1183 = vrcp.pop %v1180
    %v1184 = vmul.f32 %v1180, %v1183
    %v1185 = vsub.f32 1.0, %v1184
    %v1186 = vmul.f32 %v1183, %v1185
    %v1187 = vadd.f32 %v1183, %v1186
    %vm1188 = vweird.f32 %v1180
    %vm1189 = vweird.f32 %v1183
    %vm1190 = vmor %vm1188, %vm1189
    %v1191 = vsel %vm1190, %v1183, %v1187
    %v1192 = vand.u32 2147483647, %v1180
    %vm1193 = vcmp.eq.f32.partialorder %v1192, 8.507059e+37
    %v1194 = vand.u32 %v1180, 2147483648
    %v1195 = vor.u32 1.1754944e-38, %v1194
    %v1196 = vsel %vm1193, %v1195, %v1191
    %v1197 = vmul.f32 1.0, %v1196
    %v1198 = vrcp.pop %v1181
    %v1199 = vmul.f32 %v1181, %v1198
    %v1200 = vsub.f32 1.0, %v1199
    %v1201 = vmul.f32 %v1198, %v1200
    %v1202 = vadd.f32 %v1198, %v1201
    %vm1203 = vweird.f32 %v1181
    %vm1204 = vweird.f32 %v1198
    %vm1205 = vmor %vm1203, %vm1204
    %v1206 = vsel %vm1205, %v1198, %v1202
    %v1207 = vand.u32 2147483647, %v1181
    %vm1208 = vcmp.eq.f32.partialorder %v1207, 8.507059e+37
    %v1209 = vand.u32 %v1181, 2147483648
    %v1210 = vor.u32 1.1754944e-38, %v1209
    %v1211 = vsel %vm1208, %v1210, %v1206
    %v1212 = vmul.f32 1.0, %v1211
    %v1213 = vrcp.pop %v1182
    %v1214 = vmul.f32 %v1182, %v1213
    %v1215 = vsub.f32 1.0, %v1214
    %v1216 = vmul.f32 %v1213, %v1215
    %v1217 = vadd.f32 %v1213, %v1216
    %vm1218 = vweird.f32 %v1182
    %vm1219 = vweird.f32 %v1213
    %vm1220 = vmor %vm1218, %vm1219
    %v1221 = vsel %vm1220, %v1213, %v1217
    %v1222 = vand.u32 2147483647, %v1182
    %vm1223 = vcmp.eq.f32.partialorder %v1222, 8.507059e+37
    %v1224 = vand.u32 %v1182, 2147483648
    %v1225 = vor.u32 1.1754944e-38, %v1224
    %v1226 = vsel %vm1223, %v1225, %v1221
    %v1227 = vmul.f32 1.0, %v1226
    %v1228 = vtanh.pop %v1170
    %v1229 = vmul.f32 %v1212, %v1080
    %v1230 = vmul.f32 %v1197, %v1228
    %v1231 = vadd.f32 %v1229, %v1230
    %v1232 = vtanh.pop %v1231
    %v1233 = vmul.f32 %v1227, %v1232
    %vm1234 = vcmp.gt.s32.totalorder %v133, 1
    %v1235 = vsel %vm1234, %v1231, %v1080
    %v1236 = vsel %vm1234, %v1233, %v1081
    %1237 = vst [vmem:[#allocation3 + $0x8] sm:$0xff] %v1236
    %v1238 = vld [vmem:[#allocation2 + $0x40] sm:$0xff]
    %v1239 = vld [vmem:[#allocation2 + $0x48] sm:$0xff]
    %v1240 = vld [vmem:[#allocation2 + $0x50] sm:$0xff]
    %v1241 = vld [vmem:[#allocation2 + $0x58] sm:$0xff]
    %1242 = vmatpush.msra.mxu0 %v924
    %1243 = vmatpush.msra.mxu0 %v920
    %1244 = vmatpush.msra.mxu0 %v916
    %1245 = vmatpush.msra.mxu0 %v912
    %1246 = vmatpush.msra.mxu0 %v908
    %1247 = vmatpush.msra.mxu0 %v904
    %1248 = vmatpush.msra.mxu0 %v900
    %1249 = vmatpush.msra.mxu0 %v896
    %1250 = vmatpush.msra.mxu0 %v892
    %1251 = vmatpush.msra.mxu0 %v888
    %1252 = vmatpush.msra.mxu0 %v884
    %1253 = vmatpush.msra.mxu0 %v880
    %1254 = vmatpush.msra.mxu0 %v876
    %1255 = vmatpush.msra.mxu0 %v872
    %1256 = vmatpush.msra.mxu0 %v868
    %1257 = vmatpush.msra.mxu0 %v864
    %1258 = vmatmul.f32.gmra.mxu0 %v1236
    %v1259 = vpop.f32.mrf.mxu0
    %v1260 = vadd.f32 0.0, %v1259
    %1261 = vdwg.mxu0
    %1262 = vmatpush.msra.mxu0 %v925
    %1263 = vmatpush.msra.mxu0 %v921
    %1264 = vmatpush.msra.mxu0 %v917
    %1265 = vmatpush.msra.mxu0 %v913
    %1266 = vmatpush.msra.mxu0 %v909
    %1267 = vmatpush.msra.mxu0 %v905
    %1268 = vmatpush.msra.mxu0 %v901
    %1269 = vmatpush.msra.mxu0 %v897
    %1270 = vmatpush.msra.mxu0 %v893
    %1271 = vmatpush.msra.mxu0 %v889
    %1272 = vmatpush.msra.mxu0 %v885
    %1273 = vmatpush.msra.mxu0 %v881
    %1274 = vmatpush.msra.mxu0 %v877
    %1275 = vmatpush.msra.mxu0 %v873
    %1276 = vmatpush.msra.mxu0 %v869
    %1277 = vmatpush.msra.mxu0 %v865
    %1278 = vmatmul.f32.gmra.mxu0 %v1236
    %v1279 = vpop.f32.mrf.mxu0
    %v1280 = vadd.f32 0.0, %v1279
    %1281 = vdwg.mxu0
    %1282 = vmatpush.msra.mxu0 %v926
    %1283 = vmatpush.msra.mxu0 %v922
    %1284 = vmatpush.msra.mxu0 %v918
    %1285 = vmatpush.msra.mxu0 %v914
    %1286 = vmatpush.msra.mxu0 %v910
    %1287 = vmatpush.msra.mxu0 %v906
    %1288 = vmatpush.msra.mxu0 %v902
    %1289 = vmatpush.msra.mxu0 %v898
    %1290 = vmatpush.msra.mxu0 %v894
    %1291 = vmatpush.msra.mxu0 %v890
    %1292 = vmatpush.msra.mxu0 %v886
    %1293 = vmatpush.msra.mxu0 %v882
    %1294 = vmatpush.msra.mxu0 %v878
    %1295 = vmatpush.msra.mxu0 %v874
    %1296 = vmatpush.msra.mxu0 %v870
    %1297 = vmatpush.msra.mxu0 %v866
    %1298 = vmatmul.f32.gmra.mxu0 %v1236
    %v1299 = vpop.f32.mrf.mxu0
    %v1300 = vadd.f32 0.0, %v1299
    %1301 = vdwg.mxu0
    %1302 = vmatpush.msra.mxu0 %v927
    %1303 = vmatpush.msra.mxu0 %v923
    %1304 = vmatpush.msra.mxu0 %v919
    %1305 = vmatpush.msra.mxu0 %v915
    %1306 = vmatpush.msra.mxu0 %v911
    %1307 = vmatpush.msra.mxu0 %v907
    %1308 = vmatpush.msra.mxu0 %v903
    %1309 = vmatpush.msra.mxu0 %v899
    %1310 = vmatpush.msra.mxu0 %v895
    %1311 = vmatpush.msra.mxu0 %v891
    %1312 = vmatpush.msra.mxu0 %v887
    %1313 = vmatpush.msra.mxu0 %v883
    %1314 = vmatpush.msra.mxu0 %v879
    %1315 = vmatpush.msra.mxu0 %v875
    %1316 = vmatpush.msra.mxu0 %v871
    %1317 = vmatpush.msra.mxu0 %v867
    %1318 = vmatmul.f32.gmra.mxu0 %v1236
    %v1319 = vpop.f32.mrf.mxu0
    %v1320 = vadd.f32 0.0, %v1319
    %1321 = vdwg.mxu0
    %v1322 = vadd.f32 %v1238, %v1260
    %v1323 = vadd.f32 %v1239, %v1280
    %v1324 = vadd.f32 %v1240, %v1300
    %v1325 = vadd.f32 %v1241, %v1320
    %v1326 = vxor.u32 %v1322, 2147483648
    %v1327 = vxor.u32 %v1323, 2147483648
    %v1328 = vxor.u32 %v1324, 2147483648
    %v1329 = vmul.f32 %v1326, 1.442695
    %v1330 = vpow.pop %v1329
    %v1331 = vmul.f32 %v1327, 1.442695
    %v1332 = vpow.pop %v1331
    %v1333 = vmul.f32 %v1328, 1.442695
    %v1334 = vpow.pop %v1333
    %v1335 = vadd.f32 %v1330, 1.0
    %v1336 = vadd.f32 %v1332, 1.0
    %v1337 = vadd.f32 %v1334, 1.0
    %v1338 = vrcp.pop %v1335
    %v1339 = vmul.f32 %v1335, %v1338
    %v1340 = vsub.f32 1.0, %v1339
    %v1341 = vmul.f32 %v1338, %v1340
    %v1342 = vadd.f32 %v1338, %v1341
    %vm1343 = vweird.f32 %v1335
    %vm1344 = vweird.f32 %v1338
    %vm1345 = vmor %vm1343, %vm1344
    %v1346 = vsel %vm1345, %v1338, %v1342
    %v1347 = vand.u32 2147483647, %v1335
    %vm1348 = vcmp.eq.f32.partialorder %v1347, 8.507059e+37
    %v1349 = vand.u32 %v1335, 2147483648
    %v1350 = vor.u32 1.1754944e-38, %v1349
    %v1351 = vsel %vm1348, %v1350, %v1346
    %v1352 = vmul.f32 1.0, %v1351
    %v1353 = vrcp.pop %v1336
    %v1354 = vmul.f32 %v1336, %v1353
    %v1355 = vsub.f32 1.0, %v1354
    %v1356 = vmul.f32 %v1353, %v1355
    %v1357 = vadd.f32 %v1353, %v1356
    %vm1358 = vweird.f32 %v1336
    %vm1359 = vweird.f32 %v1353
    %vm1360 = vmor %vm1358, %vm1359
    %v1361 = vsel %vm1360, %v1353, %v1357
    %v1362 = vand.u32 2147483647, %v1336
    %vm1363 = vcmp.eq.f32.partialorder %v1362, 8.507059e+37
    %v1364 = vand.u32 %v1336, 2147483648
    %v1365 = vor.u32 1.1754944e-38, %v1364
    %v1366 = vsel %vm1363, %v1365, %v1361
    %v1367 = vmul.f32 1.0, %v1366
    %v1368 = vrcp.pop %v1337
    %v1369 = vmul.f32 %v1337, %v1368
    %v1370 = vsub.f32 1.0, %v1369
    %v1371 = vmul.f32 %v1368, %v1370
    %v1372 = vadd.f32 %v1368, %v1371
    %vm1373 = vweird.f32 %v1337
    %vm1374 = vweird.f32 %v1368
    %vm1375 = vmor %vm1373, %vm1374
    %v1376 = vsel %vm1375, %v1368, %v1372
    %v1377 = vand.u32 2147483647, %v1337
    %vm1378 = vcmp.eq.f32.partialorder %v1377, 8.507059e+37
    %v1379 = vand.u32 %v1337, 2147483648
    %v1380 = vor.u32 1.1754944e-38, %v1379
    %v1381 = vsel %vm1378, %v1380, %v1376
    %v1382 = vmul.f32 1.0, %v1381
    %v1383 = vtanh.pop %v1325
    %v1384 = vmul.f32 %v1367, %v1235
    %v1385 = vmul.f32 %v1352, %v1383
    %v1386 = vadd.f32 %v1384, %v1385
    %v1387 = vtanh.pop %v1386
    %v1388 = vmul.f32 %v1382, %v1387
    %vm1389 = vcmp.gt.s32.totalorder %v133, 2
    %v1390 = vsel %vm1389, %v1386, %v1235
    %v1391 = vsel %vm1389, %v1388, %v1236
    %1392 = vst [vmem:[#allocation3 + $0x10] sm:$0xff] %v1391
    %v1393 = vld [vmem:[#allocation2 + $0x60] sm:$0xff]
    %v1394 = vld [vmem:[#allocation2 + $0x68] sm:$0xff]
    %v1395 = vld [vmem:[#allocation2 + $0x70] sm:$0xff]
    %v1396 = vld [vmem:[#allocation2 + $0x78] sm:$0xff]
    %1397 = vmatpush.msra.mxu0 %v924
    %1398 = vmatpush.msra.mxu0 %v920
    %1399 = vmatpush.msra.mxu0 %v916
    %1400 = vmatpush.msra.mxu0 %v912
    %1401 = vmatpush.msra.mxu0 %v908
    %1402 = vmatpush.msra.mxu0 %v904
    %1403 = vmatpush.msra.mxu0 %v900
    %1404 = vmatpush.msra.mxu0 %v896
    %1405 = vmatpush.msra.mxu0 %v892
    %1406 = vmatpush.msra.mxu0 %v888
    %1407 = vmatpush.msra.mxu0 %v884
    %1408 = vmatpush.msra.mxu0 %v880
    %1409 = vmatpush.msra.mxu0 %v876
    %1410 = vmatpush.msra.mxu0 %v872
    %1411 = vmatpush.msra.mxu0 %v868
    %1412 = vmatpush.msra.mxu0 %v864
    %1413 = vmatmul.f32.gmra.mxu0 %v1391
    %v1414 = vpop.f32.mrf.mxu0
    %v1415 = vadd.f32 0.0, %v1414
    %1416 = vdwg.mxu0
    %1417 = vmatpush.msra.mxu0 %v925
    %1418 = vmatpush.msra.mxu0 %v921
    %1419 = vmatpush.msra.mxu0 %v917
    %1420 = vmatpush.msra.mxu0 %v913
    %1421 = vmatpush.msra.mxu0 %v909
    %1422 = vmatpush.msra.mxu0 %v905
    %1423 = vmatpush.msra.mxu0 %v901
    %1424 = vmatpush.msra.mxu0 %v897
    %1425 = vmatpush.msra.mxu0 %v893
    %1426 = vmatpush.msra.mxu0 %v889
    %1427 = vmatpush.msra.mxu0 %v885
    %1428 = vmatpush.msra.mxu0 %v881
    %1429 = vmatpush.msra.mxu0 %v877
    %1430 = vmatpush.msra.mxu0 %v873
    %1431 = vmatpush.msra.mxu0 %v869
    %1432 = vmatpush.msra.mxu0 %v865
    %1433 = vmatmul.f32.gmra.mxu0 %v1391
    %v1434 = vpop.f32.mrf.mxu0
    %v1435 = vadd.f32 0.0, %v1434
    %1436 = vdwg.mxu0
    %1437 = vmatpush.msra.mxu0 %v926
    %1438 = vmatpush.msra.mxu0 %v922
    %1439 = vmatpush.msra.mxu0 %v918
    %1440 = vmatpush.msra.mxu0 %v914
    %1441 = vmatpush.msra.mxu0 %v910
    %1442 = vmatpush.msra.mxu0 %v906
    %1443 = vmatpush.msra.mxu0 %v902
    %1444 = vmatpush.msra.mxu0 %v898
    %1445 = vmatpush.msra.mxu0 %v894
    %1446 = vmatpush.msra.mxu0 %v890
    %1447 = vmatpush.msra.mxu0 %v886
    %1448 = vmatpush.msra.mxu0 %v882
    %1449 = vmatpush.msra.mxu0 %v878
    %1450 = vmatpush.msra.mxu0 %v874
    %1451 = vmatpush.msra.mxu0 %v870
    %1452 = vmatpush.msra.mxu0 %v866
    %1453 = vmatmul.f32.gmra.mxu0 %v1391
    %v1454 = vpop.f32.mrf.mxu0
    %v1455 = vadd.f32 0.0, %v1454
    %1456 = vdwg.mxu0
    %1457 = vmatpush.msra.mxu0 %v927
    %1458 = vmatpush.msra.mxu0 %v923
    %1459 = vmatpush.msra.mxu0 %v919
    %1460 = vmatpush.msra.mxu0 %v915
    %1461 = vmatpush.msra.mxu0 %v911
    %1462 = vmatpush.msra.mxu0 %v907
    %1463 = vmatpush.msra.mxu0 %v903
    %1464 = vmatpush.msra.mxu0 %v899
    %1465 = vmatpush.msra.mxu0 %v895
    %1466 = vmatpush.msra.mxu0 %v891
    %1467 = vmatpush.msra.mxu0 %v887
    %1468 = vmatpush.msra.mxu0 %v883
    %1469 = vmatpush.msra.mxu0 %v879
    %1470 = vmatpush.msra.mxu0 %v875
    %1471 = vmatpush.msra.mxu0 %v871
    %1472 = vmatpush.msra.mxu0 %v867
    %1473 = vmatmul.f32.gmra.mxu0 %v1391
    %v1474 = vpop.f32.mrf.mxu0
    %v1475 = vadd.f32 0.0, %v1474
    %1476 = vdwg.mxu0
    %v1477 = vadd.f32 %v1393, %v1415
    %v1478 = vadd.f32 %v1394, %v1435
    %v1479 = vadd.f32 %v1395, %v1455
    %v1480 = vadd.f32 %v1396, %v1475
    %v1481 = vxor.u32 %v1477, 2147483648
    %v1482 = vxor.u32 %v1478, 2147483648
    %v1483 = vxor.u32 %v1479, 2147483648
    %v1484 = vmul.f32 %v1481, 1.442695
    %v1485 = vpow.pop %v1484
    %v1486 = vmul.f32 %v1482, 1.442695
    %v1487 = vpow.pop %v1486
    %v1488 = vmul.f32 %v1483, 1.442695
    %v1489 = vpow.pop %v1488
    %v1490 = vadd.f32 %v1485, 1.0
    %v1491 = vadd.f32 %v1487, 1.0
    %v1492 = vadd.f32 %v1489, 1.0
    %v1493 = vrcp.pop %v1490
    %v1494 = vmul.f32 %v1490, %v1493
    %v1495 = vsub.f32 1.0, %v1494
    %v1496 = vmul.f32 %v1493, %v1495
    %v1497 = vadd.f32 %v1493, %v1496
    %vm1498 = vweird.f32 %v1490
    %vm1499 = vweird.f32 %v1493
    %vm1500 = vmor %vm1498, %vm1499
    %v1501 = vsel %vm1500, %v1493, %v1497
    %v1502 = vand.u32 2147483647, %v1490
    %vm1503 = vcmp.eq.f32.partialorder %v1502, 8.507059e+37
    %v1504 = vand.u32 %v1490, 2147483648
    %v1505 = vor.u32 1.1754944e-38, %v1504
    %v1506 = vsel %vm1503, %v1505, %v1501
    %v1507 = vmul.f32 1.0, %v1506
    %v1508 = vrcp.pop %v1491
    %v1509 = vmul.f32 %v1491, %v1508
    %v1510 = vsub.f32 1.0, %v1509
    %v1511 = vmul.f32 %v1508, %v1510
    %v1512 = vadd.f32 %v1508, %v1511
    %vm1513 = vweird.f32 %v1491
    %vm1514 = vweird.f32 %v1508
    %vm1515 = vmor %vm1513, %vm1514
    %v1516 = vsel %vm1515, %v1508, %v1512
    %v1517 = vand.u32 2147483647, %v1491
    %vm1518 = vcmp.eq.f32.partialorder %v1517, 8.507059e+37
    %v1519 = vand.u32 %v1491, 2147483648
    %v1520 = vor.u32 1.1754944e-38, %v1519
    %v1521 = vsel %vm1518, %v1520, %v1516
    %v1522 = vmul.f32 1.0, %v1521
    %v1523 = vrcp.pop %v1492
    %v1524 = vmul.f32 %v1492, %v1523
    %v1525 = vsub.f32 1.0, %v1524
    %v1526 = vmul.f32 %v1523, %v1525
    %v1527 = vadd.f32 %v1523, %v1526
    %vm1528 = vweird.f32 %v1492
    %vm1529 = vweird.f32 %v1523
    %vm1530 = vmor %vm1528, %vm1529
    %v1531 = vsel %vm1530, %v1523, %v1527
    %v1532 = vand.u32 2147483647, %v1492
    %vm1533 = vcmp.eq.f32.partialorder %v1532, 8.507059e+37
    %v1534 = vand.u32 %v1492, 2147483648
    %v1535 = vor.u32 1.1754944e-38, %v1534
    %v1536 = vsel %vm1533, %v1535, %v1531
    %v1537 = vmul.f32 1.0, %v1536
    %v1538 = vtanh.pop %v1480
    %v1539 = vmul.f32 %v1522, %v1390
    %v1540 = vmul.f32 %v1507, %v1538
    %v1541 = vadd.f32 %v1539, %v1540
    %v1542 = vtanh.pop %v1541
    %v1543 = vmul.f32 %v1537, %v1542
    %vm1544 = vcmp.gt.s32.totalorder %v133, 3
    %v1545 = vsel %vm1544, %v1541, %v1390
    %v1546 = vsel %vm1544, %v1543, %v1391
    %1547 = vst [vmem:[#allocation3 + $0x18] sm:$0xff] %v1546
    %v1548 = vld [vmem:[#allocation2 + $0x80] sm:$0xff]
    %v1549 = vld [vmem:[#allocation2 + $0x88] sm:$0xff]
    %v1550 = vld [vmem:[#allocation2 + $0x90] sm:$0xff]
    %v1551 = vld [vmem:[#allocation2 + $0x98] sm:$0xff]
    %1552 = vmatpush.msra.mxu0 %v924
    %1553 = vmatpush.msra.mxu0 %v920
    %1554 = vmatpush.msra.mxu0 %v916
    %1555 = vmatpush.msra.mxu0 %v912
    %1556 = vmatpush.msra.mxu0 %v908
    %1557 = vmatpush.msra.mxu0 %v904
    %1558 = vmatpush.msra.mxu0 %v900
    %1559 = vmatpush.msra.mxu0 %v896
    %1560 = vmatpush.msra.mxu0 %v892
    %1561 = vmatpush.msra.mxu0 %v888
    %1562 = vmatpush.msra.mxu0 %v884
    %1563 = vmatpush.msra.mxu0 %v880
    %1564 = vmatpush.msra.mxu0 %v876
    %1565 = vmatpush.msra.mxu0 %v872
    %1566 = vmatpush.msra.mxu0 %v868
    %1567 = vmatpush.msra.mxu0 %v864
    %1568 = vmatmul.f32.gmra.mxu0 %v1546
    %v1569 = vpop.f32.mrf.mxu0
    %v1570 = vadd.f32 0.0, %v1569
    %1571 = vdwg.mxu0
    %1572 = vmatpush.msra.mxu0 %v925
    %1573 = vmatpush.msra.mxu0 %v921
    %1574 = vmatpush.msra.mxu0 %v917
    %1575 = vmatpush.msra.mxu0 %v913
    %1576 = vmatpush.msra.mxu0 %v909
    %1577 = vmatpush.msra.mxu0 %v905
    %1578 = vmatpush.msra.mxu0 %v901
    %1579 = vmatpush.msra.mxu0 %v897
    %1580 = vmatpush.msra.mxu0 %v893
    %1581 = vmatpush.msra.mxu0 %v889
    %1582 = vmatpush.msra.mxu0 %v885
    %1583 = vmatpush.msra.mxu0 %v881
    %1584 = vmatpush.msra.mxu0 %v877
    %1585 = vmatpush.msra.mxu0 %v873
    %1586 = vmatpush.msra.mxu0 %v869
    %1587 = vmatpush.msra.mxu0 %v865
    %1588 = vmatmul.f32.gmra.mxu0 %v1546
    %v1589 = vpop.f32.mrf.mxu0
    %v1590 = vadd.f32 0.0, %v1589
    %1591 = vdwg.mxu0
    %1592 = vmatpush.msra.mxu0 %v926
    %1593 = vmatpush.msra.mxu0 %v922
    %1594 = vmatpush.msra.mxu0 %v918
    %1595 = vmatpush.msra.mxu0 %v914
    %1596 = vmatpush.msra.mxu0 %v910
    %1597 = vmatpush.msra.mxu0 %v906
    %1598 = vmatpush.msra.mxu0 %v902
    %1599 = vmatpush.msra.mxu0 %v898
    %1600 = vmatpush.msra.mxu0 %v894
    %1601 = vmatpush.msra.mxu0 %v890
    %1602 = vmatpush.msra.mxu0 %v886
    %1603 = vmatpush.msra.mxu0 %v882
    %1604 = vmatpush.msra.mxu0 %v878
    %1605 = vmatpush.msra.mxu0 %v874
    %1606 = vmatpush.msra.mxu0 %v870
    %1607 = vmatpush.msra.mxu0 %v866
    %1608 = vmatmul.f32.gmra.mxu0 %v1546
    %v1609 = vpop.f32.mrf.mxu0
    %v1610 = vadd.f32 0.0, %v1609
    %1611 = vdwg.mxu0
    %1612 = vmatpush.msra.mxu0 %v927
    %1613 = vmatpush.msra.mxu0 %v923
    %1614 = vmatpush.msra.mxu0 %v919
    %1615 = vmatpush.msra.mxu0 %v915
    %1616 = vmatpush.msra.mxu0 %v911
    %1617 = vmatpush.msra.mxu0 %v907
    %1618 = vmatpush.msra.mxu0 %v903
    %1619 = vmatpush.msra.mxu0 %v899
    %1620 = vmatpush.msra.mxu0 %v895
    %1621 = vmatpush.msra.mxu0 %v891
    %1622 = vmatpush.msra.mxu0 %v887
    %1623 = vmatpush.msra.mxu0 %v883
    %1624 = vmatpush.msra.mxu0 %v879
    %1625 = vmatpush.msra.mxu0 %v875
    %1626 = vmatpush.msra.mxu0 %v871
    %1627 = vmatpush.msra.mxu0 %v867
    %1628 = vmatmul.f32.gmra.mxu0 %v1546
    %v1629 = vpop.f32.mrf.mxu0
    %v1630 = vadd.f32 0.0, %v1629
    %1631 = vdwg.mxu0
    %v1632 = vadd.f32 %v1548, %v1570
    %v1633 = vadd.f32 %v1549, %v1590
    %v1634 = vadd.f32 %v1550, %v1610
    %v1635 = vadd.f32 %v1551, %v1630
    %v1636 = vxor.u32 %v1632, 2147483648
    %v1637 = vxor.u32 %v1633, 2147483648
    %v1638 = vxor.u32 %v1634, 2147483648
    %v1639 = vmul.f32 %v1636, 1.442695
    %v1640 = vpow.pop %v1639
    %v1641 = vmul.f32 %v1637, 1.442695
    %v1642 = vpow.pop %v1641
    %v1643 = vmul.f32 %v1638, 1.442695
    %v1644 = vpow.pop %v1643
    %v1645 = vadd.f32 %v1640, 1.0
    %v1646 = vadd.f32 %v1642, 1.0
    %v1647 = vadd.f32 %v1644, 1.0
    %v1648 = vrcp.pop %v1645
    %v1649 = vmul.f32 %v1645, %v1648
    %v1650 = vsub.f32 1.0, %v1649
    %v1651 = vmul.f32 %v1648, %v1650
    %v1652 = vadd.f32 %v1648, %v1651
    %vm1653 = vweird.f32 %v1645
    %vm1654 = vweird.f32 %v1648
    %vm1655 = vmor %vm1653, %vm1654
    %v1656 = vsel %vm1655, %v1648, %v1652
    %v1657 = vand.u32 2147483647, %v1645
    %vm1658 = vcmp.eq.f32.partialorder %v1657, 8.507059e+37
    %v1659 = vand.u32 %v1645, 2147483648
    %v1660 = vor.u32 1.1754944e-38, %v1659
    %v1661 = vsel %vm1658, %v1660, %v1656
    %v1662 = vmul.f32 1.0, %v1661
    %v1663 = vrcp.pop %v1646
    %v1664 = vmul.f32 %v1646, %v1663
    %v1665 = vsub.f32 1.0, %v1664
    %v1666 = vmul.f32 %v1663, %v1665
    %v1667 = vadd.f32 %v1663, %v1666
    %vm1668 = vweird.f32 %v1646
    %vm1669 = vweird.f32 %v1663
    %vm1670 = vmor %vm1668, %vm1669
    %v1671 = vsel %vm1670, %v1663, %v1667
    %v1672 = vand.u32 2147483647, %v1646
    %vm1673 = vcmp.eq.f32.partialorder %v1672, 8.507059e+37
    %v1674 = vand.u32 %v1646, 2147483648
    %v1675 = vor.u32 1.1754944e-38, %v1674
    %v1676 = vsel %vm1673, %v1675, %v1671
    %v1677 = vmul.f32 1.0, %v1676
    %v1678 = vrcp.pop %v1647
    %v1679 = vmul.f32 %v1647, %v1678
    %v1680 = vsub.f32 1.0, %v1679
    %v1681 = vmul.f32 %v1678, %v1680
    %v1682 = vadd.f32 %v1678, %v1681
    %vm1683 = vweird.f32 %v1647
    %vm1684 = vweird.f32 %v1678
    %vm1685 = vmor %vm1683, %vm1684
    %v1686 = vsel %vm1685, %v1678, %v1682
    %v1687 = vand.u32 2147483647, %v1647
    %vm1688 = vcmp.eq.f32.partialorder %v1687, 8.507059e+37
    %v1689 = vand.u32 %v1647, 2147483648
    %v1690 = vor.u32 1.1754944e-38, %v1689
    %v1691 = vsel %vm1688, %v1690, %v1686
    %v1692 = vmul.f32 1.0, %v1691
    %v1693 = vtanh.pop %v1635
    %v1694 = vmul.f32 %v1677, %v1545
    %v1695 = vmul.f32 %v1662, %v1693
    %v1696 = vadd.f32 %v1694, %v1695
    %v1697 = vtanh.pop %v1696
    %v1698 = vmul.f32 %v1692, %v1697
    %vm1699 = vcmp.gt.s32.totalorder %v133, 4
    %v1700 = vsel %vm1699, %v1696, %v1545
    %v1701 = vsel %vm1699, %v1698, %v1546
    %1702 = vst [vmem:[#allocation3 + $0x20] sm:$0xff] %v1701
    %v1703 = vld [vmem:[#allocation2 + $0xa0] sm:$0xff]
    %v1704 = vld [vmem:[#allocation2 + $0xa8] sm:$0xff]
    %v1705 = vld [vmem:[#allocation2 + $0xb0] sm:$0xff]
    %v1706 = vld [vmem:[#allocation2 + $0xb8] sm:$0xff]
    %1707 = vmatpush.msra.mxu0 %v924
    %1708 = vmatpush.msra.mxu0 %v920
    %1709 = vmatpush.msra.mxu0 %v916
    %1710 = vmatpush.msra.mxu0 %v912
    %1711 = vmatpush.msra.mxu0 %v908
    %1712 = vmatpush.msra.mxu0 %v904
    %1713 = vmatpush.msra.mxu0 %v900
    %1714 = vmatpush.msra.mxu0 %v896
    %1715 = vmatpush.msra.mxu0 %v892
    %1716 = vmatpush.msra.mxu0 %v888
    %1717 = vmatpush.msra.mxu0 %v884
    %1718 = vmatpush.msra.mxu0 %v880
    %1719 = vmatpush.msra.mxu0 %v876
    %1720 = vmatpush.msra.mxu0 %v872
    %1721 = vmatpush.msra.mxu0 %v868
    %1722 = vmatpush.msra.mxu0 %v864
    %1723 = vmatmul.f32.gmra.mxu0 %v1701
    %v1724 = vpop.f32.mrf.mxu0
    %v1725 = vadd.f32 0.0, %v1724
    %1726 = vdwg.mxu0
    %1727 = vmatpush.msra.mxu0 %v925
    %1728 = vmatpush.msra.mxu0 %v921
    %1729 = vmatpush.msra.mxu0 %v917
    %1730 = vmatpush.msra.mxu0 %v913
    %1731 = vmatpush.msra.mxu0 %v909
    %1732 = vmatpush.msra.mxu0 %v905
    %1733 = vmatpush.msra.mxu0 %v901
    %1734 = vmatpush.msra.mxu0 %v897
    %1735 = vmatpush.msra.mxu0 %v893
    %1736 = vmatpush.msra.mxu0 %v889
    %1737 = vmatpush.msra.mxu0 %v885
    %1738 = vmatpush.msra.mxu0 %v881
    %1739 = vmatpush.msra.mxu0 %v877
    %1740 = vmatpush.msra.mxu0 %v873
    %1741 = vmatpush.msra.mxu0 %v869
    %1742 = vmatpush.msra.mxu0 %v865
    %1743 = vmatmul.f32.gmra.mxu0 %v1701
    %v1744 = vpop.f32.mrf.mxu0
    %v1745 = vadd.f32 0.0, %v1744
    %1746 = vdwg.mxu0
    %1747 = vmatpush.msra.mxu0 %v926
    %1748 = vmatpush.msra.mxu0 %v922
    %1749 = vmatpush.msra.mxu0 %v918
    %1750 = vmatpush.msra.mxu0 %v914
    %1751 = vmatpush.msra.mxu0 %v910
    %1752 = vmatpush.msra.mxu0 %v906
    %1753 = vmatpush.msra.mxu0 %v902
    %1754 = vmatpush.msra.mxu0 %v898
    %1755 = vmatpush.msra.mxu0 %v894
    %1756 = vmatpush.msra.mxu0 %v890
    %1757 = vmatpush.msra.mxu0 %v886
    %1758 = vmatpush.msra.mxu0 %v882
    %1759 = vmatpush.msra.mxu0 %v878
    %1760 = vmatpush.msra.mxu0 %v874
    %1761 = vmatpush.msra.mxu0 %v870
    %1762 = vmatpush.msra.mxu0 %v866
    %1763 = vmatmul.f32.gmra.mxu0 %v1701
    %v1764 = vpop.f32.mrf.mxu0
    %v1765 = vadd.f32 0.0, %v1764
    %1766 = vdwg.mxu0
    %1767 = vmatpush.msra.mxu0 %v927
    %1768 = vmatpush.msra.mxu0 %v923
    %1769 = vmatpush.msra.mxu0 %v919
    %1770 = vmatpush.msra.mxu0 %v915
    %1771 = vmatpush.msra.mxu0 %v911
    %1772 = vmatpush.msra.mxu0 %v907
    %1773 = vmatpush.msra.mxu0 %v903
    %1774 = vmatpush.msra.mxu0 %v899
    %1775 = vmatpush.msra.mxu0 %v895
    %1776 = vmatpush.msra.mxu0 %v891
    %1777 = vmatpush.msra.mxu0 %v887
    %1778 = vmatpush.msra.mxu0 %v883
    %1779 = vmatpush.msra.mxu0 %v879
    %1780 = vmatpush.msra.mxu0 %v875
    %1781 = vmatpush.msra.mxu0 %v871
    %1782 = vmatpush.msra.mxu0 %v867
    %1783 = vmatmul.f32.gmra.mxu0 %v1701
    %v1784 = vpop.f32.mrf.mxu0
    %v1785 = vadd.f32 0.0, %v1784
    %1786 = vdwg.mxu0
    %v1787 = vadd.f32 %v1703, %v1725
    %v1788 = vadd.f32 %v1704, %v1745
    %v1789 = vadd.f32 %v1705, %v1765
    %v1790 = vadd.f32 %v1706, %v1785
    %v1791 = vxor.u32 %v1787, 2147483648
    %v1792 = vxor.u32 %v1788, 2147483648
    %v1793 = vxor.u32 %v1789, 2147483648
    %v1794 = vmul.f32 %v1791, 1.442695
    %v1795 = vpow.pop %v1794
    %v1796 = vmul.f32 %v1792, 1.442695
    %v1797 = vpow.pop %v1796
    %v1798 = vmul.f32 %v1793, 1.442695
    %v1799 = vpow.pop %v1798
    %v1800 = vadd.f32 %v1795, 1.0
    %v1801 = vadd.f32 %v1797, 1.0
    %v1802 = vadd.f32 %v1799, 1.0
    %v1803 = vrcp.pop %v1800
    %v1804 = vmul.f32 %v1800, %v1803
    %v1805 = vsub.f32 1.0, %v1804
    %v1806 = vmul.f32 %v1803, %v1805
    %v1807 = vadd.f32 %v1803, %v1806
    %vm1808 = vweird.f32 %v1800
    %vm1809 = vweird.f32 %v1803
    %vm1810 = vmor %vm1808, %vm1809
    %v1811 = vsel %vm1810, %v1803, %v1807
    %v1812 = vand.u32 2147483647, %v1800
    %vm1813 = vcmp.eq.f32.partialorder %v1812, 8.507059e+37
    %v1814 = vand.u32 %v1800, 2147483648
    %v1815 = vor.u32 1.1754944e-38, %v1814
    %v1816 = vsel %vm1813, %v1815, %v1811
    %v1817 = vmul.f32 1.0, %v1816
    %v1818 = vrcp.pop %v1801
    %v1819 = vmul.f32 %v1801, %v1818
    %v1820 = vsub.f32 1.0, %v1819
    %v1821 = vmul.f32 %v1818, %v1820
    %v1822 = vadd.f32 %v1818, %v1821
    %vm1823 = vweird.f32 %v1801
    %vm1824 = vweird.f32 %v1818
    %vm1825 = vmor %vm1823, %vm1824
    %v1826 = vsel %vm1825, %v1818, %v1822
    %v1827 = vand.u32 2147483647, %v1801
    %vm1828 = vcmp.eq.f32.partialorder %v1827, 8.507059e+37
    %v1829 = vand.u32 %v1801, 2147483648
    %v1830 = vor.u32 1.1754944e-38, %v1829
    %v1831 = vsel %vm1828, %v1830, %v1826
    %v1832 = vmul.f32 1.0, %v1831
    %v1833 = vrcp.pop %v1802
    %v1834 = vmul.f32 %v1802, %v1833
    %v1835 = vsub.f32 1.0, %v1834
    %v1836 = vmul.f32 %v1833, %v1835
    %v1837 = vadd.f32 %v1833, %v1836
    %vm1838 = vweird.f32 %v1802
    %vm1839 = vweird.f32 %v1833
    %vm1840 = vmor %vm1838, %vm1839
    %v1841 = vsel %vm1840, %v1833, %v1837
    %v1842 = vand.u32 2147483647, %v1802
    %vm1843 = vcmp.eq.f32.partialorder %v1842, 8.507059e+37
    %v1844 = vand.u32 %v1802, 2147483648
    %v1845 = vor.u32 1.1754944e-38, %v1844
    %v1846 = vsel %vm1843, %v1845, %v1841
    %v1847 = vmul.f32 1.0, %v1846
    %v1848 = vtanh.pop %v1790
    %v1849 = vmul.f32 %v1832, %v1700
    %v1850 = vmul.f32 %v1817, %v1848
    %v1851 = vadd.f32 %v1849, %v1850
    %v1852 = vtanh.pop %v1851
    %v1853 = vmul.f32 %v1847, %v1852
    %vm1854 = vcmp.gt.s32.totalorder %v133, 5
    %v1855 = vsel %vm1854, %v1851, %v1700
    %v1856 = vsel %vm1854, %v1853, %v1701
    %1857 = vst [vmem:[#allocation3 + $0x28] sm:$0xff] %v1856
    %v1858 = vld [vmem:[#allocation2 + $0xc0] sm:$0xff]
    %v1859 = vld [vmem:[#allocation2 + $0xc8] sm:$0xff]
    %v1860 = vld [vmem:[#allocation2 + $0xd0] sm:$0xff]
    %v1861 = vld [vmem:[#allocation2 + $0xd8] sm:$0xff]
    %1862 = vmatpush.msra.mxu0 %v924
    %1863 = vmatpush.msra.mxu0 %v920
    %1864 = vmatpush.msra.mxu0 %v916
    %1865 = vmatpush.msra.mxu0 %v912
    %1866 = vmatpush.msra.mxu0 %v908
    %1867 = vmatpush.msra.mxu0 %v904
    %1868 = vmatpush.msra.mxu0 %v900
    %1869 = vmatpush.msra.mxu0 %v896
    %1870 = vmatpush.msra.mxu0 %v892
    %1871 = vmatpush.msra.mxu0 %v888
    %1872 = vmatpush.msra.mxu0 %v884
    %1873 = vmatpush.msra.mxu0 %v880
    %1874 = vmatpush.msra.mxu0 %v876
    %1875 = vmatpush.msra.mxu0 %v872
    %1876 = vmatpush.msra.mxu0 %v868
    %1877 = vmatpush.msra.mxu0 %v864
    %1878 = vmatmul.f32.gmra.mxu0 %v1856
    %v1879 = vpop.f32.mrf.mxu0
    %v1880 = vadd.f32 0.0, %v1879
    %1881 = vdwg.mxu0
    %1882 = vmatpush.msra.mxu0 %v925
    %1883 = vmatpush.msra.mxu0 %v921
    %1884 = vmatpush.msra.mxu0 %v917
    %1885 = vmatpush.msra.mxu0 %v913
    %1886 = vmatpush.msra.mxu0 %v909
    %1887 = vmatpush.msra.mxu0 %v905
    %1888 = vmatpush.msra.mxu0 %v901
    %1889 = vmatpush.msra.mxu0 %v897
    %1890 = vmatpush.msra.mxu0 %v893
    %1891 = vmatpush.msra.mxu0 %v889
    %1892 = vmatpush.msra.mxu0 %v885
    %1893 = vmatpush.msra.mxu0 %v881
    %1894 = vmatpush.msra.mxu0 %v877
    %1895 = vmatpush.msra.mxu0 %v873
    %1896 = vmatpush.msra.mxu0 %v869
    %1897 = vmatpush.msra.mxu0 %v865
    %1898 = vmatmul.f32.gmra.mxu0 %v1856
    %v1899 = vpop.f32.mrf.mxu0
    %v1900 = vadd.f32 0.0, %v1899
    %1901 = vdwg.mxu0
    %1902 = vmatpush.msra.mxu0 %v926
    %1903 = vmatpush.msra.mxu0 %v922
    %1904 = vmatpush.msra.mxu0 %v918
    %1905 = vmatpush.msra.mxu0 %v914
    %1906 = vmatpush.msra.mxu0 %v910
    %1907 = vmatpush.msra.mxu0 %v906
    %1908 = vmatpush.msra.mxu0 %v902
    %1909 = vmatpush.msra.mxu0 %v898
    %1910 = vmatpush.msra.mxu0 %v894
    %1911 = vmatpush.msra.mxu0 %v890
    %1912 = vmatpush.msra.mxu0 %v886
    %1913 = vmatpush.msra.mxu0 %v882
    %1914 = vmatpush.msra.mxu0 %v878
    %1915 = vmatpush.msra.mxu0 %v874
    %1916 = vmatpush.msra.mxu0 %v870
    %1917 = vmatpush.msra.mxu0 %v866
    %1918 = vmatmul.f32.gmra.mxu0 %v1856
    %v1919 = vpop.f32.mrf.mxu0
    %v1920 = vadd.f32 0.0, %v1919
    %1921 = vdwg.mxu0
    %1922 = vmatpush.msra.mxu0 %v927
    %1923 = vmatpush.msra.mxu0 %v923
    %1924 = vmatpush.msra.mxu0 %v919
    %1925 = vmatpush.msra.mxu0 %v915
    %1926 = vmatpush.msra.mxu0 %v911
    %1927 = vmatpush.msra.mxu0 %v907
    %1928 = vmatpush.msra.mxu0 %v903
    %1929 = vmatpush.msra.mxu0 %v899
    %1930 = vmatpush.msra.mxu0 %v895
    %1931 = vmatpush.msra.mxu0 %v891
    %1932 = vmatpush.msra.mxu0 %v887
    %1933 = vmatpush.msra.mxu0 %v883
    %1934 = vmatpush.msra.mxu0 %v879
    %1935 = vmatpush.msra.mxu0 %v875
    %1936 = vmatpush.msra.mxu0 %v871
    %1937 = vmatpush.msra.mxu0 %v867
    %1938 = vmatmul.f32.gmra.mxu0 %v1856
    %v1939 = vpop.f32.mrf.mxu0
    %v1940 = vadd.f32 0.0, %v1939
    %1941 = vdwg.mxu0
    %v1942 = vadd.f32 %v1858, %v1880
    %v1943 = vadd.f32 %v1859, %v1900
    %v1944 = vadd.f32 %v1860, %v1920
    %v1945 = vadd.f32 %v1861, %v1940
    %v1946 = vxor.u32 %v1942, 2147483648
    %v1947 = vxor.u32 %v1943, 2147483648
    %v1948 = vxor.u32 %v1944, 2147483648
    %v1949 = vmul.f32 %v1946, 1.442695
    %v1950 = vpow.pop %v1949
    %v1951 = vmul.f32 %v1947, 1.442695
    %v1952 = vpow.pop %v1951
    %v1953 = vmul.f32 %v1948, 1.442695
    %v1954 = vpow.pop %v1953
    %v1955 = vadd.f32 %v1950, 1.0
    %v1956 = vadd.f32 %v1952, 1.0
    %v1957 = vadd.f32 %v1954, 1.0
    %v1958 = vrcp.pop %v1955
    %v1959 = vmul.f32 %v1955, %v1958
    %v1960 = vsub.f32 1.0, %v1959
    %v1961 = vmul.f32 %v1958, %v1960
    %v1962 = vadd.f32 %v1958, %v1961
    %vm1963 = vweird.f32 %v1955
    %vm1964 = vweird.f32 %v1958
    %vm1965 = vmor %vm1963, %vm1964
    %v1966 = vsel %vm1965, %v1958, %v1962
    %v1967 = vand.u32 2147483647, %v1955
    %vm1968 = vcmp.eq.f32.partialorder %v1967, 8.507059e+37
    %v1969 = vand.u32 %v1955, 2147483648
    %v1970 = vor.u32 1.1754944e-38, %v1969
    %v1971 = vsel %vm1968, %v1970, %v1966
    %v1972 = vmul.f32 1.0, %v1971
    %v1973 = vrcp.pop %v1956
    %v1974 = vmul.f32 %v1956, %v1973
    %v1975 = vsub.f32 1.0, %v1974
    %v1976 = vmul.f32 %v1973, %v1975
    %v1977 = vadd.f32 %v1973, %v1976
    %vm1978 = vweird.f32 %v1956
    %vm1979 = vweird.f32 %v1973
    %vm1980 = vmor %vm1978, %vm1979
    %v1981 = vsel %vm1980, %v1973, %v1977
    %v1982 = vand.u32 2147483647, %v1956
    %vm1983 = vcmp.eq.f32.partialorder %v1982, 8.507059e+37
    %v1984 = vand.u32 %v1956, 2147483648
    %v1985 = vor.u32 1.1754944e-38, %v1984
    %v1986 = vsel %vm1983, %v1985, %v1981
    %v1987 = vmul.f32 1.0, %v1986
    %v1988 = vrcp.pop %v1957
    %v1989 = vmul.f32 %v1957, %v1988
    %v1990 = vsub.f32 1.0, %v1989
    %v1991 = vmul.f32 %v1988, %v1990
    %v1992 = vadd.f32 %v1988, %v1991
    %vm1993 = vweird.f32 %v1957
    %vm1994 = vweird.f32 %v1988
    %vm1995 = vmor %vm1993, %vm1994
    %v1996 = vsel %vm1995, %v1988, %v1992
    %v1997 = vand.u32 2147483647, %v1957
    %vm1998 = vcmp.eq.f32.partialorder %v1997, 8.507059e+37
    %v1999 = vand.u32 %v1957, 2147483648
    %v2000 = vor.u32 1.1754944e-38, %v1999
    %v2001 = vsel %vm1998, %v2000, %v1996
    %v2002 = vmul.f32 1.0, %v2001
    %v2003 = vtanh.pop %v1945
    %v2004 = vmul.f32 %v1987, %v1855
    %v2005 = vmul.f32 %v1972, %v2003
    %v2006 = vadd.f32 %v2004, %v2005
    %v2007 = vtanh.pop %v2006
    %v2008 = vmul.f32 %v2002, %v2007
    %vm2009 = vcmp.gt.s32.totalorder %v133, 6
    %v2010 = vsel %vm2009, %v2006, %v1855
    %v2011 = vsel %vm2009, %v2008, %v1856
    %2012 = vst [vmem:[#allocation3 + $0x30] sm:$0xff] %v2011
    %v2013 = vld [vmem:[#allocation2 + $0xe0] sm:$0xff]
    %v2014 = vld [vmem:[#allocation2 + $0xe8] sm:$0xff]
    %v2015 = vld [vmem:[#allocation2 + $0xf0] sm:$0xff]
    %v2016 = vld [vmem:[#allocation2 + $0xf8] sm:$0xff]
    %2017 = vmatpush.msra.mxu0 %v924
    %2018 = vmatpush.msra.mxu0 %v920
    %2019 = vmatpush.msra.mxu0 %v916
    %2020 = vmatpush.msra.mxu0 %v912
    %2021 = vmatpush.msra.mxu0 %v908
    %2022 = vmatpush.msra.mxu0 %v904
    %2023 = vmatpush.msra.mxu0 %v900
    %2024 = vmatpush.msra.mxu0 %v896
    %2025 = vmatpush.msra.mxu0 %v892
    %2026 = vmatpush.msra.mxu0 %v888
    %2027 = vmatpush.msra.mxu0 %v884
    %2028 = vmatpush.msra.mxu0 %v880
    %2029 = vmatpush.msra.mxu0 %v876
    %2030 = vmatpush.msra.mxu0 %v872
    %2031 = vmatpush.msra.mxu0 %v868
    %2032 = vmatpush.msra.mxu0 %v864
    %2033 = vmatmul.f32.gmra.mxu0 %v2011
    %v2034 = vpop.f32.mrf.mxu0
    %v2035 = vadd.f32 0.0, %v2034
    %2036 = vdwg.mxu0
    %2037 = vmatpush.msra.mxu0 %v925
    %2038 = vmatpush.msra.mxu0 %v921
    %2039 = vmatpush.msra.mxu0 %v917
    %2040 = vmatpush.msra.mxu0 %v913
    %2041 = vmatpush.msra.mxu0 %v909
    %2042 = vmatpush.msra.mxu0 %v905
    %2043 = vmatpush.msra.mxu0 %v901
    %2044 = vmatpush.msra.mxu0 %v897
    %2045 = vmatpush.msra.mxu0 %v893
    %2046 = vmatpush.msra.mxu0 %v889
    %2047 = vmatpush.msra.mxu0 %v885
    %2048 = vmatpush.msra.mxu0 %v881
    %2049 = vmatpush.msra.mxu0 %v877
    %2050 = vmatpush.msra.mxu0 %v873
    %2051 = vmatpush.msra.mxu0 %v869
    %2052 = vmatpush.msra.mxu0 %v865
    %2053 = vmatmul.f32.gmra.mxu0 %v2011
    %v2054 = vpop.f32.mrf.mxu0
    %v2055 = vadd.f32 0.0, %v2054
    %2056 = vdwg.mxu0
    %2057 = vmatpush.msra.mxu0 %v926
    %2058 = vmatpush.msra.mxu0 %v922
    %2059 = vmatpush.msra.mxu0 %v918
    %2060 = vmatpush.msra.mxu0 %v914
    %2061 = vmatpush.msra.mxu0 %v910
    %2062 = vmatpush.msra.mxu0 %v906
    %2063 = vmatpush.msra.mxu0 %v902
    %2064 = vmatpush.msra.mxu0 %v898
    %2065 = vmatpush.msra.mxu0 %v894
    %2066 = vmatpush.msra.mxu0 %v890
    %2067 = vmatpush.msra.mxu0 %v886
    %2068 = vmatpush.msra.mxu0 %v882
    %2069 = vmatpush.msra.mxu0 %v878
    %2070 = vmatpush.msra.mxu0 %v874
    %2071 = vmatpush.msra.mxu0 %v870
    %2072 = vmatpush.msra.mxu0 %v866
    %2073 = vmatmul.f32.gmra.mxu0 %v2011
    %v2074 = vpop.f32.mrf.mxu0
    %v2075 = vadd.f32 0.0, %v2074
    %2076 = vdwg.mxu0
    %2077 = vmatpush.msra.mxu0 %v927
    %2078 = vmatpush.msra.mxu0 %v923
    %2079 = vmatpush.msra.mxu0 %v919
    %2080 = vmatpush.msra.mxu0 %v915
    %2081 = vmatpush.msra.mxu0 %v911
    %2082 = vmatpush.msra.mxu0 %v907
    %2083 = vmatpush.msra.mxu0 %v903
    %2084 = vmatpush.msra.mxu0 %v899
    %2085 = vmatpush.msra.mxu0 %v895
    %2086 = vmatpush.msra.mxu0 %v891
    %2087 = vmatpush.msra.mxu0 %v887
    %2088 = vmatpush.msra.mxu0 %v883
    %2089 = vmatpush.msra.mxu0 %v879
    %2090 = vmatpush.msra.mxu0 %v875
    %2091 = vmatpush.msra.mxu0 %v871
    %2092 = vmatpush.msra.mxu0 %v867
    %2093 = vmatmul.f32.gmra.mxu0 %v2011
    %v2094 = vpop.f32.mrf.mxu0
    %v2095 = vadd.f32 0.0, %v2094
    %2096 = vdwg.mxu0
    %v2097 = vadd.f32 %v2013, %v2035
    %v2098 = vadd.f32 %v2014, %v2055
    %v2099 = vadd.f32 %v2015, %v2075
    %v2100 = vadd.f32 %v2016, %v2095
    %v2101 = vxor.u32 %v2097, 2147483648
    %v2102 = vxor.u32 %v2098, 2147483648
    %v2103 = vxor.u32 %v2099, 2147483648
    %v2104 = vmul.f32 %v2101, 1.442695
    %v2105 = vpow.pop %v2104
    %v2106 = vmul.f32 %v2102, 1.442695
    %v2107 = vpow.pop %v2106
    %v2108 = vmul.f32 %v2103, 1.442695
    %v2109 = vpow.pop %v2108
    %v2110 = vadd.f32 %v2105, 1.0
    %v2111 = vadd.f32 %v2107, 1.0
    %v2112 = vadd.f32 %v2109, 1.0
    %v2113 = vrcp.pop %v2110
    %v2114 = vmul.f32 %v2110, %v2113
    %v2115 = vsub.f32 1.0, %v2114
    %v2116 = vmul.f32 %v2113, %v2115
    %v2117 = vadd.f32 %v2113, %v2116
    %vm2118 = vweird.f32 %v2110
    %vm2119 = vweird.f32 %v2113
    %vm2120 = vmor %vm2118, %vm2119
    %v2121 = vsel %vm2120, %v2113, %v2117
    %v2122 = vand.u32 2147483647, %v2110
    %vm2123 = vcmp.eq.f32.partialorder %v2122, 8.507059e+37
    %v2124 = vand.u32 %v2110, 2147483648
    %v2125 = vor.u32 1.1754944e-38, %v2124
    %v2126 = vsel %vm2123, %v2125, %v2121
    %v2127 = vmul.f32 1.0, %v2126
    %v2128 = vrcp.pop %v2111
    %v2129 = vmul.f32 %v2111, %v2128
    %v2130 = vsub.f32 1.0, %v2129
    %v2131 = vmul.f32 %v2128, %v2130
    %v2132 = vadd.f32 %v2128, %v2131
    %vm2133 = vweird.f32 %v2111
    %vm2134 = vweird.f32 %v2128
    %vm2135 = vmor %vm2133, %vm2134
    %v2136 = vsel %vm2135, %v2128, %v2132
    %v2137 = vand.u32 2147483647, %v2111
    %vm2138 = vcmp.eq.f32.partialorder %v2137, 8.507059e+37
    %v2139 = vand.u32 %v2111, 2147483648
    %v2140 = vor.u32 1.1754944e-38, %v2139
    %v2141 = vsel %vm2138, %v2140, %v2136
    %v2142 = vmul.f32 1.0, %v2141
    %v2143 = vrcp.pop %v2112
    %v2144 = vmul.f32 %v2112, %v2143
    %v2145 = vsub.f32 1.0, %v2144
    %v2146 = vmul.f32 %v2143, %v2145
    %v2147 = vadd.f32 %v2143, %v2146
    %vm2148 = vweird.f32 %v2112
    %vm2149 = vweird.f32 %v2143
    %vm2150 = vmor %vm2148, %vm2149
    %v2151 = vsel %vm2150, %v2143, %v2147
    %v2152 = vand.u32 2147483647, %v2112
    %vm2153 = vcmp.eq.f32.partialorder %v2152, 8.507059e+37
    %v2154 = vand.u32 %v2112, 2147483648
    %v2155 = vor.u32 1.1754944e-38, %v2154
    %v2156 = vsel %vm2153, %v2155, %v2151
    %v2157 = vmul.f32 1.0, %v2156
    %v2158 = vtanh.pop %v2100
    %v2159 = vmul.f32 %v2142, %v2010
    %v2160 = vmul.f32 %v2127, %v2158
    %v2161 = vadd.f32 %v2159, %v2160
    %v2162 = vtanh.pop %v2161
    %v2163 = vmul.f32 %v2157, %v2162
    %vm2164 = vcmp.gt.s32.totalorder %v133, 7
    %v2165 = vsel %vm2164, %v2163, %v2011
    %2166 = vst [vmem:[#allocation3 + $0x38] sm:$0xff] %v2165
    %v2167 = vld [vmem:[#allocation3] sm:$0xff]
    %v2168 = vld [vmem:[#allocation3 + $0x8] sm:$0xff]
    %v2169 = vld [vmem:[#allocation3 + $0x10] sm:$0xff]
    %v2170 = vld [vmem:[#allocation3 + $0x18] sm:$0xff]
    %v2171 = vld [vmem:[#allocation3 + $0x20] sm:$0xff]
    %v2172 = vld [vmem:[#allocation3 + $0x28] sm:$0xff]
    %v2173 = vld [vmem:[#allocation3 + $0x30] sm:$0xff]
    %v2174 = vld [vmem:[#allocation3 + $0x38] sm:$0xff]
    %v2175 = vld [vmem:[#allocation10] sm:$0xff]
    %v2176 = vld [vmem:[#allocation10 + $0x8] sm:$0xff]
    %v2177 = vld [vmem:[#allocation10 + $0x10] sm:$0xff]
    %v2178 = vld [vmem:[#allocation10 + $0x18] sm:$0xff]
    %v2179 = vld [vmem:[#allocation10 + $0x20] sm:$0xff]
    %v2180 = vld [vmem:[#allocation10 + $0x28] sm:$0xff]
    %v2181 = vld [vmem:[#allocation10 + $0x30] sm:$0xff]
    %v2182 = vld [vmem:[#allocation10 + $0x38] sm:$0xff]
    %v2183 = vld [vmem:[#allocation10 + $0x40] sm:$0xff]
    %v2184 = vld [vmem:[#allocation10 + $0x48] sm:$0xff]
    %v2185 = vld [vmem:[#allocation10 + $0x50] sm:$0xff]
    %v2186 = vld [vmem:[#allocation10 + $0x58] sm:$0xff]
    %v2187 = vld [vmem:[#allocation10 + $0x60] sm:$0xff]
    %v2188 = vld [vmem:[#allocation10 + $0x68] sm:$0xff]
    %v2189 = vld [vmem:[#allocation10 + $0x70] sm:$0xff]
    %v2190 = vld [vmem:[#allocation10 + $0x78] sm:$0xff]
    %v2191 = vld [vmem:[#allocation10 + $0x80] sm:$0xff]
    %v2192 = vld [vmem:[#allocation10 + $0x88] sm:$0xff]
    %v2193 = vld [vmem:[#allocation10 + $0x90] sm:$0xff]
    %v2194 = vld [vmem:[#allocation10 + $0x98] sm:$0xff]
    %v2195 = vld [vmem:[#allocation10 + $0xa0] sm:$0xff]
    %v2196 = vld [vmem:[#allocation10 + $0xa8] sm:$0xff]
    %v2197 = vld [vmem:[#allocation10 + $0xb0] sm:$0xff]
    %v2198 = vld [vmem:[#allocation10 + $0xb8] sm:$0xff]
    %v2199 = vld [vmem:[#allocation10 + $0xc0] sm:$0xff]
    %v2200 = vld [vmem:[#allocation10 + $0xc8] sm:$0xff]
    %v2201 = vld [vmem:[#allocation10 + $0xd0] sm:$0xff]
    %v2202 = vld [vmem:[#allocation10 + $0xd8] sm:$0xff]
    %v2203 = vld [vmem:[#allocation10 + $0xe0] sm:$0xff]
    %v2204 = vld [vmem:[#allocation10 + $0xe8] sm:$0xff]
    %v2205 = vld [vmem:[#allocation10 + $0xf0] sm:$0xff]
    %v2206 = vld [vmem:[#allocation10 + $0xf8] sm:$0xff]
    %v2207 = vld [vmem:[#allocation10 + $0x100] sm:$0xff]
    %v2208 = vld [vmem:[#allocation10 + $0x108] sm:$0xff]
    %v2209 = vld [vmem:[#allocation10 + $0x110] sm:$0xff]
    %v2210 = vld [vmem:[#allocation10 + $0x118] sm:$0xff]
    %v2211 = vld [vmem:[#allocation10 + $0x120] sm:$0xff]
    %v2212 = vld [vmem:[#allocation10 + $0x128] sm:$0xff]
    %v2213 = vld [vmem:[#allocation10 + $0x130] sm:$0xff]
    %v2214 = vld [vmem:[#allocation10 + $0x138] sm:$0xff]
    %v2215 = vld [vmem:[#allocation10 + $0x140] sm:$0xff]
    %v2216 = vld [vmem:[#allocation10 + $0x148] sm:$0xff]
    %v2217 = vld [vmem:[#allocation10 + $0x150] sm:$0xff]
    %v2218 = vld [vmem:[#allocation10 + $0x158] sm:$0xff]
    %v2219 = vld [vmem:[#allocation10 + $0x160] sm:$0xff]
    %v2220 = vld [vmem:[#allocation10 + $0x168] sm:$0xff]
    %v2221 = vld [vmem:[#allocation10 + $0x170] sm:$0xff]
    %v2222 = vld [vmem:[#allocation10 + $0x178] sm:$0xff]
    %v2223 = vld [vmem:[#allocation10 + $0x180] sm:$0xff]
    %v2224 = vld [vmem:[#allocation10 + $0x188] sm:$0xff]
    %v2225 = vld [vmem:[#allocation10 + $0x190] sm:$0xff]
    %v2226 = vld [vmem:[#allocation10 + $0x198] sm:$0xff]
    %v2227 = vld [vmem:[#allocation10 + $0x1a0] sm:$0xff]
    %v2228 = vld [vmem:[#allocation10 + $0x1a8] sm:$0xff]
    %v2229 = vld [vmem:[#allocation10 + $0x1b0] sm:$0xff]
    %v2230 = vld [vmem:[#allocation10 + $0x1b8] sm:$0xff]
    %v2231 = vld [vmem:[#allocation10 + $0x1c0] sm:$0xff]
    %v2232 = vld [vmem:[#allocation10 + $0x1c8] sm:$0xff]
    %v2233 = vld [vmem:[#allocation10 + $0x1d0] sm:$0xff]
    %v2234 = vld [vmem:[#allocation10 + $0x1d8] sm:$0xff]
    %v2235 = vld [vmem:[#allocation10 + $0x1e0] sm:$0xff]
    %v2236 = vld [vmem:[#allocation10 + $0x1e8] sm:$0xff]
    %v2237 = vld [vmem:[#allocation10 + $0x1f0] sm:$0xff]
    %v2238 = vld [vmem:[#allocation10 + $0x1f8] sm:$0xff]
    %v2239 = vld [vmem:[%s7] sm:$0xf]
    %v2241 = vperm.slane %v2239, 0
    %v2242 = vperm.slane %v2239, 1
    %v2243 = vperm.slane %v2239, 2
    %v2244 = vperm.slane %v2239, 3
    %2249 = vmatpush.msra.mxu0 %v2235
    %2250 = vmatpush.msra.mxu0 %v2231
    %2251 = vmatpush.msra.mxu0 %v2227
    %2252 = vmatpush.msra.mxu0 %v2223
    %2253 = vmatpush.msra.mxu0 %v2219
    %2254 = vmatpush.msra.mxu0 %v2215
    %2255 = vmatpush.msra.mxu0 %v2211
    %2256 = vmatpush.msra.mxu0 %v2207
    %2257 = vmatpush.msra.mxu0 %v2203
    %2258 = vmatpush.msra.mxu0 %v2199
    %2259 = vmatpush.msra.mxu0 %v2195
    %2260 = vmatpush.msra.mxu0 %v2191
    %2261 = vmatpush.msra.mxu0 %v2187
    %2262 = vmatpush.msra.mxu0 %v2183
    %2263 = vmatpush.msra.mxu0 %v2179
    %2264 = vmatpush.msra.mxu0 %v2175
    %2265 = vmatmul.f32.gmra.mxu0 %v2167
    %v2266 = vpop.f32.mrf.mxu0
    %v2267 = vadd.f32 %v2241, %v2266
    %2268 = vmatmul.f32.gmra.mxu0 %v2168
    %v2269 = vpop.f32.mrf.mxu0
    %v2270 = vadd.f32 %v2241, %v2269
    %2271 = vmatmul.f32.gmra.mxu0 %v2169
    %v2272 = vpop.f32.mrf.mxu0
    %v2273 = vadd.f32 %v2241, %v2272
    %2274 = vmatmul.f32.gmra.mxu0 %v2170
    %v2275 = vpop.f32.mrf.mxu0
    %v2276 = vadd.f32 %v2241, %v2275
    %2277 = vmatmul.f32.gmra.mxu0 %v2171
    %v2278 = vpop.f32.mrf.mxu0
    %v2279 = vadd.f32 %v2241, %v2278
    %2280 = vmatmul.f32.gmra.mxu0 %v2172
    %v2281 = vpop.f32.mrf.mxu0
    %v2282 = vadd.f32 %v2241, %v2281
    %2283 = vmatmul.f32.gmra.mxu0 %v2173
    %v2284 = vpop.f32.mrf.mxu0
    %v2285 = vadd.f32 %v2241, %v2284
    %2286 = vmatmul.f32.gmra.mxu0 %v2174
    %v2287 = vpop.f32.mrf.mxu0
    %v2288 = vadd.f32 %v2241, %v2287
    %2289 = vdwg.mxu0
    %2290 = vmatpush.msra.mxu0 %v2236
    %2291 = vmatpush.msra.mxu0 %v2232
    %2292 = vmatpush.msra.mxu0 %v2228
    %2293 = vmatpush.msra.mxu0 %v2224
    %2294 = vmatpush.msra.mxu0 %v2220
    %2295 = vmatpush.msra.mxu0 %v2216
    %2296 = vmatpush.msra.mxu0 %v2212
    %2297 = vmatpush.msra.mxu0 %v2208
    %2298 = vmatpush.msra.mxu0 %v2204
    %2299 = vmatpush.msra.mxu0 %v2200
    %2300 = vmatpush.msra.mxu0 %v2196
    %2301 = vmatpush.msra.mxu0 %v2192
    %2302 = vmatpush.msra.mxu0 %v2188
    %2303 = vmatpush.msra.mxu0 %v2184
    %2304 = vmatpush.msra.mxu0 %v2180
    %2305 = vmatpush.msra.mxu0 %v2176
    %2306 = vmatmul.f32.gmra.mxu0 %v2167
    %v2307 = vpop.f32.mrf.mxu0
    %v2308 = vadd.f32 %v2242, %v2307
    %2309 = vmatmul.f32.gmra.mxu0 %v2168
    %v2310 = vpop.f32.mrf.mxu0
    %v2311 = vadd.f32 %v2242, %v2310
    %2312 = vmatmul.f32.gmra.mxu0 %v2169
    %v2313 = vpop.f32.mrf.mxu0
    %v2314 = vadd.f32 %v2242, %v2313
    %2315 = vmatmul.f32.gmra.mxu0 %v2170
    %v2316 = vpop.f32.mrf.mxu0
    %v2317 = vadd.f32 %v2242, %v2316
    %2318 = vmatmul.f32.gmra.mxu0 %v2171
    %v2319 = vpop.f32.mrf.mxu0
    %v2320 = vadd.f32 %v2242, %v2319
    %2321 = vmatmul.f32.gmra.mxu0 %v2172
    %v2322 = vpop.f32.mrf.mxu0
    %v2323 = vadd.f32 %v2242, %v2322
    %2324 = vmatmul.f32.gmra.mxu0 %v2173
    %v2325 = vpop.f32.mrf.mxu0
    %v2326 = vadd.f32 %v2242, %v2325
    %2327 = vmatmul.f32.gmra.mxu0 %v2174
    %v2328 = vpop.f32.mrf.mxu0
    %v2329 = vadd.f32 %v2242, %v2328
    %2330 = vdwg.mxu0
    %2331 = vmatpush.msra.mxu0 %v2237
    %2332 = vmatpush.msra.mxu0 %v2233
    %2333 = vmatpush.msra.mxu0 %v2229
    %2334 = vmatpush.msra.mxu0 %v2225
    %2335 = vmatpush.msra.mxu0 %v2221
    %2336 = vmatpush.msra.mxu0 %v2217
    %2337 = vmatpush.msra.mxu0 %v2213
    %2338 = vmatpush.msra.mxu0 %v2209
    %2339 = vmatpush.msra.mxu0 %v2205
    %2340 = vmatpush.msra.mxu0 %v2201
    %2341 = vmatpush.msra.mxu0 %v2197
    %2342 = vmatpush.msra.mxu0 %v2193
    %2343 = vmatpush.msra.mxu0 %v2189
    %2344 = vmatpush.msra.mxu0 %v2185
    %2345 = vmatpush.msra.mxu0 %v2181
    %2346 = vmatpush.msra.mxu0 %v2177
    %2347 = vmatmul.f32.gmra.mxu0 %v2167
    %v2348 = vpop.f32.mrf.mxu0
    %v2349 = vadd.f32 %v2243, %v2348
    %2350 = vmatmul.f32.gmra.mxu0 %v2168
    %v2351 = vpop.f32.mrf.mxu0
    %v2352 = vadd.f32 %v2243, %v2351
    %2353 = vmatmul.f32.gmra.mxu0 %v2169
    %v2354 = vpop.f32.mrf.mxu0
    %v2355 = vadd.f32 %v2243, %v2354
    %2356 = vmatmul.f32.gmra.mxu0 %v2170
    %v2357 = vpop.f32.mrf.mxu0
    %v2358 = vadd.f32 %v2243, %v2357
    %2359 = vmatmul.f32.gmra.mxu0 %v2171
    %v2360 = vpop.f32.mrf.mxu0
    %v2361 = vadd.f32 %v2243, %v2360
    %2362 = vmatmul.f32.gmra.mxu0 %v2172
    %v2363 = vpop.f32.mrf.mxu0
    %v2364 = vadd.f32 %v2243, %v2363
    %2365 = vmatmul.f32.gmra.mxu0 %v2173
    %v2366 = vpop.f32.mrf.mxu0
    %v2367 = vadd.f32 %v2243, %v2366
    %2368 = vmatmul.f32.gmra.mxu0 %v2174
    %v2369 = vpop.f32.mrf.mxu0
    %v2370 = vadd.f32 %v2243, %v2369
    %2371 = vdwg.mxu0
    %2372 = vmatpush.msra.mxu0 %v2238
    %2373 = vmatpush.msra.mxu0 %v2234
    %2374 = vmatpush.msra.mxu0 %v2230
    %2375 = vmatpush.msra.mxu0 %v2226
    %2376 = vmatpush.msra.mxu0 %v2222
    %2377 = vmatpush.msra.mxu0 %v2218
    %2378 = vmatpush.msra.mxu0 %v2214
    %2379 = vmatpush.msra.mxu0 %v2210
    %2380 = vmatpush.msra.mxu0 %v2206
    %2381 = vmatpush.msra.mxu0 %v2202
    %2382 = vmatpush.msra.mxu0 %v2198
    %2383 = vmatpush.msra.mxu0 %v2194
    %2384 = vmatpush.msra.mxu0 %v2190
    %2385 = vmatpush.msra.mxu0 %v2186
    %2386 = vmatpush.msra.mxu0 %v2182
    %2387 = vmatpush.msra.mxu0 %v2178
    %2388 = vmatmul.f32.gmra.mxu0 %v2167
    %v2389 = vpop.f32.mrf.mxu0
    %v2390 = vadd.f32 %v2244, %v2389
    %2391 = vmatmul.f32.gmra.mxu0 %v2168
    %v2392 = vpop.f32.mrf.mxu0
    %v2393 = vadd.f32 %v2244, %v2392
    %2394 = vmatmul.f32.gmra.mxu0 %v2169
    %v2395 = vpop.f32.mrf.mxu0
    %v2396 = vadd.f32 %v2244, %v2395
    %2397 = vmatmul.f32.gmra.mxu0 %v2170
    %v2398 = vpop.f32.mrf.mxu0
    %v2399 = vadd.f32 %v2244, %v2398
    %2400 = vmatmul.f32.gmra.mxu0 %v2171
    %v2401 = vpop.f32.mrf.mxu0
    %v2402 = vadd.f32 %v2244, %v2401
    %2403 = vmatmul.f32.gmra.mxu0 %v2172
    %v2404 = vpop.f32.mrf.mxu0
    %v2405 = vadd.f32 %v2244, %v2404
    %2406 = vmatmul.f32.gmra.mxu0 %v2173
    %v2407 = vpop.f32.mrf.mxu0
    %v2408 = vadd.f32 %v2244, %v2407
    %2409 = vmatmul.f32.gmra.mxu0 %v2174
    %v2410 = vpop.f32.mrf.mxu0
    %v2411 = vadd.f32 %v2244, %v2410
    %2412 = vdwg.mxu0
    %2413 = vst [vmem:[#allocation2] sm:$0xff] %v2267
    %2414 = vst [vmem:[#allocation2 + $0x8] sm:$0xff] %v2308
    %2415 = vst [vmem:[#allocation2 + $0x10] sm:$0xff] %v2349
    %2416 = vst [vmem:[#allocation2 + $0x18] sm:$0xff] %v2390
    %2417 = vst [vmem:[#allocation2 + $0x20] sm:$0xff] %v2270
    %2418 = vst [vmem:[#allocation2 + $0x28] sm:$0xff] %v2311
    %2419 = vst [vmem:[#allocation2 + $0x30] sm:$0xff] %v2352
    %2420 = vst [vmem:[#allocation2 + $0x38] sm:$0xff] %v2393
    %2421 = vst [vmem:[#allocation2 + $0x40] sm:$0xff] %v2273
    %2422 = vst [vmem:[#allocation2 + $0x48] sm:$0xff] %v2314
    %2423 = vst [vmem:[#allocation2 + $0x50] sm:$0xff] %v2355
    %2424 = vst [vmem:[#allocation2 + $0x58] sm:$0xff] %v2396
    %2425 = vst [vmem:[#allocation2 + $0x60] sm:$0xff] %v2276
    %2426 = vst [vmem:[#allocation2 + $0x68] sm:$0xff] %v2317
    %2427 = vst [vmem:[#allocation2 + $0x70] sm:$0xff] %v2358
    %2428 = vst [vmem:[#allocation2 + $0x78] sm:$0xff] %v2399
    %2429 = vst [vmem:[#allocation2 + $0x80] sm:$0xff] %v2279
    %2430 = vst [vmem:[#allocation2 + $0x88] sm:$0xff] %v2320
    %2431 = vst [vmem:[#allocation2 + $0x90] sm:$0xff] %v2361
    %2432 = vst [vmem:[#allocation2 + $0x98] sm:$0xff] %v2402
    %2433 = vst [vmem:[#allocation2 + $0xa0] sm:$0xff] %v2282
    %2434 = vst [vmem:[#allocation2 + $0xa8] sm:$0xff] %v2323
    %2435 = vst [vmem:[#allocation2 + $0xb0] sm:$0xff] %v2364
    %2436 = vst [vmem:[#allocation2 + $0xb8] sm:$0xff] %v2405
    %2437 = vst [vmem:[#allocation2 + $0xc0] sm:$0xff] %v2285
    %2438 = vst [vmem:[#allocation2 + $0xc8] sm:$0xff] %v2326
    %2439 = vst [vmem:[#allocation2 + $0xd0] sm:$0xff] %v2367
    %2440 = vst [vmem:[#allocation2 + $0xd8] sm:$0xff] %v2408
    %2441 = vst [vmem:[#allocation2 + $0xe0] sm:$0xff] %v2288
    %2442 = vst [vmem:[#allocation2 + $0xe8] sm:$0xff] %v2329
    %2443 = vst [vmem:[#allocation2 + $0xf0] sm:$0xff] %v2370
    %2444 = vst [vmem:[#allocation2 + $0xf8] sm:$0xff] %v2411
    %v2445 = vld [vmem:[#allocation12] sm:$0xff]
    %v2446 = vld [vmem:[#allocation12 + $0x8] sm:$0xff]
    %v2447 = vld [vmem:[#allocation12 + $0x10] sm:$0xff]
    %v2448 = vld [vmem:[#allocation12 + $0x18] sm:$0xff]
    %v2449 = vld [vmem:[#allocation12 + $0x20] sm:$0xff]
    %v2450 = vld [vmem:[#allocation12 + $0x28] sm:$0xff]
    %v2451 = vld [vmem:[#allocation12 + $0x30] sm:$0xff]
    %v2452 = vld [vmem:[#allocation12 + $0x38] sm:$0xff]
    %v2453 = vld [vmem:[#allocation12 + $0x40] sm:$0xff]
    %v2454 = vld [vmem:[#allocation12 + $0x48] sm:$0xff]
    %v2455 = vld [vmem:[#allocation12 + $0x50] sm:$0xff]
    %v2456 = vld [vmem:[#allocation12 + $0x58] sm:$0xff]
    %v2457 = vld [vmem:[#allocation12 + $0x60] sm:$0xff]
    %v2458 = vld [vmem:[#allocation12 + $0x68] sm:$0xff]
    %v2459 = vld [vmem:[#allocation12 + $0x70] sm:$0xff]
    %v2460 = vld [vmem:[#allocation12 + $0x78] sm:$0xff]
    %v2461 = vld [vmem:[#allocation12 + $0x80] sm:$0xff]
    %v2462 = vld [vmem:[#allocation12 + $0x88] sm:$0xff]
    %v2463 = vld [vmem:[#allocation12 + $0x90] sm:$0xff]
    %v2464 = vld [vmem:[#allocation12 + $0x98] sm:$0xff]
    %v2465 = vld [vmem:[#allocation12 + $0xa0] sm:$0xff]
    %v2466 = vld [vmem:[#allocation12 + $0xa8] sm:$0xff]
    %v2467 = vld [vmem:[#allocation12 + $0xb0] sm:$0xff]
    %v2468 = vld [vmem:[#allocation12 + $0xb8] sm:$0xff]
    %v2469 = vld [vmem:[#allocation12 + $0xc0] sm:$0xff]
    %v2470 = vld [vmem:[#allocation12 + $0xc8] sm:$0xff]
    %v2471 = vld [vmem:[#allocation12 + $0xd0] sm:$0xff]
    %v2472 = vld [vmem:[#allocation12 + $0xd8] sm:$0xff]
    %v2473 = vld [vmem:[#allocation12 + $0xe0] sm:$0xff]
    %v2474 = vld [vmem:[#allocation12 + $0xe8] sm:$0xff]
    %v2475 = vld [vmem:[#allocation12 + $0xf0] sm:$0xff]
    %v2476 = vld [vmem:[#allocation12 + $0xf8] sm:$0xff]
    %v2477 = vld [vmem:[#allocation12 + $0x100] sm:$0xff]
    %v2478 = vld [vmem:[#allocation12 + $0x108] sm:$0xff]
    %v2479 = vld [vmem:[#allocation12 + $0x110] sm:$0xff]
    %v2480 = vld [vmem:[#allocation12 + $0x118] sm:$0xff]
    %v2481 = vld [vmem:[#allocation12 + $0x120] sm:$0xff]
    %v2482 = vld [vmem:[#allocation12 + $0x128] sm:$0xff]
    %v2483 = vld [vmem:[#allocation12 + $0x130] sm:$0xff]
    %v2484 = vld [vmem:[#allocation12 + $0x138] sm:$0xff]
    %v2485 = vld [vmem:[#allocation12 + $0x140] sm:$0xff]
    %v2486 = vld [vmem:[#allocation12 + $0x148] sm:$0xff]
    %v2487 = vld [vmem:[#allocation12 + $0x150] sm:$0xff]
    %v2488 = vld [vmem:[#allocation12 + $0x158] sm:$0xff]
    %v2489 = vld [vmem:[#allocation12 + $0x160] sm:$0xff]
    %v2490 = vld [vmem:[#allocation12 + $0x168] sm:$0xff]
    %v2491 = vld [vmem:[#allocation12 + $0x170] sm:$0xff]
    %v2492 = vld [vmem:[#allocation12 + $0x178] sm:$0xff]
    %v2493 = vld [vmem:[#allocation12 + $0x180] sm:$0xff]
    %v2494 = vld [vmem:[#allocation12 + $0x188] sm:$0xff]
    %v2495 = vld [vmem:[#allocation12 + $0x190] sm:$0xff]
    %v2496 = vld [vmem:[#allocation12 + $0x198] sm:$0xff]
    %v2497 = vld [vmem:[#allocation12 + $0x1a0] sm:$0xff]
    %v2498 = vld [vmem:[#allocation12 + $0x1a8] sm:$0xff]
    %v2499 = vld [vmem:[#allocation12 + $0x1b0] sm:$0xff]
    %v2500 = vld [vmem:[#allocation12 + $0x1b8] sm:$0xff]
    %v2501 = vld [vmem:[#allocation12 + $0x1c0] sm:$0xff]
    %v2502 = vld [vmem:[#allocation12 + $0x1c8] sm:$0xff]
    %v2503 = vld [vmem:[#allocation12 + $0x1d0] sm:$0xff]
    %v2504 = vld [vmem:[#allocation12 + $0x1d8] sm:$0xff]
    %v2505 = vld [vmem:[#allocation12 + $0x1e0] sm:$0xff]
    %v2506 = vld [vmem:[#allocation12 + $0x1e8] sm:$0xff]
    %v2507 = vld [vmem:[#allocation12 + $0x1f0] sm:$0xff]
    %v2508 = vld [vmem:[#allocation12 + $0x1f8] sm:$0xff]
    %v2509 = vld [vmem:[#allocation2] sm:$0xff]
    %v2510 = vld [vmem:[#allocation2 + $0x8] sm:$0xff]
    %v2511 = vld [vmem:[#allocation2 + $0x10] sm:$0xff]
    %v2512 = vld [vmem:[#allocation2 + $0x18] sm:$0xff]
    %2513 = vmatpush.msra.mxu0 %v2505
    %2514 = vmatpush.msra.mxu0 %v2501
    %2515 = vmatpush.msra.mxu0 %v2497
    %2516 = vmatpush.msra.mxu0 %v2493
    %2517 = vmatpush.msra.mxu0 %v2489
    %2518 = vmatpush.msra.mxu0 %v2485
    %2519 = vmatpush.msra.mxu0 %v2481
    %2520 = vmatpush.msra.mxu0 %v2477
    %2521 = vmatpush.msra.mxu0 %v2473
    %2522 = vmatpush.msra.mxu0 %v2469
    %2523 = vmatpush.msra.mxu0 %v2465
    %2524 = vmatpush.msra.mxu0 %v2461
    %2525 = vmatpush.msra.mxu0 %v2457
    %2526 = vmatpush.msra.mxu0 %v2453
    %2527 = vmatpush.msra.mxu0 %v2449
    %2528 = vmatpush.msra.mxu0 %v2445
    %2529 = vmatmul.f32.gmra.mxu0 0.0
    %v2530 = vpop.f32.mrf.mxu0
    %v2531 = vadd.f32 0.0, %v2530
    %2532 = vdwg.mxu0
    %2533 = vmatpush.msra.mxu0 %v2506
    %2534 = vmatpush.msra.mxu0 %v2502
    %2535 = vmatpush.msra.mxu0 %v2498
    %2536 = vmatpush.msra.mxu0 %v2494
    %2537 = vmatpush.msra.mxu0 %v2490
    %2538 = vmatpush.msra.mxu0 %v2486
    %2539 = vmatpush.msra.mxu0 %v2482
    %2540 = vmatpush.msra.mxu0 %v2478
    %2541 = vmatpush.msra.mxu0 %v2474
    %2542 = vmatpush.msra.mxu0 %v2470
    %2543 = vmatpush.msra.mxu0 %v2466
    %2544 = vmatpush.msra.mxu0 %v2462
    %2545 = vmatpush.msra.mxu0 %v2458
    %2546 = vmatpush.msra.mxu0 %v2454
    %2547 = vmatpush.msra.mxu0 %v2450
    %2548 = vmatpush.msra.mxu0 %v2446
    %2549 = vmatmul.f32.gmra.mxu0 0.0
    %v2550 = vpop.f32.mrf.mxu0
    %v2551 = vadd.f32 0.0, %v2550
    %2552 = vdwg.mxu0
    %2553 = vmatpush.msra.mxu0 %v2507
    %2554 = vmatpush.msra.mxu0 %v2503
    %2555 = vmatpush.msra.mxu0 %v2499
    %2556 = vmatpush.msra.mxu0 %v2495
    %2557 = vmatpush.msra.mxu0 %v2491
    %2558 = vmatpush.msra.mxu0 %v2487
    %2559 = vmatpush.msra.mxu0 %v2483
    %2560 = vmatpush.msra.mxu0 %v2479
    %2561 = vmatpush.msra.mxu0 %v2475
    %2562 = vmatpush.msra.mxu0 %v2471
    %2563 = vmatpush.msra.mxu0 %v2467
    %2564 = vmatpush.msra.mxu0 %v2463
    %2565 = vmatpush.msra.mxu0 %v2459
    %2566 = vmatpush.msra.mxu0 %v2455
    %2567 = vmatpush.msra.mxu0 %v2451
    %2568 = vmatpush.msra.mxu0 %v2447
    %2569 = vmatmul.f32.gmra.mxu0 0.0
    %v2570 = vpop.f32.mrf.mxu0
    %v2571 = vadd.f32 0.0, %v2570
    %2572 = vdwg.mxu0
    %2573 = vmatpush.msra.mxu0 %v2508
    %2574 = vmatpush.msra.mxu0 %v2504
    %2575 = vmatpush.msra.mxu0 %v2500
    %2576 = vmatpush.msra.mxu0 %v2496
    %2577 = vmatpush.msra.mxu0 %v2492
    %2578 = vmatpush.msra.mxu0 %v2488
    %2579 = vmatpush.msra.mxu0 %v2484
    %2580 = vmatpush.msra.mxu0 %v2480
    %2581 = vmatpush.msra.mxu0 %v2476
    %2582 = vmatpush.msra.mxu0 %v2472
    %2583 = vmatpush.msra.mxu0 %v2468
    %2584 = vmatpush.msra.mxu0 %v2464
    %2585 = vmatpush.msra.mxu0 %v2460
    %2586 = vmatpush.msra.mxu0 %v2456
    %2587 = vmatpush.msra.mxu0 %v2452
    %2588 = vmatpush.msra.mxu0 %v2448
    %2589 = vmatmul.f32.gmra.mxu0 0.0
    %v2590 = vpop.f32.mrf.mxu0
    %v2591 = vadd.f32 0.0, %v2590
    %2592 = vdwg.mxu0
    %v2593 = vadd.f32 %v2509, %v2531
    %v2594 = vadd.f32 %v2510, %v2551
    %v2595 = vadd.f32 %v2511, %v2571
    %v2596 = vadd.f32 %v2512, %v2591
    %v2597 = vxor.u32 %v2593, 2147483648
    %v2598 = vxor.u32 %v2594, 2147483648
    %v2599 = vxor.u32 %v2595, 2147483648
    %v2600 = vmul.f32 %v2597, 1.442695
    %v2601 = vpow.pop %v2600
    %v2602 = vmul.f32 %v2598, 1.442695
    %v2603 = vpow.pop %v2602
    %v2604 = vmul.f32 %v2599, 1.442695
    %v2605 = vpow.pop %v2604
    %v2606 = vadd.f32 %v2601, 1.0
    %v2607 = vadd.f32 %v2603, 1.0
    %v2608 = vadd.f32 %v2605, 1.0
    %v2609 = vrcp.pop %v2606
    %v2610 = vmul.f32 %v2606, %v2609
    %v2611 = vsub.f32 1.0, %v2610
    %v2612 = vmul.f32 %v2609, %v2611
    %v2613 = vadd.f32 %v2609, %v2612
    %vm2614 = vweird.f32 %v2606
    %vm2615 = vweird.f32 %v2609
    %vm2616 = vmor %vm2614, %vm2615
    %v2617 = vsel %vm2616, %v2609, %v2613
    %v2618 = vand.u32 2147483647, %v2606
    %vm2619 = vcmp.eq.f32.partialorder %v2618, 8.507059e+37
    %v2620 = vand.u32 %v2606, 2147483648
    %v2621 = vor.u32 1.1754944e-38, %v2620
    %v2622 = vsel %vm2619, %v2621, %v2617
    %v2623 = vmul.f32 1.0, %v2622
    %v2624 = vrcp.pop %v2607
    %v2625 = vmul.f32 %v2607, %v2624
    %v2626 = vsub.f32 1.0, %v2625
    %v2627 = vmul.f32 %v2624, %v2626
    %v2628 = vadd.f32 %v2624, %v2627
    %vm2629 = vweird.f32 %v2607
    %vm2630 = vweird.f32 %v2624
    %vm2631 = vmor %vm2629, %vm2630
    %v2632 = vsel %vm2631, %v2624, %v2628
    %v2633 = vand.u32 2147483647, %v2607
    %vm2634 = vcmp.eq.f32.partialorder %v2633, 8.507059e+37
    %v2635 = vand.u32 %v2607, 2147483648
    %v2636 = vor.u32 1.1754944e-38, %v2635
    %v2637 = vsel %vm2634, %v2636, %v2632
    %v2638 = vmul.f32 1.0, %v2637
    %v2639 = vrcp.pop %v2608
    %v2640 = vmul.f32 %v2608, %v2639
    %v2641 = vsub.f32 1.0, %v2640
    %v2642 = vmul.f32 %v2639, %v2641
    %v2643 = vadd.f32 %v2639, %v2642
    %vm2644 = vweird.f32 %v2608
    %vm2645 = vweird.f32 %v2639
    %vm2646 = vmor %vm2644, %vm2645
    %v2647 = vsel %vm2646, %v2639, %v2643
    %v2648 = vand.u32 2147483647, %v2608
    %vm2649 = vcmp.eq.f32.partialorder %v2648, 8.507059e+37
    %v2650 = vand.u32 %v2608, 2147483648
    %v2651 = vor.u32 1.1754944e-38, %v2650
    %v2652 = vsel %vm2649, %v2651, %v2647
    %v2653 = vmul.f32 1.0, %v2652
    %v2654 = vtanh.pop %v2596
    %v2655 = vmul.f32 %v2638, 0.0
    %v2656 = vmul.f32 %v2623, %v2654
    %v2657 = vadd.f32 %v2655, %v2656
    %v2658 = vtanh.pop %v2657
    %v2659 = vmul.f32 %v2653, %v2658
    %v2660 = vsel %vm1079, %v2657, 0.0
    %v2661 = vsel %vm1079, %v2659, 0.0
    %v2662 = vld [vmem:[#allocation2 + $0x20] sm:$0xff]
    %v2663 = vld [vmem:[#allocation2 + $0x28] sm:$0xff]
    %v2664 = vld [vmem:[#allocation2 + $0x30] sm:$0xff]
    %v2665 = vld [vmem:[#allocation2 + $0x38] sm:$0xff]
    %2666 = vmatpush.msra.mxu0 %v2505
    %2667 = vmatpush.msra.mxu0 %v2501
    %2668 = vmatpush.msra.mxu0 %v2497
    %2669 = vmatpush.msra.mxu0 %v2493
    %2670 = vmatpush.msra.mxu0 %v2489
    %2671 = vmatpush.msra.mxu0 %v2485
    %2672 = vmatpush.msra.mxu0 %v2481
    %2673 = vmatpush.msra.mxu0 %v2477
    %2674 = vmatpush.msra.mxu0 %v2473
    %2675 = vmatpush.msra.mxu0 %v2469
    %2676 = vmatpush.msra.mxu0 %v2465
    %2677 = vmatpush.msra.mxu0 %v2461
    %2678 = vmatpush.msra.mxu0 %v2457
    %2679 = vmatpush.msra.mxu0 %v2453
    %2680 = vmatpush.msra.mxu0 %v2449
    %2681 = vmatpush.msra.mxu0 %v2445
    %2682 = vmatmul.f32.gmra.mxu0 %v2661
    %v2683 = vpop.f32.mrf.mxu0
    %v2684 = vadd.f32 0.0, %v2683
    %2685 = vdwg.mxu0
    %2686 = vmatpush.msra.mxu0 %v2506
    %2687 = vmatpush.msra.mxu0 %v2502
    %2688 = vmatpush.msra.mxu0 %v2498
    %2689 = vmatpush.msra.mxu0 %v2494
    %2690 = vmatpush.msra.mxu0 %v2490
    %2691 = vmatpush.msra.mxu0 %v2486
    %2692 = vmatpush.msra.mxu0 %v2482
    %2693 = vmatpush.msra.mxu0 %v2478
    %2694 = vmatpush.msra.mxu0 %v2474
    %2695 = vmatpush.msra.mxu0 %v2470
    %2696 = vmatpush.msra.mxu0 %v2466
    %2697 = vmatpush.msra.mxu0 %v2462
    %2698 = vmatpush.msra.mxu0 %v2458
    %2699 = vmatpush.msra.mxu0 %v2454
    %2700 = vmatpush.msra.mxu0 %v2450
    %2701 = vmatpush.msra.mxu0 %v2446
    %2702 = vmatmul.f32.gmra.mxu0 %v2661
    %v2703 = vpop.f32.mrf.mxu0
    %v2704 = vadd.f32 0.0, %v2703
    %2705 = vdwg.mxu0
    %2706 = vmatpush.msra.mxu0 %v2507
    %2707 = vmatpush.msra.mxu0 %v2503
    %2708 = vmatpush.msra.mxu0 %v2499
    %2709 = vmatpush.msra.mxu0 %v2495
    %2710 = vmatpush.msra.mxu0 %v2491
    %2711 = vmatpush.msra.mxu0 %v2487
    %2712 = vmatpush.msra.mxu0 %v2483
    %2713 = vmatpush.msra.mxu0 %v2479
    %2714 = vmatpush.msra.mxu0 %v2475
    %2715 = vmatpush.msra.mxu0 %v2471
    %2716 = vmatpush.msra.mxu0 %v2467
    %2717 = vmatpush.msra.mxu0 %v2463
    %2718 = vmatpush.msra.mxu0 %v2459
    %2719 = vmatpush.msra.mxu0 %v2455
    %2720 = vmatpush.msra.mxu0 %v2451
    %2721 = vmatpush.msra.mxu0 %v2447
    %2722 = vmatmul.f32.gmra.mxu0 %v2661
    %v2723 = vpop.f32.mrf.mxu0
    %v2724 = vadd.f32 0.0, %v2723
    %2725 = vdwg.mxu0
    %2726 = vmatpush.msra.mxu0 %v2508
    %2727 = vmatpush.msra.mxu0 %v2504
    %2728 = vmatpush.msra.mxu0 %v2500
    %2729 = vmatpush.msra.mxu0 %v2496
    %2730 = vmatpush.msra.mxu0 %v2492
    %2731 = vmatpush.msra.mxu0 %v2488
    %2732 = vmatpush.msra.mxu0 %v2484
    %2733 = vmatpush.msra.mxu0 %v2480
    %2734 = vmatpush.msra.mxu0 %v2476
    %2735 = vmatpush.msra.mxu0 %v2472
    %2736 = vmatpush.msra.mxu0 %v2468
    %2737 = vmatpush.msra.mxu0 %v2464
    %2738 = vmatpush.msra.mxu0 %v2460
    %2739 = vmatpush.msra.mxu0 %v2456
    %2740 = vmatpush.msra.mxu0 %v2452
    %2741 = vmatpush.msra.mxu0 %v2448
    %2742 = vmatmul.f32.gmra.mxu0 %v2661
    %v2743 = vpop.f32.mrf.mxu0
    %v2744 = vadd.f32 0.0, %v2743
    %2745 = vdwg.mxu0
    %v2746 = vadd.f32 %v2662, %v2684
    %v2747 = vadd.f32 %v2663, %v2704
    %v2748 = vadd.f32 %v2664, %v2724
    %v2749 = vadd.f32 %v2665, %v2744
    %v2750 = vxor.u32 %v2746, 2147483648
    %v2751 = vxor.u32 %v2747, 2147483648
    %v2752 = vxor.u32 %v2748, 2147483648
    %v2753 = vmul.f32 %v2750, 1.442695
    %v2754 = vpow.pop %v2753
    %v2755 = vmul.f32 %v2751, 1.442695
    %v2756 = vpow.pop %v2755
    %v2757 = vmul.f32 %v2752, 1.442695
    %v2758 = vpow.pop %v2757
    %v2759 = vadd.f32 %v2754, 1.0
    %v2760 = vadd.f32 %v2756, 1.0
    %v2761 = vadd.f32 %v2758, 1.0
    %v2762 = vrcp.pop %v2759
    %v2763 = vmul.f32 %v2759, %v2762
    %v2764 = vsub.f32 1.0, %v2763
    %v2765 = vmul.f32 %v2762, %v2764
    %v2766 = vadd.f32 %v2762, %v2765
    %vm2767 = vweird.f32 %v2759
    %vm2768 = vweird.f32 %v2762
    %vm2769 = vmor %vm2767, %vm2768
    %v2770 = vsel %vm2769, %v2762, %v2766
    %v2771 = vand.u32 2147483647, %v2759
    %vm2772 = vcmp.eq.f32.partialorder %v2771, 8.507059e+37
    %v2773 = vand.u32 %v2759, 2147483648
    %v2774 = vor.u32 1.1754944e-38, %v2773
    %v2775 = vsel %vm2772, %v2774, %v2770
    %v2776 = vmul.f32 1.0, %v2775
    %v2777 = vrcp.pop %v2760
    %v2778 = vmul.f32 %v2760, %v2777
    %v2779 = vsub.f32 1.0, %v2778
    %v2780 = vmul.f32 %v2777, %v2779
    %v2781 = vadd.f32 %v2777, %v2780
    %vm2782 = vweird.f32 %v2760
    %vm2783 = vweird.f32 %v2777
    %vm2784 = vmor %vm2782, %vm2783
    %v2785 = vsel %vm2784, %v2777, %v2781
    %v2786 = vand.u32 2147483647, %v2760
    %vm2787 = vcmp.eq.f32.partialorder %v2786, 8.507059e+37
    %v2788 = vand.u32 %v2760, 2147483648
    %v2789 = vor.u32 1.1754944e-38, %v2788
    %v2790 = vsel %vm2787, %v2789, %v2785
    %v2791 = vmul.f32 1.0, %v2790
    %v2792 = vrcp.pop %v2761
    %v2793 = vmul.f32 %v2761, %v2792
    %v2794 = vsub.f32 1.0, %v2793
    %v2795 = vmul.f32 %v2792, %v2794
    %v2796 = vadd.f32 %v2792, %v2795
    %vm2797 = vweird.f32 %v2761
    %vm2798 = vweird.f32 %v2792
    %vm2799 = vmor %vm2797, %vm2798
    %v2800 = vsel %vm2799, %v2792, %v2796
    %v2801 = vand.u32 2147483647, %v2761
    %vm2802 = vcmp.eq.f32.partialorder %v2801, 8.507059e+37
    %v2803 = vand.u32 %v2761, 2147483648
    %v2804 = vor.u32 1.1754944e-38, %v2803
    %v2805 = vsel %vm2802, %v2804, %v2800
    %v2806 = vmul.f32 1.0, %v2805
    %v2807 = vtanh.pop %v2749
    %v2808 = vmul.f32 %v2791, %v2660
    %v2809 = vmul.f32 %v2776, %v2807
    %v2810 = vadd.f32 %v2808, %v2809
    %v2811 = vtanh.pop %v2810
    %v2812 = vmul.f32 %v2806, %v2811
    %v2813 = vsel %vm1234, %v2810, %v2660
    %v2814 = vsel %vm1234, %v2812, %v2661
    %v2815 = vld [vmem:[#allocation2 + $0x40] sm:$0xff]
    %v2816 = vld [vmem:[#allocation2 + $0x48] sm:$0xff]
    %v2817 = vld [vmem:[#allocation2 + $0x50] sm:$0xff]
    %v2818 = vld [vmem:[#allocation2 + $0x58] sm:$0xff]
    %2819 = vmatpush.msra.mxu0 %v2505
    %2820 = vmatpush.msra.mxu0 %v2501
    %2821 = vmatpush.msra.mxu0 %v2497
    %2822 = vmatpush.msra.mxu0 %v2493
    %2823 = vmatpush.msra.mxu0 %v2489
    %2824 = vmatpush.msra.mxu0 %v2485
    %2825 = vmatpush.msra.mxu0 %v2481
    %2826 = vmatpush.msra.mxu0 %v2477
    %2827 = vmatpush.msra.mxu0 %v2473
    %2828 = vmatpush.msra.mxu0 %v2469
    %2829 = vmatpush.msra.mxu0 %v2465
    %2830 = vmatpush.msra.mxu0 %v2461
    %2831 = vmatpush.msra.mxu0 %v2457
    %2832 = vmatpush.msra.mxu0 %v2453
    %2833 = vmatpush.msra.mxu0 %v2449
    %2834 = vmatpush.msra.mxu0 %v2445
    %2835 = vmatmul.f32.gmra.mxu0 %v2814
    %v2836 = vpop.f32.mrf.mxu0
    %v2837 = vadd.f32 0.0, %v2836
    %2838 = vdwg.mxu0
    %2839 = vmatpush.msra.mxu0 %v2506
    %2840 = vmatpush.msra.mxu0 %v2502
    %2841 = vmatpush.msra.mxu0 %v2498
    %2842 = vmatpush.msra.mxu0 %v2494
    %2843 = vmatpush.msra.mxu0 %v2490
    %2844 = vmatpush.msra.mxu0 %v2486
    %2845 = vmatpush.msra.mxu0 %v2482
    %2846 = vmatpush.msra.mxu0 %v2478
    %2847 = vmatpush.msra.mxu0 %v2474
    %2848 = vmatpush.msra.mxu0 %v2470
    %2849 = vmatpush.msra.mxu0 %v2466
    %2850 = vmatpush.msra.mxu0 %v2462
    %2851 = vmatpush.msra.mxu0 %v2458
    %2852 = vmatpush.msra.mxu0 %v2454
    %2853 = vmatpush.msra.mxu0 %v2450
    %2854 = vmatpush.msra.mxu0 %v2446
    %2855 = vmatmul.f32.gmra.mxu0 %v2814
    %v2856 = vpop.f32.mrf.mxu0
    %v2857 = vadd.f32 0.0, %v2856
    %2858 = vdwg.mxu0
    %2859 = vmatpush.msra.mxu0 %v2507
    %2860 = vmatpush.msra.mxu0 %v2503
    %2861 = vmatpush.msra.mxu0 %v2499
    %2862 = vmatpush.msra.mxu0 %v2495
    %2863 = vmatpush.msra.mxu0 %v2491
    %2864 = vmatpush.msra.mxu0 %v2487
    %2865 = vmatpush.msra.mxu0 %v2483
    %2866 = vmatpush.msra.mxu0 %v2479
    %2867 = vmatpush.msra.mxu0 %v2475
    %2868 = vmatpush.msra.mxu0 %v2471
    %2869 = vmatpush.msra.mxu0 %v2467
    %2870 = vmatpush.msra.mxu0 %v2463
    %2871 = vmatpush.msra.mxu0 %v2459
    %2872 = vmatpush.msra.mxu0 %v2455
    %2873 = vmatpush.msra.mxu0 %v2451
    %2874 = vmatpush.msra.mxu0 %v2447
    %2875 = vmatmul.f32.gmra.mxu0 %v2814
    %v2876 = vpop.f32.mrf.mxu0
    %v2877 = vadd.f32 0.0, %v2876
    %2878 = vdwg.mxu0
    %2879 = vmatpush.msra.mxu0 %v2508
    %2880 = vmatpush.msra.mxu0 %v2504
    %2881 = vmatpush.msra.mxu0 %v2500
    %2882 = vmatpush.msra.mxu0 %v2496
    %2883 = vmatpush.msra.mxu0 %v2492
    %2884 = vmatpush.msra.mxu0 %v2488
    %2885 = vmatpush.msra.mxu0 %v2484
    %2886 = vmatpush.msra.mxu0 %v2480
    %2887 = vmatpush.msra.mxu0 %v2476
    %2888 = vmatpush.msra.mxu0 %v2472
    %2889 = vmatpush.msra.mxu0 %v2468
    %2890 = vmatpush.msra.mxu0 %v2464
    %2891 = vmatpush.msra.mxu0 %v2460
    %2892 = vmatpush.msra.mxu0 %v2456
    %2893 = vmatpush.msra.mxu0 %v2452
    %2894 = vmatpush.msra.mxu0 %v2448
    %2895 = vmatmul.f32.gmra.mxu0 %v2814
    %v2896 = vpop.f32.mrf.mxu0
    %v2897 = vadd.f32 0.0, %v2896
    %2898 = vdwg.mxu0
    %v2899 = vadd.f32 %v2815, %v2837
    %v2900 = vadd.f32 %v2816, %v2857
    %v2901 = vadd.f32 %v2817, %v2877
    %v2902 = vadd.f32 %v2818, %v2897
    %v2903 = vxor.u32 %v2899, 2147483648
    %v2904 = vxor.u32 %v2900, 2147483648
    %v2905 = vxor.u32 %v2901, 2147483648
    %v2906 = vmul.f32 %v2903, 1.442695
    %v2907 = vpow.pop %v2906
    %v2908 = vmul.f32 %v2904, 1.442695
    %v2909 = vpow.pop %v2908
    %v2910 = vmul.f32 %v2905, 1.442695
    %v2911 = vpow.pop %v2910
    %v2912 = vadd.f32 %v2907, 1.0
    %v2913 = vadd.f32 %v2909, 1.0
    %v2914 = vadd.f32 %v2911, 1.0
    %v2915 = vrcp.pop %v2912
    %v2916 = vmul.f32 %v2912, %v2915
    %v2917 = vsub.f32 1.0, %v2916
    %v2918 = vmul.f32 %v2915, %v2917
    %v2919 = vadd.f32 %v2915, %v2918
    %vm2920 = vweird.f32 %v2912
    %vm2921 = vweird.f32 %v2915
    %vm2922 = vmor %vm2920, %vm2921
    %v2923 = vsel %vm2922, %v2915, %v2919
    %v2924 = vand.u32 2147483647, %v2912
    %vm2925 = vcmp.eq.f32.partialorder %v2924, 8.507059e+37
    %v2926 = vand.u32 %v2912, 2147483648
    %v2927 = vor.u32 1.1754944e-38, %v2926
    %v2928 = vsel %vm2925, %v2927, %v2923
    %v2929 = vmul.f32 1.0, %v2928
    %v2930 = vrcp.pop %v2913
    %v2931 = vmul.f32 %v2913, %v2930
    %v2932 = vsub.f32 1.0, %v2931
    %v2933 = vmul.f32 %v2930, %v2932
    %v2934 = vadd.f32 %v2930, %v2933
    %vm2935 = vweird.f32 %v2913
    %vm2936 = vweird.f32 %v2930
    %vm2937 = vmor %vm2935, %vm2936
    %v2938 = vsel %vm2937, %v2930, %v2934
    %v2939 = vand.u32 2147483647, %v2913
    %vm2940 = vcmp.eq.f32.partialorder %v2939, 8.507059e+37
    %v2941 = vand.u32 %v2913, 2147483648
    %v2942 = vor.u32 1.1754944e-38, %v2941
    %v2943 = vsel %vm2940, %v2942, %v2938
    %v2944 = vmul.f32 1.0, %v2943
    %v2945 = vrcp.pop %v2914
    %v2946 = vmul.f32 %v2914, %v2945
    %v2947 = vsub.f32 1.0, %v2946
    %v2948 = vmul.f32 %v2945, %v2947
    %v2949 = vadd.f32 %v2945, %v2948
    %vm2950 = vweird.f32 %v2914
    %vm2951 = vweird.f32 %v2945
    %vm2952 = vmor %vm2950, %vm2951
    %v2953 = vsel %vm2952, %v2945, %v2949
    %v2954 = vand.u32 2147483647, %v2914
    %vm2955 = vcmp.eq.f32.partialorder %v2954, 8.507059e+37
    %v2956 = vand.u32 %v2914, 2147483648
    %v2957 = vor.u32 1.1754944e-38, %v2956
    %v2958 = vsel %vm2955, %v2957, %v2953
    %v2959 = vmul.f32 1.0, %v2958
    %v2960 = vtanh.pop %v2902
    %v2961 = vmul.f32 %v2944, %v2813
    %v2962 = vmul.f32 %v2929, %v2960
    %v2963 = vadd.f32 %v2961, %v2962
    %v2964 = vtanh.pop %v2963
    %v2965 = vmul.f32 %v2959, %v2964
    %v2966 = vsel %vm1389, %v2963, %v2813
    %v2967 = vsel %vm1389, %v2965, %v2814
    %v2968 = vld [vmem:[#allocation2 + $0x60] sm:$0xff]
    %v2969 = vld [vmem:[#allocation2 + $0x68] sm:$0xff]
    %v2970 = vld [vmem:[#allocation2 + $0x70] sm:$0xff]
    %v2971 = vld [vmem:[#allocation2 + $0x78] sm:$0xff]
    %2972 = vmatpush.msra.mxu0 %v2505
    %2973 = vmatpush.msra.mxu0 %v2501
    %2974 = vmatpush.msra.mxu0 %v2497
    %2975 = vmatpush.msra.mxu0 %v2493
    %2976 = vmatpush.msra.mxu0 %v2489
    %2977 = vmatpush.msra.mxu0 %v2485
    %2978 = vmatpush.msra.mxu0 %v2481
    %2979 = vmatpush.msra.mxu0 %v2477
    %2980 = vmatpush.msra.mxu0 %v2473
    %2981 = vmatpush.msra.mxu0 %v2469
    %2982 = vmatpush.msra.mxu0 %v2465
    %2983 = vmatpush.msra.mxu0 %v2461
    %2984 = vmatpush.msra.mxu0 %v2457
    %2985 = vmatpush.msra.mxu0 %v2453
    %2986 = vmatpush.msra.mxu0 %v2449
    %2987 = vmatpush.msra.mxu0 %v2445
    %2988 = vmatmul.f32.gmra.mxu0 %v2967
    %v2989 = vpop.f32.mrf.mxu0
    %v2990 = vadd.f32 0.0, %v2989
    %2991 = vdwg.mxu0
    %2992 = vmatpush.msra.mxu0 %v2506
    %2993 = vmatpush.msra.mxu0 %v2502
    %2994 = vmatpush.msra.mxu0 %v2498
    %2995 = vmatpush.msra.mxu0 %v2494
    %2996 = vmatpush.msra.mxu0 %v2490
    %2997 = vmatpush.msra.mxu0 %v2486
    %2998 = vmatpush.msra.mxu0 %v2482
    %2999 = vmatpush.msra.mxu0 %v2478
    %3000 = vmatpush.msra.mxu0 %v2474
    %3001 = vmatpush.msra.mxu0 %v2470
    %3002 = vmatpush.msra.mxu0 %v2466
    %3003 = vmatpush.msra.mxu0 %v2462
    %3004 = vmatpush.msra.mxu0 %v2458
    %3005 = vmatpush.msra.mxu0 %v2454
    %3006 = vmatpush.msra.mxu0 %v2450
    %3007 = vmatpush.msra.mxu0 %v2446
    %3008 = vmatmul.f32.gmra.mxu0 %v2967
    %v3009 = vpop.f32.mrf.mxu0
    %v3010 = vadd.f32 0.0, %v3009
    %3011 = vdwg.mxu0
    %3012 = vmatpush.msra.mxu0 %v2507
    %3013 = vmatpush.msra.mxu0 %v2503
    %3014 = vmatpush.msra.mxu0 %v2499
    %3015 = vmatpush.msra.mxu0 %v2495
    %3016 = vmatpush.msra.mxu0 %v2491
    %3017 = vmatpush.msra.mxu0 %v2487
    %3018 = vmatpush.msra.mxu0 %v2483
    %3019 = vmatpush.msra.mxu0 %v2479
    %3020 = vmatpush.msra.mxu0 %v2475
    %3021 = vmatpush.msra.mxu0 %v2471
    %3022 = vmatpush.msra.mxu0 %v2467
    %3023 = vmatpush.msra.mxu0 %v2463
    %3024 = vmatpush.msra.mxu0 %v2459
    %3025 = vmatpush.msra.mxu0 %v2455
    %3026 = vmatpush.msra.mxu0 %v2451
    %3027 = vmatpush.msra.mxu0 %v2447
    %3028 = vmatmul.f32.gmra.mxu0 %v2967
    %v3029 = vpop.f32.mrf.mxu0
    %v3030 = vadd.f32 0.0, %v3029
    %3031 = vdwg.mxu0
    %3032 = vmatpush.msra.mxu0 %v2508
    %3033 = vmatpush.msra.mxu0 %v2504
    %3034 = vmatpush.msra.mxu0 %v2500
    %3035 = vmatpush.msra.mxu0 %v2496
    %3036 = vmatpush.msra.mxu0 %v2492
    %3037 = vmatpush.msra.mxu0 %v2488
    %3038 = vmatpush.msra.mxu0 %v2484
    %3039 = vmatpush.msra.mxu0 %v2480
    %3040 = vmatpush.msra.mxu0 %v2476
    %3041 = vmatpush.msra.mxu0 %v2472
    %3042 = vmatpush.msra.mxu0 %v2468
    %3043 = vmatpush.msra.mxu0 %v2464
    %3044 = vmatpush.msra.mxu0 %v2460
    %3045 = vmatpush.msra.mxu0 %v2456
    %3046 = vmatpush.msra.mxu0 %v2452
    %3047 = vmatpush.msra.mxu0 %v2448
    %3048 = vmatmul.f32.gmra.mxu0 %v2967
    %v3049 = vpop.f32.mrf.mxu0
    %v3050 = vadd.f32 0.0, %v3049
    %3051 = vdwg.mxu0
    %v3052 = vadd.f32 %v2968, %v2990
    %v3053 = vadd.f32 %v2969, %v3010
    %v3054 = vadd.f32 %v2970, %v3030
    %v3055 = vadd.f32 %v2971, %v3050
    %v3056 = vxor.u32 %v3052, 2147483648
    %v3057 = vxor.u32 %v3053, 2147483648
    %v3058 = vxor.u32 %v3054, 2147483648
    %v3059 = vmul.f32 %v3056, 1.442695
    %v3060 = vpow.pop %v3059
    %v3061 = vmul.f32 %v3057, 1.442695
    %v3062 = vpow.pop %v3061
    %v3063 = vmul.f32 %v3058, 1.442695
    %v3064 = vpow.pop %v3063
    %v3065 = vadd.f32 %v3060, 1.0
    %v3066 = vadd.f32 %v3062, 1.0
    %v3067 = vadd.f32 %v3064, 1.0
    %v3068 = vrcp.pop %v3065
    %v3069 = vmul.f32 %v3065, %v3068
    %v3070 = vsub.f32 1.0, %v3069
    %v3071 = vmul.f32 %v3068, %v3070
    %v3072 = vadd.f32 %v3068, %v3071
    %vm3073 = vweird.f32 %v3065
    %vm3074 = vweird.f32 %v3068
    %vm3075 = vmor %vm3073, %vm3074
    %v3076 = vsel %vm3075, %v3068, %v3072
    %v3077 = vand.u32 2147483647, %v3065
    %vm3078 = vcmp.eq.f32.partialorder %v3077, 8.507059e+37
    %v3079 = vand.u32 %v3065, 2147483648
    %v3080 = vor.u32 1.1754944e-38, %v3079
    %v3081 = vsel %vm3078, %v3080, %v3076
    %v3082 = vmul.f32 1.0, %v3081
    %v3083 = vrcp.pop %v3066
    %v3084 = vmul.f32 %v3066, %v3083
    %v3085 = vsub.f32 1.0, %v3084
    %v3086 = vmul.f32 %v3083, %v3085
    %v3087 = vadd.f32 %v3083, %v3086
    %vm3088 = vweird.f32 %v3066
    %vm3089 = vweird.f32 %v3083
    %vm3090 = vmor %vm3088, %vm3089
    %v3091 = vsel %vm3090, %v3083, %v3087
    %v3092 = vand.u32 2147483647, %v3066
    %vm3093 = vcmp.eq.f32.partialorder %v3092, 8.507059e+37
    %v3094 = vand.u32 %v3066, 2147483648
    %v3095 = vor.u32 1.1754944e-38, %v3094
    %v3096 = vsel %vm3093, %v3095, %v3091
    %v3097 = vmul.f32 1.0, %v3096
    %v3098 = vrcp.pop %v3067
    %v3099 = vmul.f32 %v3067, %v3098
    %v3100 = vsub.f32 1.0, %v3099
    %v3101 = vmul.f32 %v3098, %v3100
    %v3102 = vadd.f32 %v3098, %v3101
    %vm3103 = vweird.f32 %v3067
    %vm3104 = vweird.f32 %v3098
    %vm3105 = vmor %vm3103, %vm3104
    %v3106 = vsel %vm3105, %v3098, %v3102
    %v3107 = vand.u32 2147483647, %v3067
    %vm3108 = vcmp.eq.f32.partialorder %v3107, 8.507059e+37
    %v3109 = vand.u32 %v3067, 2147483648
    %v3110 = vor.u32 1.1754944e-38, %v3109
    %v3111 = vsel %vm3108, %v3110, %v3106
    %v3112 = vmul.f32 1.0, %v3111
    %v3113 = vtanh.pop %v3055
    %v3114 = vmul.f32 %v3097, %v2966
    %v3115 = vmul.f32 %v3082, %v3113
    %v3116 = vadd.f32 %v3114, %v3115
    %v3117 = vtanh.pop %v3116
    %v3118 = vmul.f32 %v3112, %v3117
    %v3119 = vsel %vm1544, %v3116, %v2966
    %v3120 = vsel %vm1544, %v3118, %v2967
    %v3121 = vld [vmem:[#allocation2 + $0x80] sm:$0xff]
    %v3122 = vld [vmem:[#allocation2 + $0x88] sm:$0xff]
    %v3123 = vld [vmem:[#allocation2 + $0x90] sm:$0xff]
    %v3124 = vld [vmem:[#allocation2 + $0x98] sm:$0xff]
    %3125 = vmatpush.msra.mxu0 %v2505
    %3126 = vmatpush.msra.mxu0 %v2501
    %3127 = vmatpush.msra.mxu0 %v2497
    %3128 = vmatpush.msra.mxu0 %v2493
    %3129 = vmatpush.msra.mxu0 %v2489
    %3130 = vmatpush.msra.mxu0 %v2485
    %3131 = vmatpush.msra.mxu0 %v2481
    %3132 = vmatpush.msra.mxu0 %v2477
    %3133 = vmatpush.msra.mxu0 %v2473
    %3134 = vmatpush.msra.mxu0 %v2469
    %3135 = vmatpush.msra.mxu0 %v2465
    %3136 = vmatpush.msra.mxu0 %v2461
    %3137 = vmatpush.msra.mxu0 %v2457
    %3138 = vmatpush.msra.mxu0 %v2453
    %3139 = vmatpush.msra.mxu0 %v2449
    %3140 = vmatpush.msra.mxu0 %v2445
    %3141 = vmatmul.f32.gmra.mxu0 %v3120
    %v3142 = vpop.f32.mrf.mxu0
    %v3143 = vadd.f32 0.0, %v3142
    %3144 = vdwg.mxu0
    %3145 = vmatpush.msra.mxu0 %v2506
    %3146 = vmatpush.msra.mxu0 %v2502
    %3147 = vmatpush.msra.mxu0 %v2498
    %3148 = vmatpush.msra.mxu0 %v2494
    %3149 = vmatpush.msra.mxu0 %v2490
    %3150 = vmatpush.msra.mxu0 %v2486
    %3151 = vmatpush.msra.mxu0 %v2482
    %3152 = vmatpush.msra.mxu0 %v2478
    %3153 = vmatpush.msra.mxu0 %v2474
    %3154 = vmatpush.msra.mxu0 %v2470
    %3155 = vmatpush.msra.mxu0 %v2466
    %3156 = vmatpush.msra.mxu0 %v2462
    %3157 = vmatpush.msra.mxu0 %v2458
    %3158 = vmatpush.msra.mxu0 %v2454
    %3159 = vmatpush.msra.mxu0 %v2450
    %3160 = vmatpush.msra.mxu0 %v2446
    %3161 = vmatmul.f32.gmra.mxu0 %v3120
    %v3162 = vpop.f32.mrf.mxu0
    %v3163 = vadd.f32 0.0, %v3162
    %3164 = vdwg.mxu0
    %3165 = vmatpush.msra.mxu0 %v2507
    %3166 = vmatpush.msra.mxu0 %v2503
    %3167 = vmatpush.msra.mxu0 %v2499
    %3168 = vmatpush.msra.mxu0 %v2495
    %3169 = vmatpush.msra.mxu0 %v2491
    %3170 = vmatpush.msra.mxu0 %v2487
    %3171 = vmatpush.msra.mxu0 %v2483
    %3172 = vmatpush.msra.mxu0 %v2479
    %3173 = vmatpush.msra.mxu0 %v2475
    %3174 = vmatpush.msra.mxu0 %v2471
    %3175 = vmatpush.msra.mxu0 %v2467
    %3176 = vmatpush.msra.mxu0 %v2463
    %3177 = vmatpush.msra.mxu0 %v2459
    %3178 = vmatpush.msra.mxu0 %v2455
    %3179 = vmatpush.msra.mxu0 %v2451
    %3180 = vmatpush.msra.mxu0 %v2447
    %3181 = vmatmul.f32.gmra.mxu0 %v3120
    %v3182 = vpop.f32.mrf.mxu0
    %v3183 = vadd.f32 0.0, %v3182
    %3184 = vdwg.mxu0
    %3185 = vmatpush.msra.mxu0 %v2508
    %3186 = vmatpush.msra.mxu0 %v2504
    %3187 = vmatpush.msra.mxu0 %v2500
    %3188 = vmatpush.msra.mxu0 %v2496
    %3189 = vmatpush.msra.mxu0 %v2492
    %3190 = vmatpush.msra.mxu0 %v2488
    %3191 = vmatpush.msra.mxu0 %v2484
    %3192 = vmatpush.msra.mxu0 %v2480
    %3193 = vmatpush.msra.mxu0 %v2476
    %3194 = vmatpush.msra.mxu0 %v2472
    %3195 = vmatpush.msra.mxu0 %v2468
    %3196 = vmatpush.msra.mxu0 %v2464
    %3197 = vmatpush.msra.mxu0 %v2460
    %3198 = vmatpush.msra.mxu0 %v2456
    %3199 = vmatpush.msra.mxu0 %v2452
    %3200 = vmatpush.msra.mxu0 %v2448
    %3201 = vmatmul.f32.gmra.mxu0 %v3120
    %v3202 = vpop.f32.mrf.mxu0
    %v3203 = vadd.f32 0.0, %v3202
    %3204 = vdwg.mxu0
    %v3205 = vadd.f32 %v3121, %v3143
    %v3206 = vadd.f32 %v3122, %v3163
    %v3207 = vadd.f32 %v3123, %v3183
    %v3208 = vadd.f32 %v3124, %v3203
    %v3209 = vxor.u32 %v3205, 2147483648
    %v3210 = vxor.u32 %v3206, 2147483648
    %v3211 = vxor.u32 %v3207, 2147483648
    %v3212 = vmul.f32 %v3209, 1.442695
    %v3213 = vpow.pop %v3212
    %v3214 = vmul.f32 %v3210, 1.442695
    %v3215 = vpow.pop %v3214
    %v3216 = vmul.f32 %v3211, 1.442695
    %v3217 = vpow.pop %v3216
    %v3218 = vadd.f32 %v3213, 1.0
    %v3219 = vadd.f32 %v3215, 1.0
    %v3220 = vadd.f32 %v3217, 1.0
    %v3221 = vrcp.pop %v3218
    %v3222 = vmul.f32 %v3218, %v3221
    %v3223 = vsub.f32 1.0, %v3222
    %v3224 = vmul.f32 %v3221, %v3223
    %v3225 = vadd.f32 %v3221, %v3224
    %vm3226 = vweird.f32 %v3218
    %vm3227 = vweird.f32 %v3221
    %vm3228 = vmor %vm3226, %vm3227
    %v3229 = vsel %vm3228, %v3221, %v3225
    %v3230 = vand.u32 2147483647, %v3218
    %vm3231 = vcmp.eq.f32.partialorder %v3230, 8.507059e+37
    %v3232 = vand.u32 %v3218, 2147483648
    %v3233 = vor.u32 1.1754944e-38, %v3232
    %v3234 = vsel %vm3231, %v3233, %v3229
    %v3235 = vmul.f32 1.0, %v3234
    %v3236 = vrcp.pop %v3219
    %v3237 = vmul.f32 %v3219, %v3236
    %v3238 = vsub.f32 1.0, %v3237
    %v3239 = vmul.f32 %v3236, %v3238
    %v3240 = vadd.f32 %v3236, %v3239
    %vm3241 = vweird.f32 %v3219
    %vm3242 = vweird.f32 %v3236
    %vm3243 = vmor %vm3241, %vm3242
    %v3244 = vsel %vm3243, %v3236, %v3240
    %v3245 = vand.u32 2147483647, %v3219
    %vm3246 = vcmp.eq.f32.partialorder %v3245, 8.507059e+37
    %v3247 = vand.u32 %v3219, 2147483648
    %v3248 = vor.u32 1.1754944e-38, %v3247
    %v3249 = vsel %vm3246, %v3248, %v3244
    %v3250 = vmul.f32 1.0, %v3249
    %v3251 = vrcp.pop %v3220
    %v3252 = vmul.f32 %v3220, %v3251
    %v3253 = vsub.f32 1.0, %v3252
    %v3254 = vmul.f32 %v3251, %v3253
    %v3255 = vadd.f32 %v3251, %v3254
    %vm3256 = vweird.f32 %v3220
    %vm3257 = vweird.f32 %v3251
    %vm3258 = vmor %vm3256, %vm3257
    %v3259 = vsel %vm3258, %v3251, %v3255
    %v3260 = vand.u32 2147483647, %v3220
    %vm3261 = vcmp.eq.f32.partialorder %v3260, 8.507059e+37
    %v3262 = vand.u32 %v3220, 2147483648
    %v3263 = vor.u32 1.1754944e-38, %v3262
    %v3264 = vsel %vm3261, %v3263, %v3259
    %v3265 = vmul.f32 1.0, %v3264
    %v3266 = vtanh.pop %v3208
    %v3267 = vmul.f32 %v3250, %v3119
    %v3268 = vmul.f32 %v3235, %v3266
    %v3269 = vadd.f32 %v3267, %v3268
    %v3270 = vtanh.pop %v3269
    %v3271 = vmul.f32 %v3265, %v3270
    %v3272 = vsel %vm1699, %v3269, %v3119
    %v3273 = vsel %vm1699, %v3271, %v3120
    %v3274 = vld [vmem:[#allocation2 + $0xa0] sm:$0xff]
    %v3275 = vld [vmem:[#allocation2 + $0xa8] sm:$0xff]
    %v3276 = vld [vmem:[#allocation2 + $0xb0] sm:$0xff]
    %v3277 = vld [vmem:[#allocation2 + $0xb8] sm:$0xff]
    %3278 = vmatpush.msra.mxu0 %v2505
    %3279 = vmatpush.msra.mxu0 %v2501
    %3280 = vmatpush.msra.mxu0 %v2497
    %3281 = vmatpush.msra.mxu0 %v2493
    %3282 = vmatpush.msra.mxu0 %v2489
    %3283 = vmatpush.msra.mxu0 %v2485
    %3284 = vmatpush.msra.mxu0 %v2481
    %3285 = vmatpush.msra.mxu0 %v2477
    %3286 = vmatpush.msra.mxu0 %v2473
    %3287 = vmatpush.msra.mxu0 %v2469
    %3288 = vmatpush.msra.mxu0 %v2465
    %3289 = vmatpush.msra.mxu0 %v2461
    %3290 = vmatpush.msra.mxu0 %v2457
    %3291 = vmatpush.msra.mxu0 %v2453
    %3292 = vmatpush.msra.mxu0 %v2449
    %3293 = vmatpush.msra.mxu0 %v2445
    %3294 = vmatmul.f32.gmra.mxu0 %v3273
    %v3295 = vpop.f32.mrf.mxu0
    %v3296 = vadd.f32 0.0, %v3295
    %3297 = vdwg.mxu0
    %3298 = vmatpush.msra.mxu0 %v2506
    %3299 = vmatpush.msra.mxu0 %v2502
    %3300 = vmatpush.msra.mxu0 %v2498
    %3301 = vmatpush.msra.mxu0 %v2494
    %3302 = vmatpush.msra.mxu0 %v2490
    %3303 = vmatpush.msra.mxu0 %v2486
    %3304 = vmatpush.msra.mxu0 %v2482
    %3305 = vmatpush.msra.mxu0 %v2478
    %3306 = vmatpush.msra.mxu0 %v2474
    %3307 = vmatpush.msra.mxu0 %v2470
    %3308 = vmatpush.msra.mxu0 %v2466
    %3309 = vmatpush.msra.mxu0 %v2462
    %3310 = vmatpush.msra.mxu0 %v2458
    %3311 = vmatpush.msra.mxu0 %v2454
    %3312 = vmatpush.msra.mxu0 %v2450
    %3313 = vmatpush.msra.mxu0 %v2446
    %3314 = vmatmul.f32.gmra.mxu0 %v3273
    %v3315 = vpop.f32.mrf.mxu0
    %v3316 = vadd.f32 0.0, %v3315
    %3317 = vdwg.mxu0
    %3318 = vmatpush.msra.mxu0 %v2507
    %3319 = vmatpush.msra.mxu0 %v2503
    %3320 = vmatpush.msra.mxu0 %v2499
    %3321 = vmatpush.msra.mxu0 %v2495
    %3322 = vmatpush.msra.mxu0 %v2491
    %3323 = vmatpush.msra.mxu0 %v2487
    %3324 = vmatpush.msra.mxu0 %v2483
    %3325 = vmatpush.msra.mxu0 %v2479
    %3326 = vmatpush.msra.mxu0 %v2475
    %3327 = vmatpush.msra.mxu0 %v2471
    %3328 = vmatpush.msra.mxu0 %v2467
    %3329 = vmatpush.msra.mxu0 %v2463
    %3330 = vmatpush.msra.mxu0 %v2459
    %3331 = vmatpush.msra.mxu0 %v2455
    %3332 = vmatpush.msra.mxu0 %v2451
    %3333 = vmatpush.msra.mxu0 %v2447
    %3334 = vmatmul.f32.gmra.mxu0 %v3273
    %v3335 = vpop.f32.mrf.mxu0
    %v3336 = vadd.f32 0.0, %v3335
    %3337 = vdwg.mxu0
    %3338 = vmatpush.msra.mxu0 %v2508
    %3339 = vmatpush.msra.mxu0 %v2504
    %3340 = vmatpush.msra.mxu0 %v2500
    %3341 = vmatpush.msra.mxu0 %v2496
    %3342 = vmatpush.msra.mxu0 %v2492
    %3343 = vmatpush.msra.mxu0 %v2488
    %3344 = vmatpush.msra.mxu0 %v2484
    %3345 = vmatpush.msra.mxu0 %v2480
    %3346 = vmatpush.msra.mxu0 %v2476
    %3347 = vmatpush.msra.mxu0 %v2472
    %3348 = vmatpush.msra.mxu0 %v2468
    %3349 = vmatpush.msra.mxu0 %v2464
    %3350 = vmatpush.msra.mxu0 %v2460
    %3351 = vmatpush.msra.mxu0 %v2456
    %3352 = vmatpush.msra.mxu0 %v2452
    %3353 = vmatpush.msra.mxu0 %v2448
    %3354 = vmatmul.f32.gmra.mxu0 %v3273
    %v3355 = vpop.f32.mrf.mxu0
    %v3356 = vadd.f32 0.0, %v3355
    %3357 = vdwg.mxu0
    %v3358 = vadd.f32 %v3274, %v3296
    %v3359 = vadd.f32 %v3275, %v3316
    %v3360 = vadd.f32 %v3276, %v3336
    %v3361 = vadd.f32 %v3277, %v3356
    %v3362 = vxor.u32 %v3358, 2147483648
    %v3363 = vxor.u32 %v3359, 2147483648
    %v3364 = vxor.u32 %v3360, 2147483648
    %v3365 = vmul.f32 %v3362, 1.442695
    %v3366 = vpow.pop %v3365
    %v3367 = vmul.f32 %v3363, 1.442695
    %v3368 = vpow.pop %v3367
    %v3369 = vmul.f32 %v3364, 1.442695
    %v3370 = vpow.pop %v3369
    %v3371 = vadd.f32 %v3366, 1.0
    %v3372 = vadd.f32 %v3368, 1.0
    %v3373 = vadd.f32 %v3370, 1.0
    %v3374 = vrcp.pop %v3371
    %v3375 = vmul.f32 %v3371, %v3374
    %v3376 = vsub.f32 1.0, %v3375
    %v3377 = vmul.f32 %v3374, %v3376
    %v3378 = vadd.f32 %v3374, %v3377
    %vm3379 = vweird.f32 %v3371
    %vm3380 = vweird.f32 %v3374
    %vm3381 = vmor %vm3379, %vm3380
    %v3382 = vsel %vm3381, %v3374, %v3378
    %v3383 = vand.u32 2147483647, %v3371
    %vm3384 = vcmp.eq.f32.partialorder %v3383, 8.507059e+37
    %v3385 = vand.u32 %v3371, 2147483648
    %v3386 = vor.u32 1.1754944e-38, %v3385
    %v3387 = vsel %vm3384, %v3386, %v3382
    %v3388 = vmul.f32 1.0, %v3387
    %v3389 = vrcp.pop %v3372
    %v3390 = vmul.f32 %v3372, %v3389
    %v3391 = vsub.f32 1.0, %v3390
    %v3392 = vmul.f32 %v3389, %v3391
    %v3393 = vadd.f32 %v3389, %v3392
    %vm3394 = vweird.f32 %v3372
    %vm3395 = vweird.f32 %v3389
    %vm3396 = vmor %vm3394, %vm3395
    %v3397 = vsel %vm3396, %v3389, %v3393
    %v3398 = vand.u32 2147483647, %v3372
    %vm3399 = vcmp.eq.f32.partialorder %v3398, 8.507059e+37
    %v3400 = vand.u32 %v3372, 2147483648
    %v3401 = vor.u32 1.1754944e-38, %v3400
    %v3402 = vsel %vm3399, %v3401, %v3397
    %v3403 = vmul.f32 1.0, %v3402
    %v3404 = vrcp.pop %v3373
    %v3405 = vmul.f32 %v3373, %v3404
    %v3406 = vsub.f32 1.0, %v3405
    %v3407 = vmul.f32 %v3404, %v3406
    %v3408 = vadd.f32 %v3404, %v3407
    %vm3409 = vweird.f32 %v3373
    %vm3410 = vweird.f32 %v3404
    %vm3411 = vmor %vm3409, %vm3410
    %v3412 = vsel %vm3411, %v3404, %v3408
    %v3413 = vand.u32 2147483647, %v3373
    %vm3414 = vcmp.eq.f32.partialorder %v3413, 8.507059e+37
    %v3415 = vand.u32 %v3373, 2147483648
    %v3416 = vor.u32 1.1754944e-38, %v3415
    %v3417 = vsel %vm3414, %v3416, %v3412
    %v3418 = vmul.f32 1.0, %v3417
    %v3419 = vtanh.pop %v3361
    %v3420 = vmul.f32 %v3403, %v3272
    %v3421 = vmul.f32 %v3388, %v3419
    %v3422 = vadd.f32 %v3420, %v3421
    %v3423 = vtanh.pop %v3422
    %v3424 = vmul.f32 %v3418, %v3423
    %v3425 = vsel %vm1854, %v3422, %v3272
    %v3426 = vsel %vm1854, %v3424, %v3273
    %v3427 = vld [vmem:[#allocation2 + $0xc0] sm:$0xff]
    %v3428 = vld [vmem:[#allocation2 + $0xc8] sm:$0xff]
    %v3429 = vld [vmem:[#allocation2 + $0xd0] sm:$0xff]
    %v3430 = vld [vmem:[#allocation2 + $0xd8] sm:$0xff]
    %3431 = vmatpush.msra.mxu0 %v2505
    %3432 = vmatpush.msra.mxu0 %v2501
    %3433 = vmatpush.msra.mxu0 %v2497
    %3434 = vmatpush.msra.mxu0 %v2493
    %3435 = vmatpush.msra.mxu0 %v2489
    %3436 = vmatpush.msra.mxu0 %v2485
    %3437 = vmatpush.msra.mxu0 %v2481
    %3438 = vmatpush.msra.mxu0 %v2477
    %3439 = vmatpush.msra.mxu0 %v2473
    %3440 = vmatpush.msra.mxu0 %v2469
    %3441 = vmatpush.msra.mxu0 %v2465
    %3442 = vmatpush.msra.mxu0 %v2461
    %3443 = vmatpush.msra.mxu0 %v2457
    %3444 = vmatpush.msra.mxu0 %v2453
    %3445 = vmatpush.msra.mxu0 %v2449
    %3446 = vmatpush.msra.mxu0 %v2445
    %3447 = vmatmul.f32.gmra.mxu0 %v3426
    %v3448 = vpop.f32.mrf.mxu0
    %v3449 = vadd.f32 0.0, %v3448
    %3450 = vdwg.mxu0
    %3451 = vmatpush.msra.mxu0 %v2506
    %3452 = vmatpush.msra.mxu0 %v2502
    %3453 = vmatpush.msra.mxu0 %v2498
    %3454 = vmatpush.msra.mxu0 %v2494
    %3455 = vmatpush.msra.mxu0 %v2490
    %3456 = vmatpush.msra.mxu0 %v2486
    %3457 = vmatpush.msra.mxu0 %v2482
    %3458 = vmatpush.msra.mxu0 %v2478
    %3459 = vmatpush.msra.mxu0 %v2474
    %3460 = vmatpush.msra.mxu0 %v2470
    %3461 = vmatpush.msra.mxu0 %v2466
    %3462 = vmatpush.msra.mxu0 %v2462
    %3463 = vmatpush.msra.mxu0 %v2458
    %3464 = vmatpush.msra.mxu0 %v2454
    %3465 = vmatpush.msra.mxu0 %v2450
    %3466 = vmatpush.msra.mxu0 %v2446
    %3467 = vmatmul.f32.gmra.mxu0 %v3426
    %v3468 = vpop.f32.mrf.mxu0
    %v3469 = vadd.f32 0.0, %v3468
    %3470 = vdwg.mxu0
    %3471 = vmatpush.msra.mxu0 %v2507
    %3472 = vmatpush.msra.mxu0 %v2503
    %3473 = vmatpush.msra.mxu0 %v2499
    %3474 = vmatpush.msra.mxu0 %v2495
    %3475 = vmatpush.msra.mxu0 %v2491
    %3476 = vmatpush.msra.mxu0 %v2487
    %3477 = vmatpush.msra.mxu0 %v2483
    %3478 = vmatpush.msra.mxu0 %v2479
    %3479 = vmatpush.msra.mxu0 %v2475
    %3480 = vmatpush.msra.mxu0 %v2471
    %3481 = vmatpush.msra.mxu0 %v2467
    %3482 = vmatpush.msra.mxu0 %v2463
    %3483 = vmatpush.msra.mxu0 %v2459
    %3484 = vmatpush.msra.mxu0 %v2455
    %3485 = vmatpush.msra.mxu0 %v2451
    %3486 = vmatpush.msra.mxu0 %v2447
    %3487 = vmatmul.f32.gmra.mxu0 %v3426
    %v3488 = vpop.f32.mrf.mxu0
    %v3489 = vadd.f32 0.0, %v3488
    %3490 = vdwg.mxu0
    %3491 = vmatpush.msra.mxu0 %v2508
    %3492 = vmatpush.msra.mxu0 %v2504
    %3493 = vmatpush.msra.mxu0 %v2500
    %3494 = vmatpush.msra.mxu0 %v2496
    %3495 = vmatpush.msra.mxu0 %v2492
    %3496 = vmatpush.msra.mxu0 %v2488
    %3497 = vmatpush.msra.mxu0 %v2484
    %3498 = vmatpush.msra.mxu0 %v2480
    %3499 = vmatpush.msra.mxu0 %v2476
    %3500 = vmatpush.msra.mxu0 %v2472
    %3501 = vmatpush.msra.mxu0 %v2468
    %3502 = vmatpush.msra.mxu0 %v2464
    %3503 = vmatpush.msra.mxu0 %v2460
    %3504 = vmatpush.msra.mxu0 %v2456
    %3505 = vmatpush.msra.mxu0 %v2452
    %3506 = vmatpush.msra.mxu0 %v2448
    %3507 = vmatmul.f32.gmra.mxu0 %v3426
    %v3508 = vpop.f32.mrf.mxu0
    %v3509 = vadd.f32 0.0, %v3508
    %3510 = vdwg.mxu0
    %v3511 = vadd.f32 %v3427, %v3449
    %v3512 = vadd.f32 %v3428, %v3469
    %v3513 = vadd.f32 %v3429, %v3489
    %v3514 = vadd.f32 %v3430, %v3509
    %v3515 = vxor.u32 %v3511, 2147483648
    %v3516 = vxor.u32 %v3512, 2147483648
    %v3517 = vxor.u32 %v3513, 2147483648
    %v3518 = vmul.f32 %v3515, 1.442695
    %v3519 = vpow.pop %v3518
    %v3520 = vmul.f32 %v3516, 1.442695
    %v3521 = vpow.pop %v3520
    %v3522 = vmul.f32 %v3517, 1.442695
    %v3523 = vpow.pop %v3522
    %v3524 = vadd.f32 %v3519, 1.0
    %v3525 = vadd.f32 %v3521, 1.0
    %v3526 = vadd.f32 %v3523, 1.0
    %v3527 = vrcp.pop %v3524
    %v3528 = vmul.f32 %v3524, %v3527
    %v3529 = vsub.f32 1.0, %v3528
    %v3530 = vmul.f32 %v3527, %v3529
    %v3531 = vadd.f32 %v3527, %v3530
    %vm3532 = vweird.f32 %v3524
    %vm3533 = vweird.f32 %v3527
    %vm3534 = vmor %vm3532, %vm3533
    %v3535 = vsel %vm3534, %v3527, %v3531
    %v3536 = vand.u32 2147483647, %v3524
    %vm3537 = vcmp.eq.f32.partialorder %v3536, 8.507059e+37
    %v3538 = vand.u32 %v3524, 2147483648
    %v3539 = vor.u32 1.1754944e-38, %v3538
    %v3540 = vsel %vm3537, %v3539, %v3535
    %v3541 = vmul.f32 1.0, %v3540
    %v3542 = vrcp.pop %v3525
    %v3543 = vmul.f32 %v3525, %v3542
    %v3544 = vsub.f32 1.0, %v3543
    %v3545 = vmul.f32 %v3542, %v3544
    %v3546 = vadd.f32 %v3542, %v3545
    %vm3547 = vweird.f32 %v3525
    %vm3548 = vweird.f32 %v3542
    %vm3549 = vmor %vm3547, %vm3548
    %v3550 = vsel %vm3549, %v3542, %v3546
    %v3551 = vand.u32 2147483647, %v3525
    %vm3552 = vcmp.eq.f32.partialorder %v3551, 8.507059e+37
    %v3553 = vand.u32 %v3525, 2147483648
    %v3554 = vor.u32 1.1754944e-38, %v3553
    %v3555 = vsel %vm3552, %v3554, %v3550
    %v3556 = vmul.f32 1.0, %v3555
    %v3557 = vrcp.pop %v3526
    %v3558 = vmul.f32 %v3526, %v3557
    %v3559 = vsub.f32 1.0, %v3558
    %v3560 = vmul.f32 %v3557, %v3559
    %v3561 = vadd.f32 %v3557, %v3560
    %vm3562 = vweird.f32 %v3526
    %vm3563 = vweird.f32 %v3557
    %vm3564 = vmor %vm3562, %vm3563
    %v3565 = vsel %vm3564, %v3557, %v3561
    %v3566 = vand.u32 2147483647, %v3526
    %vm3567 = vcmp.eq.f32.partialorder %v3566, 8.507059e+37
    %v3568 = vand.u32 %v3526, 2147483648
    %v3569 = vor.u32 1.1754944e-38, %v3568
    %v3570 = vsel %vm3567, %v3569, %v3565
    %v3571 = vmul.f32 1.0, %v3570
    %v3572 = vtanh.pop %v3514
    %v3573 = vmul.f32 %v3556, %v3425
    %v3574 = vmul.f32 %v3541, %v3572
    %v3575 = vadd.f32 %v3573, %v3574
    %v3576 = vtanh.pop %v3575
    %v3577 = vmul.f32 %v3571, %v3576
    %v3578 = vsel %vm2009, %v3575, %v3425
    %v3579 = vsel %vm2009, %v3577, %v3426
    %v3580 = vld [vmem:[#allocation2 + $0xe0] sm:$0xff]
    %v3581 = vld [vmem:[#allocation2 + $0xe8] sm:$0xff]
    %v3582 = vld [vmem:[#allocation2 + $0xf0] sm:$0xff]
    %v3583 = vld [vmem:[#allocation2 + $0xf8] sm:$0xff]
    %3584 = vmatpush.msra.mxu0 %v2505
    %3585 = vmatpush.msra.mxu0 %v2501
    %3586 = vmatpush.msra.mxu0 %v2497
    %3587 = vmatpush.msra.mxu0 %v2493
    %3588 = vmatpush.msra.mxu0 %v2489
    %3589 = vmatpush.msra.mxu0 %v2485
    %3590 = vmatpush.msra.mxu0 %v2481
    %3591 = vmatpush.msra.mxu0 %v2477
    %3592 = vmatpush.msra.mxu0 %v2473
    %3593 = vmatpush.msra.mxu0 %v2469
    %3594 = vmatpush.msra.mxu0 %v2465
    %3595 = vmatpush.msra.mxu0 %v2461
    %3596 = vmatpush.msra.mxu0 %v2457
    %3597 = vmatpush.msra.mxu0 %v2453
    %3598 = vmatpush.msra.mxu0 %v2449
    %3599 = vmatpush.msra.mxu0 %v2445
    %3600 = vmatmul.f32.gmra.mxu0 %v3579
    %v3601 = vpop.f32.mrf.mxu0
    %v3602 = vadd.f32 0.0, %v3601
    %3603 = vdwg.mxu0
    %3604 = vmatpush.msra.mxu0 %v2506
    %3605 = vmatpush.msra.mxu0 %v2502
    %3606 = vmatpush.msra.mxu0 %v2498
    %3607 = vmatpush.msra.mxu0 %v2494
    %3608 = vmatpush.msra.mxu0 %v2490
    %3609 = vmatpush.msra.mxu0 %v2486
    %3610 = vmatpush.msra.mxu0 %v2482
    %3611 = vmatpush.msra.mxu0 %v2478
    %3612 = vmatpush.msra.mxu0 %v2474
    %3613 = vmatpush.msra.mxu0 %v2470
    %3614 = vmatpush.msra.mxu0 %v2466
    %3615 = vmatpush.msra.mxu0 %v2462
    %3616 = vmatpush.msra.mxu0 %v2458
    %3617 = vmatpush.msra.mxu0 %v2454
    %3618 = vmatpush.msra.mxu0 %v2450
    %3619 = vmatpush.msra.mxu0 %v2446
    %3620 = vmatmul.f32.gmra.mxu0 %v3579
    %v3621 = vpop.f32.mrf.mxu0
    %v3622 = vadd.f32 0.0, %v3621
    %3623 = vdwg.mxu0
    %3624 = vmatpush.msra.mxu0 %v2507
    %3625 = vmatpush.msra.mxu0 %v2503
    %3626 = vmatpush.msra.mxu0 %v2499
    %3627 = vmatpush.msra.mxu0 %v2495
    %3628 = vmatpush.msra.mxu0 %v2491
    %3629 = vmatpush.msra.mxu0 %v2487
    %3630 = vmatpush.msra.mxu0 %v2483
    %3631 = vmatpush.msra.mxu0 %v2479
    %3632 = vmatpush.msra.mxu0 %v2475
    %3633 = vmatpush.msra.mxu0 %v2471
    %3634 = vmatpush.msra.mxu0 %v2467
    %3635 = vmatpush.msra.mxu0 %v2463
    %3636 = vmatpush.msra.mxu0 %v2459
    %3637 = vmatpush.msra.mxu0 %v2455
    %3638 = vmatpush.msra.mxu0 %v2451
    %3639 = vmatpush.msra.mxu0 %v2447
    %3640 = vmatmul.f32.gmra.mxu0 %v3579
    %v3641 = vpop.f32.mrf.mxu0
    %v3642 = vadd.f32 0.0, %v3641
    %3643 = vdwg.mxu0
    %3644 = vmatpush.msra.mxu0 %v2508
    %3645 = vmatpush.msra.mxu0 %v2504
    %3646 = vmatpush.msra.mxu0 %v2500
    %3647 = vmatpush.msra.mxu0 %v2496
    %3648 = vmatpush.msra.mxu0 %v2492
    %3649 = vmatpush.msra.mxu0 %v2488
    %3650 = vmatpush.msra.mxu0 %v2484
    %3651 = vmatpush.msra.mxu0 %v2480
    %3652 = vmatpush.msra.mxu0 %v2476
    %3653 = vmatpush.msra.mxu0 %v2472
    %3654 = vmatpush.msra.mxu0 %v2468
    %3655 = vmatpush.msra.mxu0 %v2464
    %3656 = vmatpush.msra.mxu0 %v2460
    %3657 = vmatpush.msra.mxu0 %v2456
    %3658 = vmatpush.msra.mxu0 %v2452
    %3659 = vmatpush.msra.mxu0 %v2448
    %3660 = vmatmul.f32.gmra.mxu0 %v3579
    %v3661 = vpop.f32.mrf.mxu0
    %v3662 = vadd.f32 0.0, %v3661
    %3663 = vdwg.mxu0
    %v3664 = vadd.f32 %v3580, %v3602
    %v3665 = vadd.f32 %v3581, %v3622
    %v3666 = vadd.f32 %v3582, %v3642
    %v3667 = vadd.f32 %v3583, %v3662
    %v3668 = vxor.u32 %v3664, 2147483648
    %v3669 = vxor.u32 %v3665, 2147483648
    %v3670 = vxor.u32 %v3666, 2147483648
    %v3671 = vmul.f32 %v3668, 1.442695
    %v3672 = vpow.pop %v3671
    %v3673 = vmul.f32 %v3669, 1.442695
    %v3674 = vpow.pop %v3673
    %v3675 = vmul.f32 %v3670, 1.442695
    %v3676 = vpow.pop %v3675
    %v3677 = vadd.f32 %v3672, 1.0
    %v3678 = vadd.f32 %v3674, 1.0
    %v3679 = vadd.f32 %v3676, 1.0
    %v3680 = vrcp.pop %v3677
    %v3681 = vmul.f32 %v3677, %v3680
    %v3682 = vsub.f32 1.0, %v3681
    %v3683 = vmul.f32 %v3680, %v3682
    %v3684 = vadd.f32 %v3680, %v3683
    %vm3685 = vweird.f32 %v3677
    %vm3686 = vweird.f32 %v3680
    %vm3687 = vmor %vm3685, %vm3686
    %v3688 = vsel %vm3687, %v3680, %v3684
    %v3689 = vand.u32 2147483647, %v3677
    %vm3690 = vcmp.eq.f32.partialorder %v3689, 8.507059e+37
    %v3691 = vand.u32 %v3677, 2147483648
    %v3692 = vor.u32 1.1754944e-38, %v3691
    %v3693 = vsel %vm3690, %v3692, %v3688
    %v3694 = vmul.f32 1.0, %v3693
    %v3695 = vrcp.pop %v3678
    %v3696 = vmul.f32 %v3678, %v3695
    %v3697 = vsub.f32 1.0, %v3696
    %v3698 = vmul.f32 %v3695, %v3697
    %v3699 = vadd.f32 %v3695, %v3698
    %vm3700 = vweird.f32 %v3678
    %vm3701 = vweird.f32 %v3695
    %vm3702 = vmor %vm3700, %vm3701
    %v3703 = vsel %vm3702, %v3695, %v3699
    %v3704 = vand.u32 2147483647, %v3678
    %vm3705 = vcmp.eq.f32.partialorder %v3704, 8.507059e+37
    %v3706 = vand.u32 %v3678, 2147483648
    %v3707 = vor.u32 1.1754944e-38, %v3706
    %v3708 = vsel %vm3705, %v3707, %v3703
    %v3709 = vmul.f32 1.0, %v3708
    %v3710 = vrcp.pop %v3679
    %v3711 = vmul.f32 %v3679, %v3710
    %v3712 = vsub.f32 1.0, %v3711
    %v3713 = vmul.f32 %v3710, %v3712
    %v3714 = vadd.f32 %v3710, %v3713
    %vm3715 = vweird.f32 %v3679
    %vm3716 = vweird.f32 %v3710
    %vm3717 = vmor %vm3715, %vm3716
    %v3718 = vsel %vm3717, %v3710, %v3714
    %v3719 = vand.u32 2147483647, %v3679
    %vm3720 = vcmp.eq.f32.partialorder %v3719, 8.507059e+37
    %v3721 = vand.u32 %v3679, 2147483648
    %v3722 = vor.u32 1.1754944e-38, %v3721
    %v3723 = vsel %vm3720, %v3722, %v3718
    %v3724 = vmul.f32 1.0, %v3723
    %v3725 = vtanh.pop %v3667
    %v3726 = vmul.f32 %v3709, %v3578
    %v3727 = vmul.f32 %v3694, %v3725
    %v3728 = vadd.f32 %v3726, %v3727
    %v3729 = vtanh.pop %v3728
    %v3730 = vmul.f32 %v3724, %v3729
    %v3731 = vsel %vm2164, %v3730, %v3579
    %v3732 = vld [vmem:[#allocation13] sm:$0xff]
    %v3733 = vld [vmem:[#allocation13 + $0x8] sm:$0xff]
    %v3734 = vld [vmem:[#allocation13 + $0x10] sm:$0xff]
    %v3735 = vld [vmem:[#allocation13 + $0x18] sm:$0xff]
    %v3736 = vld [vmem:[#allocation13 + $0x20] sm:$0xff]
    %v3737 = vld [vmem:[#allocation13 + $0x28] sm:$0xff]
    %v3738 = vld [vmem:[#allocation13 + $0x30] sm:$0xff]
    %v3739 = vld [vmem:[#allocation13 + $0x38] sm:$0xff]
    %v3740 = vld [vmem:[#allocation13 + $0x40] sm:$0xff]
    %v3741 = vld [vmem:[#allocation13 + $0x48] sm:$0xff]
    %v3742 = vld [vmem:[#allocation13 + $0x50] sm:$0xff]
    %v3743 = vld [vmem:[#allocation13 + $0x58] sm:$0xff]
    %v3744 = vld [vmem:[#allocation13 + $0x60] sm:$0xff]
    %v3745 = vld [vmem:[#allocation13 + $0x68] sm:$0xff]
    %v3746 = vld [vmem:[#allocation13 + $0x70] sm:$0xff]
    %v3747 = vld [vmem:[#allocation13 + $0x78] sm:$0xff]
    %v3748 = vld [vmem:[%s9] sm:$0x1]
    %v3750 = vperm.slane %v3748, 0
    %3752 = vmatpush.msra.mxu0 %v3747
    %3753 = vmatpush.msra.mxu0 %v3746
    %3754 = vmatpush.msra.mxu0 %v3745
    %3755 = vmatpush.msra.mxu0 %v3744
    %3756 = vmatpush.msra.mxu0 %v3743
    %3757 = vmatpush.msra.mxu0 %v3742
    %3758 = vmatpush.msra.mxu0 %v3741
    %3759 = vmatpush.msra.mxu0 %v3740
    %3760 = vmatpush.msra.mxu0 %v3739
    %3761 = vmatpush.msra.mxu0 %v3738
    %3762 = vmatpush.msra.mxu0 %v3737
    %3763 = vmatpush.msra.mxu0 %v3736
    %3764 = vmatpush.msra.mxu0 %v3735
    %3765 = vmatpush.msra.mxu0 %v3734
    %3766 = vmatpush.msra.mxu0 %v3733
    %3767 = vmatpush.msra.mxu0 %v3732
    %3768 = vmatmul.f32.gmra.mxu0 %v3731
    %v3769 = vpop.f32.mrf.mxu0
    %v3770 = vadd.f32 %v3750, %v3769
    %3771 = vdwg.mxu0
    %3772 = vmax.xlane.f32.xlu0 %v3770
    %v3773 = vpop.xlane.xlu0 %3772
    %v3774 = vsub.f32 %v3770, %v3773
    %v3775 = vmul.f32 %v3774, 1.442695
    %v3776 = vpow.pop %v3775
    %3777 = vadd.xlane.f32.xlu0 %v3776
    %v3778 = vpop.xlane.xlu0 %3777
    %v3779 = vlog2.pop %v3778
    %v3780 = vmul.f32 %v3779, 0.6931472
    %v3781 = vsub.f32 %v3774, %v3780
    %3782 = vst [vmem:[#allocation15] sm:$0xff] %v3781
    // Predicated region
    $region66: #{tpu_custom_call.1} parent=1 // pred_check
      _
    $region67: #{tpu_custom_call.1} parent=1 // pred_check_branch
      %3784 = sbr.rel (0) target = $region69
    $region68: #{tpu_custom_call.1} parent=1 // pred_region
      %3786 = vsyncadd [#allocation6], 0
      %s3788 = sshll.u32 [#allocation15], 4
      %s3789 = int_to_ptr.vmem [resolvable:$true] %s3788
      %s3790 = sshll.u32 %s10, 4
      %s3791 = int_to_ptr.hbm [resolvable:$true] %s3790
      %3793 = dma.vmem_to_hbm [thread:$0]  %s3789, 128, %s3791, [#allocation6]
    $region69: #{tpu_custom_call.1} parent=1 // pred_fallthru
      _
    // Predicated region
    $region70: #{tpu_custom_call.1} parent=1 // pred_check
      _
    $region71: #{tpu_custom_call.1} parent=1 // pred_check_branch
      %3795 = sbr.rel (0) target = $region73
    $region72: #{tpu_custom_call.1} parent=1 // pred_region
      %3797 = dma.done [#allocation6], 128
    $region73: #{tpu_custom_call.1} parent=1 // pred_fallthru
      _
    %3798 = vsyncpa [#allocation5], 1
    %3799 = vsyncpa [#allocation8], 1
    %3800 = vsyncpa [#allocation11], 1
    %3801 = vsyncpa [#allocation14], 1
    %3802 = vsyncpa [#allocation6], 1

</llo_original>
